<compile_context>
chip_gen: v7x
topology: tpu7x:2x2x1
jax: 0.10.0
libtpu: 0.0.40
codegen_flags: <defaults>
</compile_context>

<pallas_src>
import functools

import jax
import jax.numpy as jnp
from jax import lax
from jax.experimental import pallas as pl
from jax.experimental.pallas import tpu as pltpu

H_ENC = 128   # encoder hidden size (self.hidden_size)
H_DEC = 32    # decoder hidden size (self.hidden_size // 4)


def autoencoder_kernel(enc_in_ref, enc_mask_ref, whe_t_ref,
                       wid_t_ref, bd_ref, whd_t_ref, dec_mask_ref,
                       out_ref,
                       h_e, c_e, enc_buf, enc_proj, h_d, c_d):
    T = enc_in_ref.shape[0]
    B = enc_in_ref.shape[1]

    h_e[...] = jnp.zeros_like(h_e)
    c_e[...] = jnp.zeros_like(c_e)
    h_d[...] = jnp.zeros_like(h_d)
    c_d[...] = jnp.zeros_like(c_d)

    # ---- encoder LSTM (input projection + bias precomputed in wrapper) ----
    def enc_step(t, carry):
        gates = enc_in_ref[t] + jnp.dot(
            h_e[...].astype(jnp.bfloat16), whe_t_ref[...],
            preferred_element_type=jnp.float32)
        i = jax.nn.sigmoid(gates[:, 0 * H_ENC:1 * H_ENC])
        f = jax.nn.sigmoid(gates[:, 1 * H_ENC:2 * H_ENC])
        g = jnp.tanh(gates[:, 2 * H_ENC:3 * H_ENC])
        o = jax.nn.sigmoid(gates[:, 3 * H_ENC:4 * H_ENC])
        c = f * c_e[...] + i * g
        h = o * jnp.tanh(c)
        c_e[...] = c
        h_e[...] = h
        # F.dropout(training=True): mask already holds 0 or 1/keep.
        enc_buf[t] = (h * enc_mask_ref[t]).astype(jnp.bfloat16)
        return carry

    lax.fori_loop(0, T, enc_step, 0, unroll=True)

    # ---- hoisted decoder input projection: one big MXU GEMM ----
    enc_flat = enc_buf[...].reshape(T * B, H_ENC)                 # bf16
    proj = jnp.dot(enc_flat, wid_t_ref[...],
                   preferred_element_type=jnp.float32) + bd_ref[...]
    enc_proj[...] = proj.reshape(T, B, 4 * H_DEC)

    # ---- decoder LSTM (128 -> 32), only the tiny recurrent matmul per step ----
    def dec_step(t, carry):
        gates = enc_proj[t] + jnp.dot(
            h_d[...].astype(jnp.bfloat16), whd_t_ref[...],
            preferred_element_type=jnp.float32)
        i = jax.nn.sigmoid(gates[:, 0 * H_DEC:1 * H_DEC])
        f = jax.nn.sigmoid(gates[:, 1 * H_DEC:2 * H_DEC])
        g = jnp.tanh(gates[:, 2 * H_DEC:3 * H_DEC])
        o = jax.nn.sigmoid(gates[:, 3 * H_DEC:4 * H_DEC])
        c = f * c_d[...] + i * g
        h = o * jnp.tanh(c)
        c_d[...] = c
        h_d[...] = h
        out_ref[t] = (h * dec_mask_ref[t]).astype(out_ref.dtype)
        return carry

    lax.fori_loop(0, T, dec_step, 0, unroll=True)


def init_params(key, input_size=1):
    """Deterministic init mirroring nn.LSTM's U(-1/sqrt(H), 1/sqrt(H))."""
    keys = jax.random.split(key, 8)
    ke = 1.0 / (H_ENC ** 0.5)
    kd = 1.0 / (H_DEC ** 0.5)
    u = lambda kk, shape, s: jax.random.uniform(kk, shape, jnp.float32, -s, s)
    return dict(
        w_ih_e=u(keys[0], (4 * H_ENC, input_size), ke),
        w_hh_e=u(keys[1], (4 * H_ENC, H_ENC), ke),
        b_ih_e=u(keys[2], (4 * H_ENC,), ke),
        b_hh_e=u(keys[3], (4 * H_ENC,), ke),
        w_ih_d=u(keys[4], (4 * H_DEC, H_ENC), kd),
        w_hh_d=u(keys[5], (4 * H_DEC, H_DEC), kd),
        b_ih_d=u(keys[6], (4 * H_DEC,), kd),
        b_hh_d=u(keys[7], (4 * H_DEC,), kd),
    )


@functools.partial(jax.jit, static_argnames=("dropout_p",))
def autoencoder_forward(x, params, dropout_key, dropout_p=0.5):
    """x: (B, T, input_size) batch-first like PyTorch. Returns (B, T, 32) f32."""
    B, T, I = x.shape
    Bp = max(8, ((B + 7) // 8) * 8)            # sublane-aligned batch
    keep = 1.0 - dropout_p

    # time-major, batch-padded input
    xt = jnp.transpose(x, (1, 0, 2)).astype(jnp.float32)          # (T, B, I)
    x_tm = jnp.zeros((T, Bp, I), jnp.float32).at[:, :B, :].set(xt)

    # Hoisted encoder input projection + fused biases (input_size is tiny, so
    # this is a cheap broadcast/GEMV done once by XLA, not per step on the MXU).
    be = params["b_ih_e"] + params["b_hh_e"]                      # (512,)
    enc_in = jnp.einsum("tbi,gi->tbg", x_tm, params["w_ih_e"]) + be

    # bf16 matmul operands (f32 accumulation inside the kernel).
    whe_t = params["w_hh_e"].T.astype(jnp.bfloat16)               # (128, 512)
    wid_t = params["w_ih_d"].T.astype(jnp.bfloat16)               # (128, 128)
    whd_t = params["w_hh_d"].T.astype(jnp.bfloat16)               # (32, 128)
    bd = (params["b_ih_d"] + params["b_hh_d"]).reshape(1, 4 * H_DEC)

    # F.dropout(p, training=True) masks: 0 with prob p, else 1/keep.
    # TODO(synk): RNG stream differs from torch's; Bernoulli(keep)/keep
    # semantics are identical.
    k1, k2 = jax.random.split(dropout_key)
    enc_mask = jax.random.bernoulli(k1, keep, (T, Bp, H_ENC)).astype(
        jnp.float32) * (1.0 / keep)
    dec_mask = jax.random.bernoulli(k2, keep, (T, Bp, H_DEC)).astype(
        jnp.float32) * (1.0 / keep)

    vmem = pl.BlockSpec(memory_space=pltpu.MemorySpace.VMEM)
    out_tm = pl.pallas_call(
        autoencoder_kernel,
        out_shape=jax.ShapeDtypeStruct((T, Bp, H_DEC), jnp.float32),
        in_specs=[vmem] * 7,
        out_specs=vmem,
        scratch_shapes=[
            pltpu.VMEM((Bp, H_ENC), jnp.float32),         # h_e
            pltpu.VMEM((Bp, H_ENC), jnp.float32),         # c_e
            pltpu.VMEM((T, Bp, H_ENC), jnp.bfloat16),     # dropped encoder outs
            pltpu.VMEM((T, Bp, 4 * H_DEC), jnp.float32),  # decoder input proj
            pltpu.VMEM((Bp, H_DEC), jnp.float32),         # h_d
            pltpu.VMEM((Bp, H_DEC), jnp.float32),         # c_d
        ],
    )(enc_in, enc_mask, whe_t, wid_t, bd, whd_t, dec_mask)

    return jnp.transpose(out_tm, (1, 0, 2))[:B]                   # (B, T, 32)


if __name__ == "__main__":
    key = jax.random.PRNGKey(0)
    kp, kx, kd = jax.random.split(key, 3)
    params = init_params(kp, input_size=1)

    B, T = 8, 8
    x = jax.random.normal(kx, (B, T, 1), jnp.float32)

    out = autoencoder_forward(x, params, kd, dropout_p=0.5)
    out = jax.block_until_ready(out)
    assert out.shape == (B, T, H_DEC), out.shape
    assert out.dtype == jnp.float32
    assert bool(jnp.all(jnp.isfinite(out)))
    print("KERNEL_OK")
</pallas_src>

<mosaic_0001>
module attributes {stable_mosaic.version = 11 : i64} {
  func.func @autoencoder_kernel(%arg0: memref<8x8x512xf32, #tpu.memory_space<vmem>>, %arg1: memref<8x8x128xf32, #tpu.memory_space<vmem>>, %arg2: memref<128x512xbf16, #tpu.memory_space<vmem>>, %arg3: memref<128x128xbf16, #tpu.memory_space<vmem>>, %arg4: memref<1x128xf32, #tpu.memory_space<vmem>>, %arg5: memref<32x128xbf16, #tpu.memory_space<vmem>>, %arg6: memref<8x8x32xf32, #tpu.memory_space<vmem>>, %arg7: memref<8x8x32xf32, #tpu.memory_space<vmem>>, %arg8: memref<8x128xf32, #tpu.memory_space<vmem>>, %arg9: memref<8x128xf32, #tpu.memory_space<vmem>>, %arg10: memref<8x8x128xbf16, #tpu.memory_space<vmem>>, %arg11: memref<8x8x128xf32, #tpu.memory_space<vmem>>, %arg12: memref<8x32xf32, #tpu.memory_space<vmem>>, %arg13: memref<8x32xf32, #tpu.memory_space<vmem>>) attributes {dimension_semantics = [], scalar_prefetch = 0 : i64, scratch_operands = 6 : i64, tpu.core_type = #tpu.core_type<tc>} {
    %cst = arith.constant 0.000000e+00 : f32
    %0 = vector.broadcast %cst : f32 to vector<8x128xf32>
    %c0 = arith.constant 0 : index
    %c0_0 = arith.constant 0 : index
    %1 = vector.load %arg8[%c0, %c0_0] : memref<8x128xf32, #tpu.memory_space<vmem>>, vector<8x128xf32>
    tpu.vector_store %arg8[%c0, %c0_0], %0 {strides = array<i32>} : memref<8x128xf32, #tpu.memory_space<vmem>>, vector<8x128xf32>,
    %cst_1 = arith.constant 0.000000e+00 : f32
    %2 = vector.broadcast %cst_1 : f32 to vector<8x128xf32>
    %c0_2 = arith.constant 0 : index
    %c0_3 = arith.constant 0 : index
    %3 = vector.load %arg9[%c0_2, %c0_3] : memref<8x128xf32, #tpu.memory_space<vmem>>, vector<8x128xf32>
    tpu.vector_store %arg9[%c0_2, %c0_3], %2 {strides = array<i32>} : memref<8x128xf32, #tpu.memory_space<vmem>>, vector<8x128xf32>,
    %cst_4 = arith.constant 0.000000e+00 : f32
    %4 = vector.broadcast %cst_4 : f32 to vector<8x32xf32>
    %c0_5 = arith.constant 0 : index
    %c0_6 = arith.constant 0 : index
    %5 = vector.load %arg12[%c0_5, %c0_6] : memref<8x32xf32, #tpu.memory_space<vmem>>, vector<8x32xf32>
    tpu.vector_store %arg12[%c0_5, %c0_6], %4 {strides = array<i32>} : memref<8x32xf32, #tpu.memory_space<vmem>>, vector<8x32xf32>,
    %cst_7 = arith.constant 0.000000e+00 : f32
    %6 = vector.broadcast %cst_7 : f32 to vector<8x32xf32>
    %c0_8 = arith.constant 0 : index
    %c0_9 = arith.constant 0 : index
    %7 = vector.load %arg13[%c0_8, %c0_9] : memref<8x32xf32, #tpu.memory_space<vmem>>, vector<8x32xf32>
    tpu.vector_store %arg13[%c0_8, %c0_9], %6 {strides = array<i32>} : memref<8x32xf32, #tpu.memory_space<vmem>>, vector<8x32xf32>,
    %c0_i32 = arith.constant 0 : i32
    %8 = arith.index_cast %c0_i32 : i32 to index
    %c0_10 = arith.constant 0 : index
    %c0_11 = arith.constant 0 : index
    %9 = vector.load %arg0[%8, %c0_10, %c0_11] : memref<8x8x512xf32, #tpu.memory_space<vmem>>, vector<1x8x512xf32>
    %10 = vector.shape_cast %9 : vector<1x8x512xf32> to vector<8x512xf32>
    %c0_12 = arith.constant 0 : index
    %c0_13 = arith.constant 0 : index
    %11 = vector.load %arg8[%c0_12, %c0_13] : memref<8x128xf32, #tpu.memory_space<vmem>>, vector<8x128xf32>
    %12 = arith.truncf %11 : vector<8x128xf32> to vector<8x128xbf16>
    %c0_14 = arith.constant 0 : index
    %c0_15 = arith.constant 0 : index
    %13 = vector.load %arg2[%c0_14, %c0_15] : memref<128x512xbf16, #tpu.memory_space<vmem>>, vector<128x512xbf16>
    %cst_16 = arith.constant dense<0.000000e+00> : vector<8x512xf32>
    %14 = tpu.matmul %12, %13, %cst_16 {dimension_numbers = #tpu.dot_dimension_numbers<[1], [0], [0], [1], [0, 0, 1, 1], [], []>} : vector<8x128xbf16>, vector<128x512xbf16>, vector<8x512xf32> -> vector<8x512xf32>
    %15 = arith.addf %10, %14 : vector<8x512xf32>
    %16 = vector.extract_strided_slice %15 {offsets = [0, 0], sizes = [8, 128], strides = [1, 1]} : vector<8x512xf32> to vector<8x128xf32>
    %17 = arith.negf %16 : vector<8x128xf32>
    %18 = math.exp %17 : vector<8x128xf32>
    %cst_17 = arith.constant 1.000000e+00 : f32
    %19 = vector.broadcast %cst_17 : f32 to vector<8x128xf32>
    %20 = arith.addf %19, %18 : vector<8x128xf32>
    %21 = arith.divf %19, %20 : vector<8x128xf32>
    %22 = vector.extract_strided_slice %15 {offsets = [0, 128], sizes = [8, 128], strides = [1, 1]} : vector<8x512xf32> to vector<8x128xf32>
    %23 = arith.negf %22 : vector<8x128xf32>
    %24 = math.exp %23 : vector<8x128xf32>
    %cst_18 = arith.constant 1.000000e+00 : f32
    %25 = vector.broadcast %cst_18 : f32 to vector<8x128xf32>
    %26 = arith.addf %25, %24 : vector<8x128xf32>
    %27 = arith.divf %25, %26 : vector<8x128xf32>
    %28 = vector.extract_strided_slice %15 {offsets = [0, 256], sizes = [8, 128], strides = [1, 1]} : vector<8x512xf32> to vector<8x128xf32>
    %29 = math.tanh %28 : vector<8x128xf32>
    %30 = vector.extract_strided_slice %15 {offsets = [0, 384], sizes = [8, 128], strides = [1, 1]} : vector<8x512xf32> to vector<8x128xf32>
    %31 = arith.negf %30 : vector<8x128xf32>
    %32 = math.exp %31 : vector<8x128xf32>
    %cst_19 = arith.constant 1.000000e+00 : f32
    %33 = vector.broadcast %cst_19 : f32 to vector<8x128xf32>
    %34 = arith.addf %33, %32 : vector<8x128xf32>
    %35 = arith.divf %33, %34 : vector<8x128xf32>
    %c0_20 = arith.constant 0 : index
    %c0_21 = arith.constant 0 : index
    %36 = vector.load %arg9[%c0_20, %c0_21] : memref<8x128xf32, #tpu.memory_space<vmem>>, vector<8x128xf32>
    %37 = arith.mulf %27, %36 : vector<8x128xf32>
    %38 = arith.mulf %21, %29 : vector<8x128xf32>
    %39 = arith.addf %37, %38 : vector<8x128xf32>
    %40 = math.tanh %39 : vector<8x128xf32>
    %41 = arith.mulf %35, %40 : vector<8x128xf32>
    %c0_22 = arith.constant 0 : index
    %c0_23 = arith.constant 0 : index
    %42 = vector.load %arg9[%c0_22, %c0_23] : memref<8x128xf32, #tpu.memory_space<vmem>>, vector<8x128xf32>
    tpu.vector_store %arg9[%c0_22, %c0_23], %39 {strides = array<i32>} : memref<8x128xf32, #tpu.memory_space<vmem>>, vector<8x128xf32>,
    %c0_24 = arith.constant 0 : index
    %c0_25 = arith.constant 0 : index
    %43 = vector.load %arg8[%c0_24, %c0_25] : memref<8x128xf32, #tpu.memory_space<vmem>>, vector<8x128xf32>
    tpu.vector_store %arg8[%c0_24, %c0_25], %41 {strides = array<i32>} : memref<8x128xf32, #tpu.memory_space<vmem>>, vector<8x128xf32>,
    %44 = arith.index_cast %c0_i32 : i32 to index
    %c0_26 = arith.constant 0 : index
    %c0_27 = arith.constant 0 : index
    %45 = vector.load %arg1[%44, %c0_26, %c0_27] : memref<8x8x128xf32, #tpu.memory_space<vmem>>, vector<1x8x128xf32>
    %46 = vector.shape_cast %45 : vector<1x8x128xf32> to vector<8x128xf32>
    %47 = arith.mulf %41, %46 : vector<8x128xf32>
    %48 = arith.truncf %47 : vector<8x128xf32> to vector<8x128xbf16>
    %49 = arith.index_cast %c0_i32 : i32 to index
    %c0_28 = arith.constant 0 : index
    %c0_29 = arith.constant 0 : index
    %50 = vector.load %arg10[%49, %c0_28, %c0_29] : memref<8x8x128xbf16, #tpu.memory_space<vmem>>, vector<1x8x128xbf16>
    %51 = vector.shape_cast %50 : vector<1x8x128xbf16> to vector<8x128xbf16>
    %52 = vector.shape_cast %48 : vector<8x128xbf16> to vector<1x8x128xbf16>
    tpu.vector_store %arg10[%49, %c0_28, %c0_29], %52 {strides = array<i32>} : memref<8x8x128xbf16, #tpu.memory_space<vmem>>, vector<1x8x128xbf16>,
    %c1_i32 = arith.constant 1 : i32
    %53 = arith.index_cast %c1_i32 : i32 to index
    %c0_30 = arith.constant 0 : index
    %c0_31 = arith.constant 0 : index
    %54 = vector.load %arg0[%53, %c0_30, %c0_31] : memref<8x8x512xf32, #tpu.memory_space<vmem>>, vector<1x8x512xf32>
    %55 = vector.shape_cast %54 : vector<1x8x512xf32> to vector<8x512xf32>
    %c0_32 = arith.constant 0 : index
    %c0_33 = arith.constant 0 : index
    %56 = vector.load %arg8[%c0_32, %c0_33] : memref<8x128xf32, #tpu.memory_space<vmem>>, vector<8x128xf32>
    %57 = arith.truncf %56 : vector<8x128xf32> to vector<8x128xbf16>
    %c0_34 = arith.constant 0 : index
    %c0_35 = arith.constant 0 : index
    %58 = vector.load %arg2[%c0_34, %c0_35] : memref<128x512xbf16, #tpu.memory_space<vmem>>, vector<128x512xbf16>
    %cst_36 = arith.constant dense<0.000000e+00> : vector<8x512xf32>
    %59 = tpu.matmul %57, %58, %cst_36 {dimension_numbers = #tpu.dot_dimension_numbers<[1], [0], [0], [1], [0, 0, 1, 1], [], []>} : vector<8x128xbf16>, vector<128x512xbf16>, vector<8x512xf32> -> vector<8x512xf32>
    %60 = arith.addf %55, %59 : vector<8x512xf32>
    %61 = vector.extract_strided_slice %60 {offsets = [0, 0], sizes = [8, 128], strides = [1, 1]} : vector<8x512xf32> to vector<8x128xf32>
    %62 = arith.negf %61 : vector<8x128xf32>
    %63 = math.exp %62 : vector<8x128xf32>
    %cst_37 = arith.constant 1.000000e+00 : f32
    %64 = vector.broadcast %cst_37 : f32 to vector<8x128xf32>
    %65 = arith.addf %64, %63 : vector<8x128xf32>
    %66 = arith.divf %64, %65 : vector<8x128xf32>
    %67 = vector.extract_strided_slice %60 {offsets = [0, 128], sizes = [8, 128], strides = [1, 1]} : vector<8x512xf32> to vector<8x128xf32>
    %68 = arith.negf %67 : vector<8x128xf32>
    %69 = math.exp %68 : vector<8x128xf32>
    %cst_38 = arith.constant 1.000000e+00 : f32
    %70 = vector.broadcast %cst_38 : f32 to vector<8x128xf32>
    %71 = arith.addf %70, %69 : vector<8x128xf32>
    %72 = arith.divf %70, %71 : vector<8x128xf32>
    %73 = vector.extract_strided_slice %60 {offsets = [0, 256], sizes = [8, 128], strides = [1, 1]} : vector<8x512xf32> to vector<8x128xf32>
    %74 = math.tanh %73 : vector<8x128xf32>
    %75 = vector.extract_strided_slice %60 {offsets = [0, 384], sizes = [8, 128], strides = [1, 1]} : vector<8x512xf32> to vector<8x128xf32>
    %76 = arith.negf %75 : vector<8x128xf32>
    %77 = math.exp %76 : vector<8x128xf32>
    %cst_39 = arith.constant 1.000000e+00 : f32
    %78 = vector.broadcast %cst_39 : f32 to vector<8x128xf32>
    %79 = arith.addf %78, %77 : vector<8x128xf32>
    %80 = arith.divf %78, %79 : vector<8x128xf32>
    %c0_40 = arith.constant 0 : index
    %c0_41 = arith.constant 0 : index
    %81 = vector.load %arg9[%c0_40, %c0_41] : memref<8x128xf32, #tpu.memory_space<vmem>>, vector<8x128xf32>
    %82 = arith.mulf %72, %81 : vector<8x128xf32>
    %83 = arith.mulf %66, %74 : vector<8x128xf32>
    %84 = arith.addf %82, %83 : vector<8x128xf32>
    %85 = math.tanh %84 : vector<8x128xf32>
    %86 = arith.mulf %80, %85 : vector<8x128xf32>
    %c0_42 = arith.constant 0 : index
    %c0_43 = arith.constant 0 : index
    %87 = vector.load %arg9[%c0_42, %c0_43] : memref<8x128xf32, #tpu.memory_space<vmem>>, vector<8x128xf32>
    tpu.vector_store %arg9[%c0_42, %c0_43], %84 {strides = array<i32>} : memref<8x128xf32, #tpu.memory_space<vmem>>, vector<8x128xf32>,
    %c0_44 = arith.constant 0 : index
    %c0_45 = arith.constant 0 : index
    %88 = vector.load %arg8[%c0_44, %c0_45] : memref<8x128xf32, #tpu.memory_space<vmem>>, vector<8x128xf32>
    tpu.vector_store %arg8[%c0_44, %c0_45], %86 {strides = array<i32>} : memref<8x128xf32, #tpu.memory_space<vmem>>, vector<8x128xf32>,
    %89 = arith.index_cast %c1_i32 : i32 to index
    %c0_46 = arith.constant 0 : index
    %c0_47 = arith.constant 0 : index
    %90 = vector.load %arg1[%89, %c0_46, %c0_47] : memref<8x8x128xf32, #tpu.memory_space<vmem>>, vector<1x8x128xf32>
    %91 = vector.shape_cast %90 : vector<1x8x128xf32> to vector<8x128xf32>
    %92 = arith.mulf %86, %91 : vector<8x128xf32>
    %93 = arith.truncf %92 : vector<8x128xf32> to vector<8x128xbf16>
    %94 = arith.index_cast %c1_i32 : i32 to index
    %c0_48 = arith.constant 0 : index
    %c0_49 = arith.constant 0 : index
    %95 = vector.load %arg10[%94, %c0_48, %c0_49] : memref<8x8x128xbf16, #tpu.memory_space<vmem>>, vector<1x8x128xbf16>
    %96 = vector.shape_cast %95 : vector<1x8x128xbf16> to vector<8x128xbf16>
    %97 = vector.shape_cast %93 : vector<8x128xbf16> to vector<1x8x128xbf16>
    tpu.vector_store %arg10[%94, %c0_48, %c0_49], %97 {strides = array<i32>} : memref<8x8x128xbf16, #tpu.memory_space<vmem>>, vector<1x8x128xbf16>,
    %c2_i32 = arith.constant 2 : i32
    %98 = arith.index_cast %c2_i32 : i32 to index
    %c0_50 = arith.constant 0 : index
    %c0_51 = arith.constant 0 : index
    %99 = vector.load %arg0[%98, %c0_50, %c0_51] : memref<8x8x512xf32, #tpu.memory_space<vmem>>, vector<1x8x512xf32>
    %100 = vector.shape_cast %99 : vector<1x8x512xf32> to vector<8x512xf32>
    %c0_52 = arith.constant 0 : index
    %c0_53 = arith.constant 0 : index
    %101 = vector.load %arg8[%c0_52, %c0_53] : memref<8x128xf32, #tpu.memory_space<vmem>>, vector<8x128xf32>
    %102 = arith.truncf %101 : vector<8x128xf32> to vector<8x128xbf16>
    %c0_54 = arith.constant 0 : index
    %c0_55 = arith.constant 0 : index
    %103 = vector.load %arg2[%c0_54, %c0_55] : memref<128x512xbf16, #tpu.memory_space<vmem>>, vector<128x512xbf16>
    %cst_56 = arith.constant dense<0.000000e+00> : vector<8x512xf32>
    %104 = tpu.matmul %102, %103, %cst_56 {dimension_numbers = #tpu.dot_dimension_numbers<[1], [0], [0], [1], [0, 0, 1, 1], [], []>} : vector<8x128xbf16>, vector<128x512xbf16>, vector<8x512xf32> -> vector<8x512xf32>
    %105 = arith.addf %100, %104 : vector<8x512xf32>
    %106 = vector.extract_strided_slice %105 {offsets = [0, 0], sizes = [8, 128], strides = [1, 1]} : vector<8x512xf32> to vector<8x128xf32>
    %107 = arith.negf %106 : vector<8x128xf32>
    %108 = math.exp %107 : vector<8x128xf32>
    %cst_57 = arith.constant 1.000000e+00 : f32
    %109 = vector.broadcast %cst_57 : f32 to vector<8x128xf32>
    %110 = arith.addf %109, %108 : vector<8x128xf32>
    %111 = arith.divf %109, %110 : vector<8x128xf32>
    %112 = vector.extract_strided_slice %105 {offsets = [0, 128], sizes = [8, 128], strides = [1, 1]} : vector<8x512xf32> to vector<8x128xf32>
    %113 = arith.negf %112 : vector<8x128xf32>
    %114 = math.exp %113 : vector<8x128xf32>
    %cst_58 = arith.constant 1.000000e+00 : f32
    %115 = vector.broadcast %cst_58 : f32 to vector<8x128xf32>
    %116 = arith.addf %115, %114 : vector<8x128xf32>
    %117 = arith.divf %115, %116 : vector<8x128xf32>
    %118 = vector.extract_strided_slice %105 {offsets = [0, 256], sizes = [8, 128], strides = [1, 1]} : vector<8x512xf32> to vector<8x128xf32>
    %119 = math.tanh %118 : vector<8x128xf32>
    %120 = vector.extract_strided_slice %105 {offsets = [0, 384], sizes = [8, 128], strides = [1, 1]} : vector<8x512xf32> to vector<8x128xf32>
    %121 = arith.negf %120 : vector<8x128xf32>
    %122 = math.exp %121 : vector<8x128xf32>
    %cst_59 = arith.constant 1.000000e+00 : f32
    %123 = vector.broadcast %cst_59 : f32 to vector<8x128xf32>
    %124 = arith.addf %123, %122 : vector<8x128xf32>
    %125 = arith.divf %123, %124 : vector<8x128xf32>
    %c0_60 = arith.constant 0 : index
    %c0_61 = arith.constant 0 : index
    %126 = vector.load %arg9[%c0_60, %c0_61] : memref<8x128xf32, #tpu.memory_space<vmem>>, vector<8x128xf32>
    %127 = arith.mulf %117, %126 : vector<8x128xf32>
    %128 = arith.mulf %111, %119 : vector<8x128xf32>
    %129 = arith.addf %127, %128 : vector<8x128xf32>
    %130 = math.tanh %129 : vector<8x128xf32>
    %131 = arith.mulf %125, %130 : vector<8x128xf32>
    %c0_62 = arith.constant 0 : index
    %c0_63 = arith.constant 0 : index
    %132 = vector.load %arg9[%c0_62, %c0_63] : memref<8x128xf32, #tpu.memory_space<vmem>>, vector<8x128xf32>
    tpu.vector_store %arg9[%c0_62, %c0_63], %129 {strides = array<i32>} : memref<8x128xf32, #tpu.memory_space<vmem>>, vector<8x128xf32>,
    %c0_64 = arith.constant 0 : index
    %c0_65 = arith.constant 0 : index
    %133 = vector.load %arg8[%c0_64, %c0_65] : memref<8x128xf32, #tpu.memory_space<vmem>>, vector<8x128xf32>
    tpu.vector_store %arg8[%c0_64, %c0_65], %131 {strides = array<i32>} : memref<8x128xf32, #tpu.memory_space<vmem>>, vector<8x128xf32>,
    %134 = arith.index_cast %c2_i32 : i32 to index
    %c0_66 = arith.constant 0 : index
    %c0_67 = arith.constant 0 : index
    %135 = vector.load %arg1[%134, %c0_66, %c0_67] : memref<8x8x128xf32, #tpu.memory_space<vmem>>, vector<1x8x128xf32>
    %136 = vector.shape_cast %135 : vector<1x8x128xf32> to vector<8x128xf32>
    %137 = arith.mulf %131, %136 : vector<8x128xf32>
    %138 = arith.truncf %137 : vector<8x128xf32> to vector<8x128xbf16>
    %139 = arith.index_cast %c2_i32 : i32 to index
    %c0_68 = arith.constant 0 : index
    %c0_69 = arith.constant 0 : index
    %140 = vector.load %arg10[%139, %c0_68, %c0_69] : memref<8x8x128xbf16, #tpu.memory_space<vmem>>, vector<1x8x128xbf16>
    %141 = vector.shape_cast %140 : vector<1x8x128xbf16> to vector<8x128xbf16>
    %142 = vector.shape_cast %138 : vector<8x128xbf16> to vector<1x8x128xbf16>
    tpu.vector_store %arg10[%139, %c0_68, %c0_69], %142 {strides = array<i32>} : memref<8x8x128xbf16, #tpu.memory_space<vmem>>, vector<1x8x128xbf16>,
    %c3_i32 = arith.constant 3 : i32
    %143 = arith.index_cast %c3_i32 : i32 to index
    %c0_70 = arith.constant 0 : index
    %c0_71 = arith.constant 0 : index
    %144 = vector.load %arg0[%143, %c0_70, %c0_71] : memref<8x8x512xf32, #tpu.memory_space<vmem>>, vector<1x8x512xf32>
    %145 = vector.shape_cast %144 : vector<1x8x512xf32> to vector<8x512xf32>
    %c0_72 = arith.constant 0 : index
    %c0_73 = arith.constant 0 : index
    %146 = vector.load %arg8[%c0_72, %c0_73] : memref<8x128xf32, #tpu.memory_space<vmem>>, vector<8x128xf32>
    %147 = arith.truncf %146 : vector<8x128xf32> to vector<8x128xbf16>
    %c0_74 = arith.constant 0 : index
    %c0_75 = arith.constant 0 : index
    %148 = vector.load %arg2[%c0_74, %c0_75] : memref<128x512xbf16, #tpu.memory_space<vmem>>, vector<128x512xbf16>
    %cst_76 = arith.constant dense<0.000000e+00> : vector<8x512xf32>
    %149 = tpu.matmul %147, %148, %cst_76 {dimension_numbers = #tpu.dot_dimension_numbers<[1], [0], [0], [1], [0, 0, 1, 1], [], []>} : vector<8x128xbf16>, vector<128x512xbf16>, vector<8x512xf32> -> vector<8x512xf32>
    %150 = arith.addf %145, %149 : vector<8x512xf32>
    %151 = vector.extract_strided_slice %150 {offsets = [0, 0], sizes = [8, 128], strides = [1, 1]} : vector<8x512xf32> to vector<8x128xf32>
    %152 = arith.negf %151 : vector<8x128xf32>
    %153 = math.exp %152 : vector<8x128xf32>
    %cst_77 = arith.constant 1.000000e+00 : f32
    %154 = vector.broadcast %cst_77 : f32 to vector<8x128xf32>
    %155 = arith.addf %154, %153 : vector<8x128xf32>
    %156 = arith.divf %154, %155 : vector<8x128xf32>
    %157 = vector.extract_strided_slice %150 {offsets = [0, 128], sizes = [8, 128], strides = [1, 1]} : vector<8x512xf32> to vector<8x128xf32>
    %158 = arith.negf %157 : vector<8x128xf32>
    %159 = math.exp %158 : vector<8x128xf32>
    %cst_78 = arith.constant 1.000000e+00 : f32
    %160 = vector.broadcast %cst_78 : f32 to vector<8x128xf32>
    %161 = arith.addf %160, %159 : vector<8x128xf32>
    %162 = arith.divf %160, %161 : vector<8x128xf32>
    %163 = vector.extract_strided_slice %150 {offsets = [0, 256], sizes = [8, 128], strides = [1, 1]} : vector<8x512xf32> to vector<8x128xf32>
    %164 = math.tanh %163 : vector<8x128xf32>
    %165 = vector.extract_strided_slice %150 {offsets = [0, 384], sizes = [8, 128], strides = [1, 1]} : vector<8x512xf32> to vector<8x128xf32>
    %166 = arith.negf %165 : vector<8x128xf32>
    %167 = math.exp %166 : vector<8x128xf32>
    %cst_79 = arith.constant 1.000000e+00 : f32
    %168 = vector.broadcast %cst_79 : f32 to vector<8x128xf32>
    %169 = arith.addf %168, %167 : vector<8x128xf32>
    %170 = arith.divf %168, %169 : vector<8x128xf32>
    %c0_80 = arith.constant 0 : index
    %c0_81 = arith.constant 0 : index
    %171 = vector.load %arg9[%c0_80, %c0_81] : memref<8x128xf32, #tpu.memory_space<vmem>>, vector<8x128xf32>
    %172 = arith.mulf %162, %171 : vector<8x128xf32>
    %173 = arith.mulf %156, %164 : vector<8x128xf32>
    %174 = arith.addf %172, %173 : vector<8x128xf32>
    %175 = math.tanh %174 : vector<8x128xf32>
    %176 = arith.mulf %170, %175 : vector<8x128xf32>
    %c0_82 = arith.constant 0 : index
    %c0_83 = arith.constant 0 : index
    %177 = vector.load %arg9[%c0_82, %c0_83] : memref<8x128xf32, #tpu.memory_space<vmem>>, vector<8x128xf32>
    tpu.vector_store %arg9[%c0_82, %c0_83], %174 {strides = array<i32>} : memref<8x128xf32, #tpu.memory_space<vmem>>, vector<8x128xf32>,
    %c0_84 = arith.constant 0 : index
    %c0_85 = arith.constant 0 : index
    %178 = vector.load %arg8[%c0_84, %c0_85] : memref<8x128xf32, #tpu.memory_space<vmem>>, vector<8x128xf32>
    tpu.vector_store %arg8[%c0_84, %c0_85], %176 {strides = array<i32>} : memref<8x128xf32, #tpu.memory_space<vmem>>, vector<8x128xf32>,
    %179 = arith.index_cast %c3_i32 : i32 to index
    %c0_86 = arith.constant 0 : index
    %c0_87 = arith.constant 0 : index
    %180 = vector.load %arg1[%179, %c0_86, %c0_87] : memref<8x8x128xf32, #tpu.memory_space<vmem>>, vector<1x8x128xf32>
    %181 = vector.shape_cast %180 : vector<1x8x128xf32> to vector<8x128xf32>
    %182 = arith.mulf %176, %181 : vector<8x128xf32>
    %183 = arith.truncf %182 : vector<8x128xf32> to vector<8x128xbf16>
    %184 = arith.index_cast %c3_i32 : i32 to index
    %c0_88 = arith.constant 0 : index
    %c0_89 = arith.constant 0 : index
    %185 = vector.load %arg10[%184, %c0_88, %c0_89] : memref<8x8x128xbf16, #tpu.memory_space<vmem>>, vector<1x8x128xbf16>
    %186 = vector.shape_cast %185 : vector<1x8x128xbf16> to vector<8x128xbf16>
    %187 = vector.shape_cast %183 : vector<8x128xbf16> to vector<1x8x128xbf16>
    tpu.vector_store %arg10[%184, %c0_88, %c0_89], %187 {strides = array<i32>} : memref<8x8x128xbf16, #tpu.memory_space<vmem>>, vector<1x8x128xbf16>,
    %c4_i32 = arith.constant 4 : i32
    %188 = arith.index_cast %c4_i32 : i32 to index
    %c0_90 = arith.constant 0 : index
    %c0_91 = arith.constant 0 : index
    %189 = vector.load %arg0[%188, %c0_90, %c0_91] : memref<8x8x512xf32, #tpu.memory_space<vmem>>, vector<1x8x512xf32>
    %190 = vector.shape_cast %189 : vector<1x8x512xf32> to vector<8x512xf32>
    %c0_92 = arith.constant 0 : index
    %c0_93 = arith.constant 0 : index
    %191 = vector.load %arg8[%c0_92, %c0_93] : memref<8x128xf32, #tpu.memory_space<vmem>>, vector<8x128xf32>
    %192 = arith.truncf %191 : vector<8x128xf32> to vector<8x128xbf16>
    %c0_94 = arith.constant 0 : index
    %c0_95 = arith.constant 0 : index
    %193 = vector.load %arg2[%c0_94, %c0_95] : memref<128x512xbf16, #tpu.memory_space<vmem>>, vector<128x512xbf16>
    %cst_96 = arith.constant dense<0.000000e+00> : vector<8x512xf32>
    %194 = tpu.matmul %192, %193, %cst_96 {dimension_numbers = #tpu.dot_dimension_numbers<[1], [0], [0], [1], [0, 0, 1, 1], [], []>} : vector<8x128xbf16>, vector<128x512xbf16>, vector<8x512xf32> -> vector<8x512xf32>
    %195 = arith.addf %190, %194 : vector<8x512xf32>
    %196 = vector.extract_strided_slice %195 {offsets = [0, 0], sizes = [8, 128], strides = [1, 1]} : vector<8x512xf32> to vector<8x128xf32>
    %197 = arith.negf %196 : vector<8x128xf32>
    %198 = math.exp %197 : vector<8x128xf32>
    %cst_97 = arith.constant 1.000000e+00 : f32
    %199 = vector.broadcast %cst_97 : f32 to vector<8x128xf32>
    %200 = arith.addf %199, %198 : vector<8x128xf32>
    %201 = arith.divf %199, %200 : vector<8x128xf32>
    %202 = vector.extract_strided_slice %195 {offsets = [0, 128], sizes = [8, 128], strides = [1, 1]} : vector<8x512xf32> to vector<8x128xf32>
    %203 = arith.negf %202 : vector<8x128xf32>
    %204 = math.exp %203 : vector<8x128xf32>
    %cst_98 = arith.constant 1.000000e+00 : f32
    %205 = vector.broadcast %cst_98 : f32 to vector<8x128xf32>
    %206 = arith.addf %205, %204 : vector<8x128xf32>
    %207 = arith.divf %205, %206 : vector<8x128xf32>
    %208 = vector.extract_strided_slice %195 {offsets = [0, 256], sizes = [8, 128], strides = [1, 1]} : vector<8x512xf32> to vector<8x128xf32>
    %209 = math.tanh %208 : vector<8x128xf32>
    %210 = vector.extract_strided_slice %195 {offsets = [0, 384], sizes = [8, 128], strides = [1, 1]} : vector<8x512xf32> to vector<8x128xf32>
    %211 = arith.negf %210 : vector<8x128xf32>
    %212 = math.exp %211 : vector<8x128xf32>
    %cst_99 = arith.constant 1.000000e+00 : f32
    %213 = vector.broadcast %cst_99 : f32 to vector<8x128xf32>
    %214 = arith.addf %213, %212 : vector<8x128xf32>
    %215 = arith.divf %213, %214 : vector<8x128xf32>
    %c0_100 = arith.constant 0 : index
    %c0_101 = arith.constant 0 : index
    %216 = vector.load %arg9[%c0_100, %c0_101] : memref<8x128xf32, #tpu.memory_space<vmem>>, vector<8x128xf32>
    %217 = arith.mulf %207, %216 : vector<8x128xf32>
    %218 = arith.mulf %201, %209 : vector<8x128xf32>
    %219 = arith.addf %217, %218 : vector<8x128xf32>
    %220 = math.tanh %219 : vector<8x128xf32>
    %221 = arith.mulf %215, %220 : vector<8x128xf32>
    %c0_102 = arith.constant 0 : index
    %c0_103 = arith.constant 0 : index
    %222 = vector.load %arg9[%c0_102, %c0_103] : memref<8x128xf32, #tpu.memory_space<vmem>>, vector<8x128xf32>
    tpu.vector_store %arg9[%c0_102, %c0_103], %219 {strides = array<i32>} : memref<8x128xf32, #tpu.memory_space<vmem>>, vector<8x128xf32>,
    %c0_104 = arith.constant 0 : index
    %c0_105 = arith.constant 0 : index
    %223 = vector.load %arg8[%c0_104, %c0_105] : memref<8x128xf32, #tpu.memory_space<vmem>>, vector<8x128xf32>
    tpu.vector_store %arg8[%c0_104, %c0_105], %221 {strides = array<i32>} : memref<8x128xf32, #tpu.memory_space<vmem>>, vector<8x128xf32>,
    %224 = arith.index_cast %c4_i32 : i32 to index
    %c0_106 = arith.constant 0 : index
    %c0_107 = arith.constant 0 : index
    %225 = vector.load %arg1[%224, %c0_106, %c0_107] : memref<8x8x128xf32, #tpu.memory_space<vmem>>, vector<1x8x128xf32>
    %226 = vector.shape_cast %225 : vector<1x8x128xf32> to vector<8x128xf32>
    %227 = arith.mulf %221, %226 : vector<8x128xf32>
    %228 = arith.truncf %227 : vector<8x128xf32> to vector<8x128xbf16>
    %229 = arith.index_cast %c4_i32 : i32 to index
    %c0_108 = arith.constant 0 : index
    %c0_109 = arith.constant 0 : index
    %230 = vector.load %arg10[%229, %c0_108, %c0_109] : memref<8x8x128xbf16, #tpu.memory_space<vmem>>, vector<1x8x128xbf16>
    %231 = vector.shape_cast %230 : vector<1x8x128xbf16> to vector<8x128xbf16>
    %232 = vector.shape_cast %228 : vector<8x128xbf16> to vector<1x8x128xbf16>
    tpu.vector_store %arg10[%229, %c0_108, %c0_109], %232 {strides = array<i32>} : memref<8x8x128xbf16, #tpu.memory_space<vmem>>, vector<1x8x128xbf16>,
    %c5_i32 = arith.constant 5 : i32
    %233 = arith.index_cast %c5_i32 : i32 to index
    %c0_110 = arith.constant 0 : index
    %c0_111 = arith.constant 0 : index
    %234 = vector.load %arg0[%233, %c0_110, %c0_111] : memref<8x8x512xf32, #tpu.memory_space<vmem>>, vector<1x8x512xf32>
    %235 = vector.shape_cast %234 : vector<1x8x512xf32> to vector<8x512xf32>
    %c0_112 = arith.constant 0 : index
    %c0_113 = arith.constant 0 : index
    %236 = vector.load %arg8[%c0_112, %c0_113] : memref<8x128xf32, #tpu.memory_space<vmem>>, vector<8x128xf32>
    %237 = arith.truncf %236 : vector<8x128xf32> to vector<8x128xbf16>
    %c0_114 = arith.constant 0 : index
    %c0_115 = arith.constant 0 : index
    %238 = vector.load %arg2[%c0_114, %c0_115] : memref<128x512xbf16, #tpu.memory_space<vmem>>, vector<128x512xbf16>
    %cst_116 = arith.constant dense<0.000000e+00> : vector<8x512xf32>
    %239 = tpu.matmul %237, %238, %cst_116 {dimension_numbers = #tpu.dot_dimension_numbers<[1], [0], [0], [1], [0, 0, 1, 1], [], []>} : vector<8x128xbf16>, vector<128x512xbf16>, vector<8x512xf32> -> vector<8x512xf32>
    %240 = arith.addf %235, %239 : vector<8x512xf32>
    %241 = vector.extract_strided_slice %240 {offsets = [0, 0], sizes = [8, 128], strides = [1, 1]} : vector<8x512xf32> to vector<8x128xf32>
    %242 = arith.negf %241 : vector<8x128xf32>
    %243 = math.exp %242 : vector<8x128xf32>
    %cst_117 = arith.constant 1.000000e+00 : f32
    %244 = vector.broadcast %cst_117 : f32 to vector<8x128xf32>
    %245 = arith.addf %244, %243 : vector<8x128xf32>
    %246 = arith.divf %244, %245 : vector<8x128xf32>
    %247 = vector.extract_strided_slice %240 {offsets = [0, 128], sizes = [8, 128], strides = [1, 1]} : vector<8x512xf32> to vector<8x128xf32>
    %248 = arith.negf %247 : vector<8x128xf32>
    %249 = math.exp %248 : vector<8x128xf32>
    %cst_118 = arith.constant 1.000000e+00 : f32
    %250 = vector.broadcast %cst_118 : f32 to vector<8x128xf32>
    %251 = arith.addf %250, %249 : vector<8x128xf32>
    %252 = arith.divf %250, %251 : vector<8x128xf32>
    %253 = vector.extract_strided_slice %240 {offsets = [0, 256], sizes = [8, 128], strides = [1, 1]} : vector<8x512xf32> to vector<8x128xf32>
    %254 = math.tanh %253 : vector<8x128xf32>
    %255 = vector.extract_strided_slice %240 {offsets = [0, 384], sizes = [8, 128], strides = [1, 1]} : vector<8x512xf32> to vector<8x128xf32>
    %256 = arith.negf %255 : vector<8x128xf32>
    %257 = math.exp %256 : vector<8x128xf32>
    %cst_119 = arith.constant 1.000000e+00 : f32
    %258 = vector.broadcast %cst_119 : f32 to vector<8x128xf32>
    %259 = arith.addf %258, %257 : vector<8x128xf32>
    %260 = arith.divf %258, %259 : vector<8x128xf32>
    %c0_120 = arith.constant 0 : index
    %c0_121 = arith.constant 0 : index
    %261 = vector.load %arg9[%c0_120, %c0_121] : memref<8x128xf32, #tpu.memory_space<vmem>>, vector<8x128xf32>
    %262 = arith.mulf %252, %261 : vector<8x128xf32>
    %263 = arith.mulf %246, %254 : vector<8x128xf32>
    %264 = arith.addf %262, %263 : vector<8x128xf32>
    %265 = math.tanh %264 : vector<8x128xf32>
    %266 = arith.mulf %260, %265 : vector<8x128xf32>
    %c0_122 = arith.constant 0 : index
    %c0_123 = arith.constant 0 : index
    %267 = vector.load %arg9[%c0_122, %c0_123] : memref<8x128xf32, #tpu.memory_space<vmem>>, vector<8x128xf32>
    tpu.vector_store %arg9[%c0_122, %c0_123], %264 {strides = array<i32>} : memref<8x128xf32, #tpu.memory_space<vmem>>, vector<8x128xf32>,
    %c0_124 = arith.constant 0 : index
    %c0_125 = arith.constant 0 : index
    %268 = vector.load %arg8[%c0_124, %c0_125] : memref<8x128xf32, #tpu.memory_space<vmem>>, vector<8x128xf32>
    tpu.vector_store %arg8[%c0_124, %c0_125], %266 {strides = array<i32>} : memref<8x128xf32, #tpu.memory_space<vmem>>, vector<8x128xf32>,
    %269 = arith.index_cast %c5_i32 : i32 to index
    %c0_126 = arith.constant 0 : index
    %c0_127 = arith.constant 0 : index
    %270 = vector.load %arg1[%269, %c0_126, %c0_127] : memref<8x8x128xf32, #tpu.memory_space<vmem>>, vector<1x8x128xf32>
    %271 = vector.shape_cast %270 : vector<1x8x128xf32> to vector<8x128xf32>
    %272 = arith.mulf %266, %271 : vector<8x128xf32>
    %273 = arith.truncf %272 : vector<8x128xf32> to vector<8x128xbf16>
    %274 = arith.index_cast %c5_i32 : i32 to index
    %c0_128 = arith.constant 0 : index
    %c0_129 = arith.constant 0 : index
    %275 = vector.load %arg10[%274, %c0_128, %c0_129] : memref<8x8x128xbf16, #tpu.memory_space<vmem>>, vector<1x8x128xbf16>
    %276 = vector.shape_cast %275 : vector<1x8x128xbf16> to vector<8x128xbf16>
    %277 = vector.shape_cast %273 : vector<8x128xbf16> to vector<1x8x128xbf16>
    tpu.vector_store %arg10[%274, %c0_128, %c0_129], %277 {strides = array<i32>} : memref<8x8x128xbf16, #tpu.memory_space<vmem>>, vector<1x8x128xbf16>,
    %c6_i32 = arith.constant 6 : i32
    %278 = arith.index_cast %c6_i32 : i32 to index
    %c0_130 = arith.constant 0 : index
    %c0_131 = arith.constant 0 : index
    %279 = vector.load %arg0[%278, %c0_130, %c0_131] : memref<8x8x512xf32, #tpu.memory_space<vmem>>, vector<1x8x512xf32>
    %280 = vector.shape_cast %279 : vector<1x8x512xf32> to vector<8x512xf32>
    %c0_132 = arith.constant 0 : index
    %c0_133 = arith.constant 0 : index
    %281 = vector.load %arg8[%c0_132, %c0_133] : memref<8x128xf32, #tpu.memory_space<vmem>>, vector<8x128xf32>
    %282 = arith.truncf %281 : vector<8x128xf32> to vector<8x128xbf16>
    %c0_134 = arith.constant 0 : index
    %c0_135 = arith.constant 0 : index
    %283 = vector.load %arg2[%c0_134, %c0_135] : memref<128x512xbf16, #tpu.memory_space<vmem>>, vector<128x512xbf16>
    %cst_136 = arith.constant dense<0.000000e+00> : vector<8x512xf32>
    %284 = tpu.matmul %282, %283, %cst_136 {dimension_numbers = #tpu.dot_dimension_numbers<[1], [0], [0], [1], [0, 0, 1, 1], [], []>} : vector<8x128xbf16>, vector<128x512xbf16>, vector<8x512xf32> -> vector<8x512xf32>
    %285 = arith.addf %280, %284 : vector<8x512xf32>
    %286 = vector.extract_strided_slice %285 {offsets = [0, 0], sizes = [8, 128], strides = [1, 1]} : vector<8x512xf32> to vector<8x128xf32>
    %287 = arith.negf %286 : vector<8x128xf32>
    %288 = math.exp %287 : vector<8x128xf32>
    %cst_137 = arith.constant 1.000000e+00 : f32
    %289 = vector.broadcast %cst_137 : f32 to vector<8x128xf32>
    %290 = arith.addf %289, %288 : vector<8x128xf32>
    %291 = arith.divf %289, %290 : vector<8x128xf32>
    %292 = vector.extract_strided_slice %285 {offsets = [0, 128], sizes = [8, 128], strides = [1, 1]} : vector<8x512xf32> to vector<8x128xf32>
    %293 = arith.negf %292 : vector<8x128xf32>
    %294 = math.exp %293 : vector<8x128xf32>
    %cst_138 = arith.constant 1.000000e+00 : f32
    %295 = vector.broadcast %cst_138 : f32 to vector<8x128xf32>
    %296 = arith.addf %295, %294 : vector<8x128xf32>
    %297 = arith.divf %295, %296 : vector<8x128xf32>
    %298 = vector.extract_strided_slice %285 {offsets = [0, 256], sizes = [8, 128], strides = [1, 1]} : vector<8x512xf32> to vector<8x128xf32>
    %299 = math.tanh %298 : vector<8x128xf32>
    %300 = vector.extract_strided_slice %285 {offsets = [0, 384], sizes = [8, 128], strides = [1, 1]} : vector<8x512xf32> to vector<8x128xf32>
    %301 = arith.negf %300 : vector<8x128xf32>
    %302 = math.exp %301 : vector<8x128xf32>
    %cst_139 = arith.constant 1.000000e+00 : f32
    %303 = vector.broadcast %cst_139 : f32 to vector<8x128xf32>
    %304 = arith.addf %303, %302 : vector<8x128xf32>
    %305 = arith.divf %303, %304 : vector<8x128xf32>
    %c0_140 = arith.constant 0 : index
    %c0_141 = arith.constant 0 : index
    %306 = vector.load %arg9[%c0_140, %c0_141] : memref<8x128xf32, #tpu.memory_space<vmem>>, vector<8x128xf32>
    %307 = arith.mulf %297, %306 : vector<8x128xf32>
    %308 = arith.mulf %291, %299 : vector<8x128xf32>
    %309 = arith.addf %307, %308 : vector<8x128xf32>
    %310 = math.tanh %309 : vector<8x128xf32>
    %311 = arith.mulf %305, %310 : vector<8x128xf32>
    %c0_142 = arith.constant 0 : index
    %c0_143 = arith.constant 0 : index
    %312 = vector.load %arg9[%c0_142, %c0_143] : memref<8x128xf32, #tpu.memory_space<vmem>>, vector<8x128xf32>
    tpu.vector_store %arg9[%c0_142, %c0_143], %309 {strides = array<i32>} : memref<8x128xf32, #tpu.memory_space<vmem>>, vector<8x128xf32>,
    %c0_144 = arith.constant 0 : index
    %c0_145 = arith.constant 0 : index
    %313 = vector.load %arg8[%c0_144, %c0_145] : memref<8x128xf32, #tpu.memory_space<vmem>>, vector<8x128xf32>
    tpu.vector_store %arg8[%c0_144, %c0_145], %311 {strides = array<i32>} : memref<8x128xf32, #tpu.memory_space<vmem>>, vector<8x128xf32>,
    %314 = arith.index_cast %c6_i32 : i32 to index
    %c0_146 = arith.constant 0 : index
    %c0_147 = arith.constant 0 : index
    %315 = vector.load %arg1[%314, %c0_146, %c0_147] : memref<8x8x128xf32, #tpu.memory_space<vmem>>, vector<1x8x128xf32>
    %316 = vector.shape_cast %315 : vector<1x8x128xf32> to vector<8x128xf32>
    %317 = arith.mulf %311, %316 : vector<8x128xf32>
    %318 = arith.truncf %317 : vector<8x128xf32> to vector<8x128xbf16>
    %319 = arith.index_cast %c6_i32 : i32 to index
    %c0_148 = arith.constant 0 : index
    %c0_149 = arith.constant 0 : index
    %320 = vector.load %arg10[%319, %c0_148, %c0_149] : memref<8x8x128xbf16, #tpu.memory_space<vmem>>, vector<1x8x128xbf16>
    %321 = vector.shape_cast %320 : vector<1x8x128xbf16> to vector<8x128xbf16>
    %322 = vector.shape_cast %318 : vector<8x128xbf16> to vector<1x8x128xbf16>
    tpu.vector_store %arg10[%319, %c0_148, %c0_149], %322 {strides = array<i32>} : memref<8x8x128xbf16, #tpu.memory_space<vmem>>, vector<1x8x128xbf16>,
    %c7_i32 = arith.constant 7 : i32
    %323 = arith.index_cast %c7_i32 : i32 to index
    %c0_150 = arith.constant 0 : index
    %c0_151 = arith.constant 0 : index
    %324 = vector.load %arg0[%323, %c0_150, %c0_151] : memref<8x8x512xf32, #tpu.memory_space<vmem>>, vector<1x8x512xf32>
    %325 = vector.shape_cast %324 : vector<1x8x512xf32> to vector<8x512xf32>
    %c0_152 = arith.constant 0 : index
    %c0_153 = arith.constant 0 : index
    %326 = vector.load %arg8[%c0_152, %c0_153] : memref<8x128xf32, #tpu.memory_space<vmem>>, vector<8x128xf32>
    %327 = arith.truncf %326 : vector<8x128xf32> to vector<8x128xbf16>
    %c0_154 = arith.constant 0 : index
    %c0_155 = arith.constant 0 : index
    %328 = vector.load %arg2[%c0_154, %c0_155] : memref<128x512xbf16, #tpu.memory_space<vmem>>, vector<128x512xbf16>
    %cst_156 = arith.constant dense<0.000000e+00> : vector<8x512xf32>
    %329 = tpu.matmul %327, %328, %cst_156 {dimension_numbers = #tpu.dot_dimension_numbers<[1], [0], [0], [1], [0, 0, 1, 1], [], []>} : vector<8x128xbf16>, vector<128x512xbf16>, vector<8x512xf32> -> vector<8x512xf32>
    %330 = arith.addf %325, %329 : vector<8x512xf32>
    %331 = vector.extract_strided_slice %330 {offsets = [0, 0], sizes = [8, 128], strides = [1, 1]} : vector<8x512xf32> to vector<8x128xf32>
    %332 = arith.negf %331 : vector<8x128xf32>
    %333 = math.exp %332 : vector<8x128xf32>
    %cst_157 = arith.constant 1.000000e+00 : f32
    %334 = vector.broadcast %cst_157 : f32 to vector<8x128xf32>
    %335 = arith.addf %334, %333 : vector<8x128xf32>
    %336 = arith.divf %334, %335 : vector<8x128xf32>
    %337 = vector.extract_strided_slice %330 {offsets = [0, 128], sizes = [8, 128], strides = [1, 1]} : vector<8x512xf32> to vector<8x128xf32>
    %338 = arith.negf %337 : vector<8x128xf32>
    %339 = math.exp %338 : vector<8x128xf32>
    %cst_158 = arith.constant 1.000000e+00 : f32
    %340 = vector.broadcast %cst_158 : f32 to vector<8x128xf32>
    %341 = arith.addf %340, %339 : vector<8x128xf32>
    %342 = arith.divf %340, %341 : vector<8x128xf32>
    %343 = vector.extract_strided_slice %330 {offsets = [0, 256], sizes = [8, 128], strides = [1, 1]} : vector<8x512xf32> to vector<8x128xf32>
    %344 = math.tanh %343 : vector<8x128xf32>
    %345 = vector.extract_strided_slice %330 {offsets = [0, 384], sizes = [8, 128], strides = [1, 1]} : vector<8x512xf32> to vector<8x128xf32>
    %346 = arith.negf %345 : vector<8x128xf32>
    %347 = math.exp %346 : vector<8x128xf32>
    %cst_159 = arith.constant 1.000000e+00 : f32
    %348 = vector.broadcast %cst_159 : f32 to vector<8x128xf32>
    %349 = arith.addf %348, %347 : vector<8x128xf32>
    %350 = arith.divf %348, %349 : vector<8x128xf32>
    %c0_160 = arith.constant 0 : index
    %c0_161 = arith.constant 0 : index
    %351 = vector.load %arg9[%c0_160, %c0_161] : memref<8x128xf32, #tpu.memory_space<vmem>>, vector<8x128xf32>
    %352 = arith.mulf %342, %351 : vector<8x128xf32>
    %353 = arith.mulf %336, %344 : vector<8x128xf32>
    %354 = arith.addf %352, %353 : vector<8x128xf32>
    %355 = math.tanh %354 : vector<8x128xf32>
    %356 = arith.mulf %350, %355 : vector<8x128xf32>
    %c0_162 = arith.constant 0 : index
    %c0_163 = arith.constant 0 : index
    %357 = vector.load %arg9[%c0_162, %c0_163] : memref<8x128xf32, #tpu.memory_space<vmem>>, vector<8x128xf32>
    tpu.vector_store %arg9[%c0_162, %c0_163], %354 {strides = array<i32>} : memref<8x128xf32, #tpu.memory_space<vmem>>, vector<8x128xf32>,
    %c0_164 = arith.constant 0 : index
    %c0_165 = arith.constant 0 : index
    %358 = vector.load %arg8[%c0_164, %c0_165] : memref<8x128xf32, #tpu.memory_space<vmem>>, vector<8x128xf32>
    tpu.vector_store %arg8[%c0_164, %c0_165], %356 {strides = array<i32>} : memref<8x128xf32, #tpu.memory_space<vmem>>, vector<8x128xf32>,
    %359 = arith.index_cast %c7_i32 : i32 to index
    %c0_166 = arith.constant 0 : index
    %c0_167 = arith.constant 0 : index
    %360 = vector.load %arg1[%359, %c0_166, %c0_167] : memref<8x8x128xf32, #tpu.memory_space<vmem>>, vector<1x8x128xf32>
    %361 = vector.shape_cast %360 : vector<1x8x128xf32> to vector<8x128xf32>
    %362 = arith.mulf %356, %361 : vector<8x128xf32>
    %363 = arith.truncf %362 : vector<8x128xf32> to vector<8x128xbf16>
    %364 = arith.index_cast %c7_i32 : i32 to index
    %c0_168 = arith.constant 0 : index
    %c0_169 = arith.constant 0 : index
    %365 = vector.load %arg10[%364, %c0_168, %c0_169] : memref<8x8x128xbf16, #tpu.memory_space<vmem>>, vector<1x8x128xbf16>
    %366 = vector.shape_cast %365 : vector<1x8x128xbf16> to vector<8x128xbf16>
    %367 = vector.shape_cast %363 : vector<8x128xbf16> to vector<1x8x128xbf16>
    tpu.vector_store %arg10[%364, %c0_168, %c0_169], %367 {strides = array<i32>} : memref<8x8x128xbf16, #tpu.memory_space<vmem>>, vector<1x8x128xbf16>,
    %c8_i32 = arith.constant 8 : i32
    %c0_170 = arith.constant 0 : index
    %c0_171 = arith.constant 0 : index
    %c0_172 = arith.constant 0 : index
    %368 = vector.load %arg10[%c0_170, %c0_171, %c0_172] : memref<8x8x128xbf16, #tpu.memory_space<vmem>>, vector<8x8x128xbf16>
    %369 = vector.shape_cast %368 : vector<8x8x128xbf16> to vector<64x128xbf16>
    %c0_173 = arith.constant 0 : index
    %c0_174 = arith.constant 0 : index
    %370 = vector.load %arg3[%c0_173, %c0_174] : memref<128x128xbf16, #tpu.memory_space<vmem>>, vector<128x128xbf16>
    %cst_175 = arith.constant dense<0.000000e+00> : vector<64x128xf32>
    %371 = tpu.matmul %369, %370, %cst_175 {dimension_numbers = #tpu.dot_dimension_numbers<[1], [0], [0], [1], [0, 0, 1, 1], [], []>} : vector<64x128xbf16>, vector<128x128xbf16>, vector<64x128xf32> -> vector<64x128xf32>
    %c0_176 = arith.constant 0 : index
    %c0_177 = arith.constant 0 : index
    %372 = vector.load %arg4[%c0_176, %c0_177] : memref<1x128xf32, #tpu.memory_space<vmem>>, vector<1x128xf32>
    %373 = vector.broadcast %372 : vector<1x128xf32> to vector<64x128xf32>
    %374 = arith.addf %371, %373 : vector<64x128xf32>
    %375 = vector.shape_cast %374 : vector<64x128xf32> to vector<8x8x128xf32>
    %c0_178 = arith.constant 0 : index
    %c0_179 = arith.constant 0 : index
    %c0_180 = arith.constant 0 : index
    %376 = vector.load %arg11[%c0_178, %c0_179, %c0_180] : memref<8x8x128xf32, #tpu.memory_space<vmem>>, vector<8x8x128xf32>
    tpu.vector_store %arg11[%c0_178, %c0_179, %c0_180], %375 {strides = array<i32>} : memref<8x8x128xf32, #tpu.memory_space<vmem>>, vector<8x8x128xf32>,
    %c0_i32_181 = arith.constant 0 : i32
    %377 = arith.index_cast %c0_i32_181 : i32 to index
    %c0_182 = arith.constant 0 : index
    %c0_183 = arith.constant 0 : index
    %378 = vector.load %arg11[%377, %c0_182, %c0_183] : memref<8x8x128xf32, #tpu.memory_space<vmem>>, vector<1x8x128xf32>
    %379 = vector.shape_cast %378 : vector<1x8x128xf32> to vector<8x128xf32>
    %c0_184 = arith.constant 0 : index
    %c0_185 = arith.constant 0 : index
    %380 = vector.load %arg12[%c0_184, %c0_185] : memref<8x32xf32, #tpu.memory_space<vmem>>, vector<8x32xf32>
    %381 = arith.truncf %380 : vector<8x32xf32> to vector<8x32xbf16>
    %c0_186 = arith.constant 0 : index
    %c0_187 = arith.constant 0 : index
    %382 = vector.load %arg5[%c0_186, %c0_187] : memref<32x128xbf16, #tpu.memory_space<vmem>>, vector<32x128xbf16>
    %cst_188 = arith.constant dense<0.000000e+00> : vector<8x128xf32>
    %383 = tpu.matmul %381, %382, %cst_188 {dimension_numbers = #tpu.dot_dimension_numbers<[1], [0], [0], [1], [0, 0, 1, 1], [], []>} : vector<8x32xbf16>, vector<32x128xbf16>, vector<8x128xf32> -> vector<8x128xf32>
    %384 = arith.addf %379, %383 : vector<8x128xf32>
    %385 = vector.extract_strided_slice %384 {offsets = [0, 0], sizes = [8, 32], strides = [1, 1]} : vector<8x128xf32> to vector<8x32xf32>
    %386 = arith.negf %385 : vector<8x32xf32>
    %387 = math.exp %386 : vector<8x32xf32>
    %cst_189 = arith.constant 1.000000e+00 : f32
    %388 = vector.broadcast %cst_189 : f32 to vector<8x32xf32>
    %389 = arith.addf %388, %387 : vector<8x32xf32>
    %390 = arith.divf %388, %389 : vector<8x32xf32>
    %391 = vector.extract_strided_slice %384 {offsets = [0, 32], sizes = [8, 32], strides = [1, 1]} : vector<8x128xf32> to vector<8x32xf32>
    %392 = arith.negf %391 : vector<8x32xf32>
    %393 = math.exp %392 : vector<8x32xf32>
    %cst_190 = arith.constant 1.000000e+00 : f32
    %394 = vector.broadcast %cst_190 : f32 to vector<8x32xf32>
    %395 = arith.addf %394, %393 : vector<8x32xf32>
    %396 = arith.divf %394, %395 : vector<8x32xf32>
    %397 = vector.extract_strided_slice %384 {offsets = [0, 64], sizes = [8, 32], strides = [1, 1]} : vector<8x128xf32> to vector<8x32xf32>
    %398 = math.tanh %397 : vector<8x32xf32>
    %399 = vector.extract_strided_slice %384 {offsets = [0, 96], sizes = [8, 32], strides = [1, 1]} : vector<8x128xf32> to vector<8x32xf32>
    %400 = arith.negf %399 : vector<8x32xf32>
    %401 = math.exp %400 : vector<8x32xf32>
    %cst_191 = arith.constant 1.000000e+00 : f32
    %402 = vector.broadcast %cst_191 : f32 to vector<8x32xf32>
    %403 = arith.addf %402, %401 : vector<8x32xf32>
    %404 = arith.divf %402, %403 : vector<8x32xf32>
    %c0_192 = arith.constant 0 : index
    %c0_193 = arith.constant 0 : index
    %405 = vector.load %arg13[%c0_192, %c0_193] : memref<8x32xf32, #tpu.memory_space<vmem>>, vector<8x32xf32>
    %406 = arith.mulf %396, %405 : vector<8x32xf32>
    %407 = arith.mulf %390, %398 : vector<8x32xf32>
    %408 = arith.addf %406, %407 : vector<8x32xf32>
    %409 = math.tanh %408 : vector<8x32xf32>
    %410 = arith.mulf %404, %409 : vector<8x32xf32>
    %c0_194 = arith.constant 0 : index
    %c0_195 = arith.constant 0 : index
    %411 = vector.load %arg13[%c0_194, %c0_195] : memref<8x32xf32, #tpu.memory_space<vmem>>, vector<8x32xf32>
    tpu.vector_store %arg13[%c0_194, %c0_195], %408 {strides = array<i32>} : memref<8x32xf32, #tpu.memory_space<vmem>>, vector<8x32xf32>,
    %c0_196 = arith.constant 0 : index
    %c0_197 = arith.constant 0 : index
    %412 = vector.load %arg12[%c0_196, %c0_197] : memref<8x32xf32, #tpu.memory_space<vmem>>, vector<8x32xf32>
    tpu.vector_store %arg12[%c0_196, %c0_197], %410 {strides = array<i32>} : memref<8x32xf32, #tpu.memory_space<vmem>>, vector<8x32xf32>,
    %413 = arith.index_cast %c0_i32_181 : i32 to index
    %c0_198 = arith.constant 0 : index
    %c0_199 = arith.constant 0 : index
    %414 = vector.load %arg6[%413, %c0_198, %c0_199] : memref<8x8x32xf32, #tpu.memory_space<vmem>>, vector<1x8x32xf32>
    %415 = vector.shape_cast %414 : vector<1x8x32xf32> to vector<8x32xf32>
    %416 = arith.mulf %410, %415 : vector<8x32xf32>
    %417 = arith.index_cast %c0_i32_181 : i32 to index
    %c0_200 = arith.constant 0 : index
    %c0_201 = arith.constant 0 : index
    %418 = vector.load %arg7[%417, %c0_200, %c0_201] : memref<8x8x32xf32, #tpu.memory_space<vmem>>, vector<1x8x32xf32>
    %419 = vector.shape_cast %418 : vector<1x8x32xf32> to vector<8x32xf32>
    %420 = vector.shape_cast %416 : vector<8x32xf32> to vector<1x8x32xf32>
    tpu.vector_store %arg7[%417, %c0_200, %c0_201], %420 {strides = array<i32>} : memref<8x8x32xf32, #tpu.memory_space<vmem>>, vector<1x8x32xf32>,
    %c1_i32_202 = arith.constant 1 : i32
    %421 = arith.index_cast %c1_i32_202 : i32 to index
    %c0_203 = arith.constant 0 : index
    %c0_204 = arith.constant 0 : index
    %422 = vector.load %arg11[%421, %c0_203, %c0_204] : memref<8x8x128xf32, #tpu.memory_space<vmem>>, vector<1x8x128xf32>
    %423 = vector.shape_cast %422 : vector<1x8x128xf32> to vector<8x128xf32>
    %c0_205 = arith.constant 0 : index
    %c0_206 = arith.constant 0 : index
    %424 = vector.load %arg12[%c0_205, %c0_206] : memref<8x32xf32, #tpu.memory_space<vmem>>, vector<8x32xf32>
    %425 = arith.truncf %424 : vector<8x32xf32> to vector<8x32xbf16>
    %c0_207 = arith.constant 0 : index
    %c0_208 = arith.constant 0 : index
    %426 = vector.load %arg5[%c0_207, %c0_208] : memref<32x128xbf16, #tpu.memory_space<vmem>>, vector<32x128xbf16>
    %cst_209 = arith.constant dense<0.000000e+00> : vector<8x128xf32>
    %427 = tpu.matmul %425, %426, %cst_209 {dimension_numbers = #tpu.dot_dimension_numbers<[1], [0], [0], [1], [0, 0, 1, 1], [], []>} : vector<8x32xbf16>, vector<32x128xbf16>, vector<8x128xf32> -> vector<8x128xf32>
    %428 = arith.addf %423, %427 : vector<8x128xf32>
    %429 = vector.extract_strided_slice %428 {offsets = [0, 0], sizes = [8, 32], strides = [1, 1]} : vector<8x128xf32> to vector<8x32xf32>
    %430 = arith.negf %429 : vector<8x32xf32>
    %431 = math.exp %430 : vector<8x32xf32>
    %cst_210 = arith.constant 1.000000e+00 : f32
    %432 = vector.broadcast %cst_210 : f32 to vector<8x32xf32>
    %433 = arith.addf %432, %431 : vector<8x32xf32>
    %434 = arith.divf %432, %433 : vector<8x32xf32>
    %435 = vector.extract_strided_slice %428 {offsets = [0, 32], sizes = [8, 32], strides = [1, 1]} : vector<8x128xf32> to vector<8x32xf32>
    %436 = arith.negf %435 : vector<8x32xf32>
    %437 = math.exp %436 : vector<8x32xf32>
    %cst_211 = arith.constant 1.000000e+00 : f32
    %438 = vector.broadcast %cst_211 : f32 to vector<8x32xf32>
    %439 = arith.addf %438, %437 : vector<8x32xf32>
    %440 = arith.divf %438, %439 : vector<8x32xf32>
    %441 = vector.extract_strided_slice %428 {offsets = [0, 64], sizes = [8, 32], strides = [1, 1]} : vector<8x128xf32> to vector<8x32xf32>
    %442 = math.tanh %441 : vector<8x32xf32>
    %443 = vector.extract_strided_slice %428 {offsets = [0, 96], sizes = [8, 32], strides = [1, 1]} : vector<8x128xf32> to vector<8x32xf32>
    %444 = arith.negf %443 : vector<8x32xf32>
    %445 = math.exp %444 : vector<8x32xf32>
    %cst_212 = arith.constant 1.000000e+00 : f32
    %446 = vector.broadcast %cst_212 : f32 to vector<8x32xf32>
    %447 = arith.addf %446, %445 : vector<8x32xf32>
    %448 = arith.divf %446, %447 : vector<8x32xf32>
    %c0_213 = arith.constant 0 : index
    %c0_214 = arith.constant 0 : index
    %449 = vector.load %arg13[%c0_213, %c0_214] : memref<8x32xf32, #tpu.memory_space<vmem>>, vector<8x32xf32>
    %450 = arith.mulf %440, %449 : vector<8x32xf32>
    %451 = arith.mulf %434, %442 : vector<8x32xf32>
    %452 = arith.addf %450, %451 : vector<8x32xf32>
    %453 = math.tanh %452 : vector<8x32xf32>
    %454 = arith.mulf %448, %453 : vector<8x32xf32>
    %c0_215 = arith.constant 0 : index
    %c0_216 = arith.constant 0 : index
    %455 = vector.load %arg13[%c0_215, %c0_216] : memref<8x32xf32, #tpu.memory_space<vmem>>, vector<8x32xf32>
    tpu.vector_store %arg13[%c0_215, %c0_216], %452 {strides = array<i32>} : memref<8x32xf32, #tpu.memory_space<vmem>>, vector<8x32xf32>,
    %c0_217 = arith.constant 0 : index
    %c0_218 = arith.constant 0 : index
    %456 = vector.load %arg12[%c0_217, %c0_218] : memref<8x32xf32, #tpu.memory_space<vmem>>, vector<8x32xf32>
    tpu.vector_store %arg12[%c0_217, %c0_218], %454 {strides = array<i32>} : memref<8x32xf32, #tpu.memory_space<vmem>>, vector<8x32xf32>,
    %457 = arith.index_cast %c1_i32_202 : i32 to index
    %c0_219 = arith.constant 0 : index
    %c0_220 = arith.constant 0 : index
    %458 = vector.load %arg6[%457, %c0_219, %c0_220] : memref<8x8x32xf32, #tpu.memory_space<vmem>>, vector<1x8x32xf32>
    %459 = vector.shape_cast %458 : vector<1x8x32xf32> to vector<8x32xf32>
    %460 = arith.mulf %454, %459 : vector<8x32xf32>
    %461 = arith.index_cast %c1_i32_202 : i32 to index
    %c0_221 = arith.constant 0 : index
    %c0_222 = arith.constant 0 : index
    %462 = vector.load %arg7[%461, %c0_221, %c0_222] : memref<8x8x32xf32, #tpu.memory_space<vmem>>, vector<1x8x32xf32>
    %463 = vector.shape_cast %462 : vector<1x8x32xf32> to vector<8x32xf32>
    %464 = vector.shape_cast %460 : vector<8x32xf32> to vector<1x8x32xf32>
    tpu.vector_store %arg7[%461, %c0_221, %c0_222], %464 {strides = array<i32>} : memref<8x8x32xf32, #tpu.memory_space<vmem>>, vector<1x8x32xf32>,
    %c2_i32_223 = arith.constant 2 : i32
    %465 = arith.index_cast %c2_i32_223 : i32 to index
    %c0_224 = arith.constant 0 : index
    %c0_225 = arith.constant 0 : index
    %466 = vector.load %arg11[%465, %c0_224, %c0_225] : memref<8x8x128xf32, #tpu.memory_space<vmem>>, vector<1x8x128xf32>
    %467 = vector.shape_cast %466 : vector<1x8x128xf32> to vector<8x128xf32>
    %c0_226 = arith.constant 0 : index
    %c0_227 = arith.constant 0 : index
    %468 = vector.load %arg12[%c0_226, %c0_227] : memref<8x32xf32, #tpu.memory_space<vmem>>, vector<8x32xf32>
    %469 = arith.truncf %468 : vector<8x32xf32> to vector<8x32xbf16>
    %c0_228 = arith.constant 0 : index
    %c0_229 = arith.constant 0 : index
    %470 = vector.load %arg5[%c0_228, %c0_229] : memref<32x128xbf16, #tpu.memory_space<vmem>>, vector<32x128xbf16>
    %cst_230 = arith.constant dense<0.000000e+00> : vector<8x128xf32>
    %471 = tpu.matmul %469, %470, %cst_230 {dimension_numbers = #tpu.dot_dimension_numbers<[1], [0], [0], [1], [0, 0, 1, 1], [], []>} : vector<8x32xbf16>, vector<32x128xbf16>, vector<8x128xf32> -> vector<8x128xf32>
    %472 = arith.addf %467, %471 : vector<8x128xf32>
    %473 = vector.extract_strided_slice %472 {offsets = [0, 0], sizes = [8, 32], strides = [1, 1]} : vector<8x128xf32> to vector<8x32xf32>
    %474 = arith.negf %473 : vector<8x32xf32>
    %475 = math.exp %474 : vector<8x32xf32>
    %cst_231 = arith.constant 1.000000e+00 : f32
    %476 = vector.broadcast %cst_231 : f32 to vector<8x32xf32>
    %477 = arith.addf %476, %475 : vector<8x32xf32>
    %478 = arith.divf %476, %477 : vector<8x32xf32>
    %479 = vector.extract_strided_slice %472 {offsets = [0, 32], sizes = [8, 32], strides = [1, 1]} : vector<8x128xf32> to vector<8x32xf32>
    %480 = arith.negf %479 : vector<8x32xf32>
    %481 = math.exp %480 : vector<8x32xf32>
    %cst_232 = arith.constant 1.000000e+00 : f32
    %482 = vector.broadcast %cst_232 : f32 to vector<8x32xf32>
    %483 = arith.addf %482, %481 : vector<8x32xf32>
    %484 = arith.divf %482, %483 : vector<8x32xf32>
    %485 = vector.extract_strided_slice %472 {offsets = [0, 64], sizes = [8, 32], strides = [1, 1]} : vector<8x128xf32> to vector<8x32xf32>
    %486 = math.tanh %485 : vector<8x32xf32>
    %487 = vector.extract_strided_slice %472 {offsets = [0, 96], sizes = [8, 32], strides = [1, 1]} : vector<8x128xf32> to vector<8x32xf32>
    %488 = arith.negf %487 : vector<8x32xf32>
    %489 = math.exp %488 : vector<8x32xf32>
    %cst_233 = arith.constant 1.000000e+00 : f32
    %490 = vector.broadcast %cst_233 : f32 to vector<8x32xf32>
    %491 = arith.addf %490, %489 : vector<8x32xf32>
    %492 = arith.divf %490, %491 : vector<8x32xf32>
    %c0_234 = arith.constant 0 : index
    %c0_235 = arith.constant 0 : index
    %493 = vector.load %arg13[%c0_234, %c0_235] : memref<8x32xf32, #tpu.memory_space<vmem>>, vector<8x32xf32>
    %494 = arith.mulf %484, %493 : vector<8x32xf32>
    %495 = arith.mulf %478, %486 : vector<8x32xf32>
    %496 = arith.addf %494, %495 : vector<8x32xf32>
    %497 = math.tanh %496 : vector<8x32xf32>
    %498 = arith.mulf %492, %497 : vector<8x32xf32>
    %c0_236 = arith.constant 0 : index
    %c0_237 = arith.constant 0 : index
    %499 = vector.load %arg13[%c0_236, %c0_237] : memref<8x32xf32, #tpu.memory_space<vmem>>, vector<8x32xf32>
    tpu.vector_store %arg13[%c0_236, %c0_237], %496 {strides = array<i32>} : memref<8x32xf32, #tpu.memory_space<vmem>>, vector<8x32xf32>,
    %c0_238 = arith.constant 0 : index
    %c0_239 = arith.constant 0 : index
    %500 = vector.load %arg12[%c0_238, %c0_239] : memref<8x32xf32, #tpu.memory_space<vmem>>, vector<8x32xf32>
    tpu.vector_store %arg12[%c0_238, %c0_239], %498 {strides = array<i32>} : memref<8x32xf32, #tpu.memory_space<vmem>>, vector<8x32xf32>,
    %501 = arith.index_cast %c2_i32_223 : i32 to index
    %c0_240 = arith.constant 0 : index
    %c0_241 = arith.constant 0 : index
    %502 = vector.load %arg6[%501, %c0_240, %c0_241] : memref<8x8x32xf32, #tpu.memory_space<vmem>>, vector<1x8x32xf32>
    %503 = vector.shape_cast %502 : vector<1x8x32xf32> to vector<8x32xf32>
    %504 = arith.mulf %498, %503 : vector<8x32xf32>
    %505 = arith.index_cast %c2_i32_223 : i32 to index
    %c0_242 = arith.constant 0 : index
    %c0_243 = arith.constant 0 : index
    %506 = vector.load %arg7[%505, %c0_242, %c0_243] : memref<8x8x32xf32, #tpu.memory_space<vmem>>, vector<1x8x32xf32>
    %507 = vector.shape_cast %506 : vector<1x8x32xf32> to vector<8x32xf32>
    %508 = vector.shape_cast %504 : vector<8x32xf32> to vector<1x8x32xf32>
    tpu.vector_store %arg7[%505, %c0_242, %c0_243], %508 {strides = array<i32>} : memref<8x8x32xf32, #tpu.memory_space<vmem>>, vector<1x8x32xf32>,
    %c3_i32_244 = arith.constant 3 : i32
    %509 = arith.index_cast %c3_i32_244 : i32 to index
    %c0_245 = arith.constant 0 : index
    %c0_246 = arith.constant 0 : index
    %510 = vector.load %arg11[%509, %c0_245, %c0_246] : memref<8x8x128xf32, #tpu.memory_space<vmem>>, vector<1x8x128xf32>
    %511 = vector.shape_cast %510 : vector<1x8x128xf32> to vector<8x128xf32>
    %c0_247 = arith.constant 0 : index
    %c0_248 = arith.constant 0 : index
    %512 = vector.load %arg12[%c0_247, %c0_248] : memref<8x32xf32, #tpu.memory_space<vmem>>, vector<8x32xf32>
    %513 = arith.truncf %512 : vector<8x32xf32> to vector<8x32xbf16>
    %c0_249 = arith.constant 0 : index
    %c0_250 = arith.constant 0 : index
    %514 = vector.load %arg5[%c0_249, %c0_250] : memref<32x128xbf16, #tpu.memory_space<vmem>>, vector<32x128xbf16>
    %cst_251 = arith.constant dense<0.000000e+00> : vector<8x128xf32>
    %515 = tpu.matmul %513, %514, %cst_251 {dimension_numbers = #tpu.dot_dimension_numbers<[1], [0], [0], [1], [0, 0, 1, 1], [], []>} : vector<8x32xbf16>, vector<32x128xbf16>, vector<8x128xf32> -> vector<8x128xf32>
    %516 = arith.addf %511, %515 : vector<8x128xf32>
    %517 = vector.extract_strided_slice %516 {offsets = [0, 0], sizes = [8, 32], strides = [1, 1]} : vector<8x128xf32> to vector<8x32xf32>
    %518 = arith.negf %517 : vector<8x32xf32>
    %519 = math.exp %518 : vector<8x32xf32>
    %cst_252 = arith.constant 1.000000e+00 : f32
    %520 = vector.broadcast %cst_252 : f32 to vector<8x32xf32>
    %521 = arith.addf %520, %519 : vector<8x32xf32>
    %522 = arith.divf %520, %521 : vector<8x32xf32>
    %523 = vector.extract_strided_slice %516 {offsets = [0, 32], sizes = [8, 32], strides = [1, 1]} : vector<8x128xf32> to vector<8x32xf32>
    %524 = arith.negf %523 : vector<8x32xf32>
    %525 = math.exp %524 : vector<8x32xf32>
    %cst_253 = arith.constant 1.000000e+00 : f32
    %526 = vector.broadcast %cst_253 : f32 to vector<8x32xf32>
    %527 = arith.addf %526, %525 : vector<8x32xf32>
    %528 = arith.divf %526, %527 : vector<8x32xf32>
    %529 = vector.extract_strided_slice %516 {offsets = [0, 64], sizes = [8, 32], strides = [1, 1]} : vector<8x128xf32> to vector<8x32xf32>
    %530 = math.tanh %529 : vector<8x32xf32>
    %531 = vector.extract_strided_slice %516 {offsets = [0, 96], sizes = [8, 32], strides = [1, 1]} : vector<8x128xf32> to vector<8x32xf32>
    %532 = arith.negf %531 : vector<8x32xf32>
    %533 = math.exp %532 : vector<8x32xf32>
    %cst_254 = arith.constant 1.000000e+00 : f32
    %534 = vector.broadcast %cst_254 : f32 to vector<8x32xf32>
    %535 = arith.addf %534, %533 : vector<8x32xf32>
    %536 = arith.divf %534, %535 : vector<8x32xf32>
    %c0_255 = arith.constant 0 : index
    %c0_256 = arith.constant 0 : index
    %537 = vector.load %arg13[%c0_255, %c0_256] : memref<8x32xf32, #tpu.memory_space<vmem>>, vector<8x32xf32>
    %538 = arith.mulf %528, %537 : vector<8x32xf32>
    %539 = arith.mulf %522, %530 : vector<8x32xf32>
    %540 = arith.addf %538, %539 : vector<8x32xf32>
    %541 = math.tanh %540 : vector<8x32xf32>
    %542 = arith.mulf %536, %541 : vector<8x32xf32>
    %c0_257 = arith.constant 0 : index
    %c0_258 = arith.constant 0 : index
    %543 = vector.load %arg13[%c0_257, %c0_258] : memref<8x32xf32, #tpu.memory_space<vmem>>, vector<8x32xf32>
    tpu.vector_store %arg13[%c0_257, %c0_258], %540 {strides = array<i32>} : memref<8x32xf32, #tpu.memory_space<vmem>>, vector<8x32xf32>,
    %c0_259 = arith.constant 0 : index
    %c0_260 = arith.constant 0 : index
    %544 = vector.load %arg12[%c0_259, %c0_260] : memref<8x32xf32, #tpu.memory_space<vmem>>, vector<8x32xf32>
    tpu.vector_store %arg12[%c0_259, %c0_260], %542 {strides = array<i32>} : memref<8x32xf32, #tpu.memory_space<vmem>>, vector<8x32xf32>,
    %545 = arith.index_cast %c3_i32_244 : i32 to index
    %c0_261 = arith.constant 0 : index
    %c0_262 = arith.constant 0 : index
    %546 = vector.load %arg6[%545, %c0_261, %c0_262] : memref<8x8x32xf32, #tpu.memory_space<vmem>>, vector<1x8x32xf32>
    %547 = vector.shape_cast %546 : vector<1x8x32xf32> to vector<8x32xf32>
    %548 = arith.mulf %542, %547 : vector<8x32xf32>
    %549 = arith.index_cast %c3_i32_244 : i32 to index
    %c0_263 = arith.constant 0 : index
    %c0_264 = arith.constant 0 : index
    %550 = vector.load %arg7[%549, %c0_263, %c0_264] : memref<8x8x32xf32, #tpu.memory_space<vmem>>, vector<1x8x32xf32>
    %551 = vector.shape_cast %550 : vector<1x8x32xf32> to vector<8x32xf32>
    %552 = vector.shape_cast %548 : vector<8x32xf32> to vector<1x8x32xf32>
    tpu.vector_store %arg7[%549, %c0_263, %c0_264], %552 {strides = array<i32>} : memref<8x8x32xf32, #tpu.memory_space<vmem>>, vector<1x8x32xf32>,
    %c4_i32_265 = arith.constant 4 : i32
    %553 = arith.index_cast %c4_i32_265 : i32 to index
    %c0_266 = arith.constant 0 : index
    %c0_267 = arith.constant 0 : index
    %554 = vector.load %arg11[%553, %c0_266, %c0_267] : memref<8x8x128xf32, #tpu.memory_space<vmem>>, vector<1x8x128xf32>
    %555 = vector.shape_cast %554 : vector<1x8x128xf32> to vector<8x128xf32>
    %c0_268 = arith.constant 0 : index
    %c0_269 = arith.constant 0 : index
    %556 = vector.load %arg12[%c0_268, %c0_269] : memref<8x32xf32, #tpu.memory_space<vmem>>, vector<8x32xf32>
    %557 = arith.truncf %556 : vector<8x32xf32> to vector<8x32xbf16>
    %c0_270 = arith.constant 0 : index
    %c0_271 = arith.constant 0 : index
    %558 = vector.load %arg5[%c0_270, %c0_271] : memref<32x128xbf16, #tpu.memory_space<vmem>>, vector<32x128xbf16>
    %cst_272 = arith.constant dense<0.000000e+00> : vector<8x128xf32>
    %559 = tpu.matmul %557, %558, %cst_272 {dimension_numbers = #tpu.dot_dimension_numbers<[1], [0], [0], [1], [0, 0, 1, 1], [], []>} : vector<8x32xbf16>, vector<32x128xbf16>, vector<8x128xf32> -> vector<8x128xf32>
    %560 = arith.addf %555, %559 : vector<8x128xf32>
    %561 = vector.extract_strided_slice %560 {offsets = [0, 0], sizes = [8, 32], strides = [1, 1]} : vector<8x128xf32> to vector<8x32xf32>
    %562 = arith.negf %561 : vector<8x32xf32>
    %563 = math.exp %562 : vector<8x32xf32>
    %cst_273 = arith.constant 1.000000e+00 : f32
    %564 = vector.broadcast %cst_273 : f32 to vector<8x32xf32>
    %565 = arith.addf %564, %563 : vector<8x32xf32>
    %566 = arith.divf %564, %565 : vector<8x32xf32>
    %567 = vector.extract_strided_slice %560 {offsets = [0, 32], sizes = [8, 32], strides = [1, 1]} : vector<8x128xf32> to vector<8x32xf32>
    %568 = arith.negf %567 : vector<8x32xf32>
    %569 = math.exp %568 : vector<8x32xf32>
    %cst_274 = arith.constant 1.000000e+00 : f32
    %570 = vector.broadcast %cst_274 : f32 to vector<8x32xf32>
    %571 = arith.addf %570, %569 : vector<8x32xf32>
    %572 = arith.divf %570, %571 : vector<8x32xf32>
    %573 = vector.extract_strided_slice %560 {offsets = [0, 64], sizes = [8, 32], strides = [1, 1]} : vector<8x128xf32> to vector<8x32xf32>
    %574 = math.tanh %573 : vector<8x32xf32>
    %575 = vector.extract_strided_slice %560 {offsets = [0, 96], sizes = [8, 32], strides = [1, 1]} : vector<8x128xf32> to vector<8x32xf32>
    %576 = arith.negf %575 : vector<8x32xf32>
    %577 = math.exp %576 : vector<8x32xf32>
    %cst_275 = arith.constant 1.000000e+00 : f32
    %578 = vector.broadcast %cst_275 : f32 to vector<8x32xf32>
    %579 = arith.addf %578, %577 : vector<8x32xf32>
    %580 = arith.divf %578, %579 : vector<8x32xf32>
    %c0_276 = arith.constant 0 : index
    %c0_277 = arith.constant 0 : index
    %581 = vector.load %arg13[%c0_276, %c0_277] : memref<8x32xf32, #tpu.memory_space<vmem>>, vector<8x32xf32>
    %582 = arith.mulf %572, %581 : vector<8x32xf32>
    %583 = arith.mulf %566, %574 : vector<8x32xf32>
    %584 = arith.addf %582, %583 : vector<8x32xf32>
    %585 = math.tanh %584 : vector<8x32xf32>
    %586 = arith.mulf %580, %585 : vector<8x32xf32>
    %c0_278 = arith.constant 0 : index
    %c0_279 = arith.constant 0 : index
    %587 = vector.load %arg13[%c0_278, %c0_279] : memref<8x32xf32, #tpu.memory_space<vmem>>, vector<8x32xf32>
    tpu.vector_store %arg13[%c0_278, %c0_279], %584 {strides = array<i32>} : memref<8x32xf32, #tpu.memory_space<vmem>>, vector<8x32xf32>,
    %c0_280 = arith.constant 0 : index
    %c0_281 = arith.constant 0 : index
    %588 = vector.load %arg12[%c0_280, %c0_281] : memref<8x32xf32, #tpu.memory_space<vmem>>, vector<8x32xf32>
    tpu.vector_store %arg12[%c0_280, %c0_281], %586 {strides = array<i32>} : memref<8x32xf32, #tpu.memory_space<vmem>>, vector<8x32xf32>,
    %589 = arith.index_cast %c4_i32_265 : i32 to index
    %c0_282 = arith.constant 0 : index
    %c0_283 = arith.constant 0 : index
    %590 = vector.load %arg6[%589, %c0_282, %c0_283] : memref<8x8x32xf32, #tpu.memory_space<vmem>>, vector<1x8x32xf32>
    %591 = vector.shape_cast %590 : vector<1x8x32xf32> to vector<8x32xf32>
    %592 = arith.mulf %586, %591 : vector<8x32xf32>
    %593 = arith.index_cast %c4_i32_265 : i32 to index
    %c0_284 = arith.constant 0 : index
    %c0_285 = arith.constant 0 : index
    %594 = vector.load %arg7[%593, %c0_284, %c0_285] : memref<8x8x32xf32, #tpu.memory_space<vmem>>, vector<1x8x32xf32>
    %595 = vector.shape_cast %594 : vector<1x8x32xf32> to vector<8x32xf32>
    %596 = vector.shape_cast %592 : vector<8x32xf32> to vector<1x8x32xf32>
    tpu.vector_store %arg7[%593, %c0_284, %c0_285], %596 {strides = array<i32>} : memref<8x8x32xf32, #tpu.memory_space<vmem>>, vector<1x8x32xf32>,
    %c5_i32_286 = arith.constant 5 : i32
    %597 = arith.index_cast %c5_i32_286 : i32 to index
    %c0_287 = arith.constant 0 : index
    %c0_288 = arith.constant 0 : index
    %598 = vector.load %arg11[%597, %c0_287, %c0_288] : memref<8x8x128xf32, #tpu.memory_space<vmem>>, vector<1x8x128xf32>
    %599 = vector.shape_cast %598 : vector<1x8x128xf32> to vector<8x128xf32>
    %c0_289 = arith.constant 0 : index
    %c0_290 = arith.constant 0 : index
    %600 = vector.load %arg12[%c0_289, %c0_290] : memref<8x32xf32, #tpu.memory_space<vmem>>, vector<8x32xf32>
    %601 = arith.truncf %600 : vector<8x32xf32> to vector<8x32xbf16>
    %c0_291 = arith.constant 0 : index
    %c0_292 = arith.constant 0 : index
    %602 = vector.load %arg5[%c0_291, %c0_292] : memref<32x128xbf16, #tpu.memory_space<vmem>>, vector<32x128xbf16>
    %cst_293 = arith.constant dense<0.000000e+00> : vector<8x128xf32>
    %603 = tpu.matmul %601, %602, %cst_293 {dimension_numbers = #tpu.dot_dimension_numbers<[1], [0], [0], [1], [0, 0, 1, 1], [], []>} : vector<8x32xbf16>, vector<32x128xbf16>, vector<8x128xf32> -> vector<8x128xf32>
    %604 = arith.addf %599, %603 : vector<8x128xf32>
    %605 = vector.extract_strided_slice %604 {offsets = [0, 0], sizes = [8, 32], strides = [1, 1]} : vector<8x128xf32> to vector<8x32xf32>
    %606 = arith.negf %605 : vector<8x32xf32>
    %607 = math.exp %606 : vector<8x32xf32>
    %cst_294 = arith.constant 1.000000e+00 : f32
    %608 = vector.broadcast %cst_294 : f32 to vector<8x32xf32>
    %609 = arith.addf %608, %607 : vector<8x32xf32>
    %610 = arith.divf %608, %609 : vector<8x32xf32>
    %611 = vector.extract_strided_slice %604 {offsets = [0, 32], sizes = [8, 32], strides = [1, 1]} : vector<8x128xf32> to vector<8x32xf32>
    %612 = arith.negf %611 : vector<8x32xf32>
    %613 = math.exp %612 : vector<8x32xf32>
    %cst_295 = arith.constant 1.000000e+00 : f32
    %614 = vector.broadcast %cst_295 : f32 to vector<8x32xf32>
    %615 = arith.addf %614, %613 : vector<8x32xf32>
    %616 = arith.divf %614, %615 : vector<8x32xf32>
    %617 = vector.extract_strided_slice %604 {offsets = [0, 64], sizes = [8, 32], strides = [1, 1]} : vector<8x128xf32> to vector<8x32xf32>
    %618 = math.tanh %617 : vector<8x32xf32>
    %619 = vector.extract_strided_slice %604 {offsets = [0, 96], sizes = [8, 32], strides = [1, 1]} : vector<8x128xf32> to vector<8x32xf32>
    %620 = arith.negf %619 : vector<8x32xf32>
    %621 = math.exp %620 : vector<8x32xf32>
    %cst_296 = arith.constant 1.000000e+00 : f32
    %622 = vector.broadcast %cst_296 : f32 to vector<8x32xf32>
    %623 = arith.addf %622, %621 : vector<8x32xf32>
    %624 = arith.divf %622, %623 : vector<8x32xf32>
    %c0_297 = arith.constant 0 : index
    %c0_298 = arith.constant 0 : index
    %625 = vector.load %arg13[%c0_297, %c0_298] : memref<8x32xf32, #tpu.memory_space<vmem>>, vector<8x32xf32>
    %626 = arith.mulf %616, %625 : vector<8x32xf32>
    %627 = arith.mulf %610, %618 : vector<8x32xf32>
    %628 = arith.addf %626, %627 : vector<8x32xf32>
    %629 = math.tanh %628 : vector<8x32xf32>
    %630 = arith.mulf %624, %629 : vector<8x32xf32>
    %c0_299 = arith.constant 0 : index
    %c0_300 = arith.constant 0 : index
    %631 = vector.load %arg13[%c0_299, %c0_300] : memref<8x32xf32, #tpu.memory_space<vmem>>, vector<8x32xf32>
    tpu.vector_store %arg13[%c0_299, %c0_300], %628 {strides = array<i32>} : memref<8x32xf32, #tpu.memory_space<vmem>>, vector<8x32xf32>,
    %c0_301 = arith.constant 0 : index
    %c0_302 = arith.constant 0 : index
    %632 = vector.load %arg12[%c0_301, %c0_302] : memref<8x32xf32, #tpu.memory_space<vmem>>, vector<8x32xf32>
    tpu.vector_store %arg12[%c0_301, %c0_302], %630 {strides = array<i32>} : memref<8x32xf32, #tpu.memory_space<vmem>>, vector<8x32xf32>,
    %633 = arith.index_cast %c5_i32_286 : i32 to index
    %c0_303 = arith.constant 0 : index
    %c0_304 = arith.constant 0 : index
    %634 = vector.load %arg6[%633, %c0_303, %c0_304] : memref<8x8x32xf32, #tpu.memory_space<vmem>>, vector<1x8x32xf32>
    %635 = vector.shape_cast %634 : vector<1x8x32xf32> to vector<8x32xf32>
    %636 = arith.mulf %630, %635 : vector<8x32xf32>
    %637 = arith.index_cast %c5_i32_286 : i32 to index
    %c0_305 = arith.constant 0 : index
    %c0_306 = arith.constant 0 : index
    %638 = vector.load %arg7[%637, %c0_305, %c0_306] : memref<8x8x32xf32, #tpu.memory_space<vmem>>, vector<1x8x32xf32>
    %639 = vector.shape_cast %638 : vector<1x8x32xf32> to vector<8x32xf32>
    %640 = vector.shape_cast %636 : vector<8x32xf32> to vector<1x8x32xf32>
    tpu.vector_store %arg7[%637, %c0_305, %c0_306], %640 {strides = array<i32>} : memref<8x8x32xf32, #tpu.memory_space<vmem>>, vector<1x8x32xf32>,
    %c6_i32_307 = arith.constant 6 : i32
    %641 = arith.index_cast %c6_i32_307 : i32 to index
    %c0_308 = arith.constant 0 : index
    %c0_309 = arith.constant 0 : index
    %642 = vector.load %arg11[%641, %c0_308, %c0_309] : memref<8x8x128xf32, #tpu.memory_space<vmem>>, vector<1x8x128xf32>
    %643 = vector.shape_cast %642 : vector<1x8x128xf32> to vector<8x128xf32>
    %c0_310 = arith.constant 0 : index
    %c0_311 = arith.constant 0 : index
    %644 = vector.load %arg12[%c0_310, %c0_311] : memref<8x32xf32, #tpu.memory_space<vmem>>, vector<8x32xf32>
    %645 = arith.truncf %644 : vector<8x32xf32> to vector<8x32xbf16>
    %c0_312 = arith.constant 0 : index
    %c0_313 = arith.constant 0 : index
    %646 = vector.load %arg5[%c0_312, %c0_313] : memref<32x128xbf16, #tpu.memory_space<vmem>>, vector<32x128xbf16>
    %cst_314 = arith.constant dense<0.000000e+00> : vector<8x128xf32>
    %647 = tpu.matmul %645, %646, %cst_314 {dimension_numbers = #tpu.dot_dimension_numbers<[1], [0], [0], [1], [0, 0, 1, 1], [], []>} : vector<8x32xbf16>, vector<32x128xbf16>, vector<8x128xf32> -> vector<8x128xf32>
    %648 = arith.addf %643, %647 : vector<8x128xf32>
    %649 = vector.extract_strided_slice %648 {offsets = [0, 0], sizes = [8, 32], strides = [1, 1]} : vector<8x128xf32> to vector<8x32xf32>
    %650 = arith.negf %649 : vector<8x32xf32>
    %651 = math.exp %650 : vector<8x32xf32>
    %cst_315 = arith.constant 1.000000e+00 : f32
    %652 = vector.broadcast %cst_315 : f32 to vector<8x32xf32>
    %653 = arith.addf %652, %651 : vector<8x32xf32>
    %654 = arith.divf %652, %653 : vector<8x32xf32>
    %655 = vector.extract_strided_slice %648 {offsets = [0, 32], sizes = [8, 32], strides = [1, 1]} : vector<8x128xf32> to vector<8x32xf32>
    %656 = arith.negf %655 : vector<8x32xf32>
    %657 = math.exp %656 : vector<8x32xf32>
    %cst_316 = arith.constant 1.000000e+00 : f32
    %658 = vector.broadcast %cst_316 : f32 to vector<8x32xf32>
    %659 = arith.addf %658, %657 : vector<8x32xf32>
    %660 = arith.divf %658, %659 : vector<8x32xf32>
    %661 = vector.extract_strided_slice %648 {offsets = [0, 64], sizes = [8, 32], strides = [1, 1]} : vector<8x128xf32> to vector<8x32xf32>
    %662 = math.tanh %661 : vector<8x32xf32>
    %663 = vector.extract_strided_slice %648 {offsets = [0, 96], sizes = [8, 32], strides = [1, 1]} : vector<8x128xf32> to vector<8x32xf32>
    %664 = arith.negf %663 : vector<8x32xf32>
    %665 = math.exp %664 : vector<8x32xf32>
    %cst_317 = arith.constant 1.000000e+00 : f32
    %666 = vector.broadcast %cst_317 : f32 to vector<8x32xf32>
    %667 = arith.addf %666, %665 : vector<8x32xf32>
    %668 = arith.divf %666, %667 : vector<8x32xf32>
    %c0_318 = arith.constant 0 : index
    %c0_319 = arith.constant 0 : index
    %669 = vector.load %arg13[%c0_318, %c0_319] : memref<8x32xf32, #tpu.memory_space<vmem>>, vector<8x32xf32>
    %670 = arith.mulf %660, %669 : vector<8x32xf32>
    %671 = arith.mulf %654, %662 : vector<8x32xf32>
    %672 = arith.addf %670, %671 : vector<8x32xf32>
    %673 = math.tanh %672 : vector<8x32xf32>
    %674 = arith.mulf %668, %673 : vector<8x32xf32>
    %c0_320 = arith.constant 0 : index
    %c0_321 = arith.constant 0 : index
    %675 = vector.load %arg13[%c0_320, %c0_321] : memref<8x32xf32, #tpu.memory_space<vmem>>, vector<8x32xf32>
    tpu.vector_store %arg13[%c0_320, %c0_321], %672 {strides = array<i32>} : memref<8x32xf32, #tpu.memory_space<vmem>>, vector<8x32xf32>,
    %c0_322 = arith.constant 0 : index
    %c0_323 = arith.constant 0 : index
    %676 = vector.load %arg12[%c0_322, %c0_323] : memref<8x32xf32, #tpu.memory_space<vmem>>, vector<8x32xf32>
    tpu.vector_store %arg12[%c0_322, %c0_323], %674 {strides = array<i32>} : memref<8x32xf32, #tpu.memory_space<vmem>>, vector<8x32xf32>,
    %677 = arith.index_cast %c6_i32_307 : i32 to index
    %c0_324 = arith.constant 0 : index
    %c0_325 = arith.constant 0 : index
    %678 = vector.load %arg6[%677, %c0_324, %c0_325] : memref<8x8x32xf32, #tpu.memory_space<vmem>>, vector<1x8x32xf32>
    %679 = vector.shape_cast %678 : vector<1x8x32xf32> to vector<8x32xf32>
    %680 = arith.mulf %674, %679 : vector<8x32xf32>
    %681 = arith.index_cast %c6_i32_307 : i32 to index
    %c0_326 = arith.constant 0 : index
    %c0_327 = arith.constant 0 : index
    %682 = vector.load %arg7[%681, %c0_326, %c0_327] : memref<8x8x32xf32, #tpu.memory_space<vmem>>, vector<1x8x32xf32>
    %683 = vector.shape_cast %682 : vector<1x8x32xf32> to vector<8x32xf32>
    %684 = vector.shape_cast %680 : vector<8x32xf32> to vector<1x8x32xf32>
    tpu.vector_store %arg7[%681, %c0_326, %c0_327], %684 {strides = array<i32>} : memref<8x8x32xf32, #tpu.memory_space<vmem>>, vector<1x8x32xf32>,
    %c7_i32_328 = arith.constant 7 : i32
    %685 = arith.index_cast %c7_i32_328 : i32 to index
    %c0_329 = arith.constant 0 : index
    %c0_330 = arith.constant 0 : index
    %686 = vector.load %arg11[%685, %c0_329, %c0_330] : memref<8x8x128xf32, #tpu.memory_space<vmem>>, vector<1x8x128xf32>
    %687 = vector.shape_cast %686 : vector<1x8x128xf32> to vector<8x128xf32>
    %c0_331 = arith.constant 0 : index
    %c0_332 = arith.constant 0 : index
    %688 = vector.load %arg12[%c0_331, %c0_332] : memref<8x32xf32, #tpu.memory_space<vmem>>, vector<8x32xf32>
    %689 = arith.truncf %688 : vector<8x32xf32> to vector<8x32xbf16>
    %c0_333 = arith.constant 0 : index
    %c0_334 = arith.constant 0 : index
    %690 = vector.load %arg5[%c0_333, %c0_334] : memref<32x128xbf16, #tpu.memory_space<vmem>>, vector<32x128xbf16>
    %cst_335 = arith.constant dense<0.000000e+00> : vector<8x128xf32>
    %691 = tpu.matmul %689, %690, %cst_335 {dimension_numbers = #tpu.dot_dimension_numbers<[1], [0], [0], [1], [0, 0, 1, 1], [], []>} : vector<8x32xbf16>, vector<32x128xbf16>, vector<8x128xf32> -> vector<8x128xf32>
    %692 = arith.addf %687, %691 : vector<8x128xf32>
    %693 = vector.extract_strided_slice %692 {offsets = [0, 0], sizes = [8, 32], strides = [1, 1]} : vector<8x128xf32> to vector<8x32xf32>
    %694 = arith.negf %693 : vector<8x32xf32>
    %695 = math.exp %694 : vector<8x32xf32>
    %cst_336 = arith.constant 1.000000e+00 : f32
    %696 = vector.broadcast %cst_336 : f32 to vector<8x32xf32>
    %697 = arith.addf %696, %695 : vector<8x32xf32>
    %698 = arith.divf %696, %697 : vector<8x32xf32>
    %699 = vector.extract_strided_slice %692 {offsets = [0, 32], sizes = [8, 32], strides = [1, 1]} : vector<8x128xf32> to vector<8x32xf32>
    %700 = arith.negf %699 : vector<8x32xf32>
    %701 = math.exp %700 : vector<8x32xf32>
    %cst_337 = arith.constant 1.000000e+00 : f32
    %702 = vector.broadcast %cst_337 : f32 to vector<8x32xf32>
    %703 = arith.addf %702, %701 : vector<8x32xf32>
    %704 = arith.divf %702, %703 : vector<8x32xf32>
    %705 = vector.extract_strided_slice %692 {offsets = [0, 64], sizes = [8, 32], strides = [1, 1]} : vector<8x128xf32> to vector<8x32xf32>
    %706 = math.tanh %705 : vector<8x32xf32>
    %707 = vector.extract_strided_slice %692 {offsets = [0, 96], sizes = [8, 32], strides = [1, 1]} : vector<8x128xf32> to vector<8x32xf32>
    %708 = arith.negf %707 : vector<8x32xf32>
    %709 = math.exp %708 : vector<8x32xf32>
    %cst_338 = arith.constant 1.000000e+00 : f32
    %710 = vector.broadcast %cst_338 : f32 to vector<8x32xf32>
    %711 = arith.addf %710, %709 : vector<8x32xf32>
    %712 = arith.divf %710, %711 : vector<8x32xf32>
    %c0_339 = arith.constant 0 : index
    %c0_340 = arith.constant 0 : index
    %713 = vector.load %arg13[%c0_339, %c0_340] : memref<8x32xf32, #tpu.memory_space<vmem>>, vector<8x32xf32>
    %714 = arith.mulf %704, %713 : vector<8x32xf32>
    %715 = arith.mulf %698, %706 : vector<8x32xf32>
    %716 = arith.addf %714, %715 : vector<8x32xf32>
    %717 = math.tanh %716 : vector<8x32xf32>
    %718 = arith.mulf %712, %717 : vector<8x32xf32>
    %c0_341 = arith.constant 0 : index
    %c0_342 = arith.constant 0 : index
    %719 = vector.load %arg13[%c0_341, %c0_342] : memref<8x32xf32, #tpu.memory_space<vmem>>, vector<8x32xf32>
    tpu.vector_store %arg13[%c0_341, %c0_342], %716 {strides = array<i32>} : memref<8x32xf32, #tpu.memory_space<vmem>>, vector<8x32xf32>,
    %c0_343 = arith.constant 0 : index
    %c0_344 = arith.constant 0 : index
    %720 = vector.load %arg12[%c0_343, %c0_344] : memref<8x32xf32, #tpu.memory_space<vmem>>, vector<8x32xf32>
    tpu.vector_store %arg12[%c0_343, %c0_344], %718 {strides = array<i32>} : memref<8x32xf32, #tpu.memory_space<vmem>>, vector<8x32xf32>,
    %721 = arith.index_cast %c7_i32_328 : i32 to index
    %c0_345 = arith.constant 0 : index
    %c0_346 = arith.constant 0 : index
    %722 = vector.load %arg6[%721, %c0_345, %c0_346] : memref<8x8x32xf32, #tpu.memory_space<vmem>>, vector<1x8x32xf32>
    %723 = vector.shape_cast %722 : vector<1x8x32xf32> to vector<8x32xf32>
    %724 = arith.mulf %718, %723 : vector<8x32xf32>
    %725 = arith.index_cast %c7_i32_328 : i32 to index
    %c0_347 = arith.constant 0 : index
    %c0_348 = arith.constant 0 : index
    %726 = vector.load %arg7[%725, %c0_347, %c0_348] : memref<8x8x32xf32, #tpu.memory_space<vmem>>, vector<1x8x32xf32>
    %727 = vector.shape_cast %726 : vector<1x8x32xf32> to vector<8x32xf32>
    %728 = vector.shape_cast %724 : vector<8x32xf32> to vector<1x8x32xf32>
    tpu.vector_store %arg7[%725, %c0_347, %c0_348], %728 {strides = array<i32>} : memref<8x8x32xf32, #tpu.memory_space<vmem>>, vector<1x8x32xf32>,
    %c8_i32_349 = arith.constant 8 : i32
    return
  }
}

</mosaic_0001>

<llo_original>
// kernel: autoencoder_forward.3
$region0: #{autoencoder_forward.3}
  #allocation0 [shape = 'u32[]', space=smem, size = 0x4, offset = 0x4, fixed_abs, tag = 'smem constant byte address 0x4 - core index']
  #allocation1 [shape = 'u32[144,128]{1,0:T(1,128)}', space=vmem, size = 0x12000, scoped, tag = 'internal scratch']
  #allocation2 [shape = 'f32[8,128]{1,0:T(8,128)}', space=vmem, size = 0x1000, scoped, tag = 'scratch operand']
  #allocation3 [shape = 'f32[8,128]{1,0:T(8,128)}', space=vmem, size = 0x1000, scoped, tag = 'scratch operand']
  #allocation4 [shape = 'bf16[8,8,128]{2,1,0:T(8,128)(2,1)}', space=vmem, size = 0x4000, scoped, tag = 'scratch operand']
  #allocation5 [shape = 'f32[8,8,128]{2,1,0:T(8,128)}', space=vmem, size = 0x8000, scoped, tag = 'scratch operand']
  #allocation6 [shape = 'f32[8,32]{1,0:T(8,128)}', space=vmem, size = 0x1000, scoped, tag = 'scratch operand']
  #allocation7 [shape = 'f32[8,32]{1,0:T(8,128)}', space=vmem, size = 0x1000, scoped, tag = 'scratch operand']
  %s0 = inlined_call_operand.vmem [shape: f32[8,8,512], index: 0, kind: input, shape index: {}]
  %s1 = inlined_call_operand.vmem [shape: f32[8,8,128], index: 1, kind: input, shape index: {}]
  %s2 = inlined_call_operand.vmem [shape: bf16[128,512], index: 2, kind: input, shape index: {}]
  %s3 = inlined_call_operand.vmem [shape: bf16[128,128], index: 3, kind: input, shape index: {}]
  %s4 = inlined_call_operand.vmem [shape: f32[1,128], index: 4, kind: input, shape index: {}]
  %s5 = inlined_call_operand.vmem [shape: bf16[32,128], index: 5, kind: input, shape index: {}]
  %s6 = inlined_call_operand.vmem [shape: f32[8,8,32], index: 6, kind: input, shape index: {}]
  %s7 = inlined_call_operand.vmem [shape: f32[8,8,32], index: 7, kind: output, shape index: {}]
  %s8 = sld [smem:[#allocation0]]
  $region38: #{autoencoder_forward.3} parent=0
    _
  %s10 = ssub.s32 1, %s8
  %s11 = scalar_select 0, %s10, %s8
  // Predicated region
  $region2: #{autoencoder_forward.3} parent=0 // pred_check
    _
  $region3: #{autoencoder_forward.3} parent=0 // pred_check_branch
    %13 = sbr.rel (0) target = $region5
  $region4: #{autoencoder_forward.3} parent=0 // pred_region
    _
  $region5: #{autoencoder_forward.3} parent=0 // pred_fallthru
    _
  // Predicated region
  $region6: #{autoencoder_forward.3} parent=0 // pred_check
    _
  $region7: #{autoencoder_forward.3} parent=0 // pred_check_branch
    %15 = sbr.rel (0) target = $region9
  $region8: #{autoencoder_forward.3} parent=0 // pred_region
    _
  $region9: #{autoencoder_forward.3} parent=0 // pred_fallthru
    _
  // Predicated region
  $region10: #{autoencoder_forward.3} parent=0 // pred_check
    _
  $region11: #{autoencoder_forward.3} parent=0 // pred_check_branch
    %17 = sbr.rel (0) target = $region13
  $region12: #{autoencoder_forward.3} parent=0 // pred_region
    _
  $region13: #{autoencoder_forward.3} parent=0 // pred_fallthru
    _
  // Predicated region
  $region14: #{autoencoder_forward.3} parent=0 // pred_check
    _
  $region15: #{autoencoder_forward.3} parent=0 // pred_check_branch
    %19 = sbr.rel (0) target = $region17
  $region16: #{autoencoder_forward.3} parent=0 // pred_region
    _
  $region17: #{autoencoder_forward.3} parent=0 // pred_fallthru
    _
  // Predicated region
  $region18: #{autoencoder_forward.3} parent=0 // pred_check
    _
  $region19: #{autoencoder_forward.3} parent=0 // pred_check_branch
    %21 = sbr.rel (0) target = $region21
  $region20: #{autoencoder_forward.3} parent=0 // pred_region
    _
  $region21: #{autoencoder_forward.3} parent=0 // pred_fallthru
    _
  // Predicated region
  $region22: #{autoencoder_forward.3} parent=0 // pred_check
    _
  $region23: #{autoencoder_forward.3} parent=0 // pred_check_branch
    %23 = sbr.rel (0) target = $region25
  $region24: #{autoencoder_forward.3} parent=0 // pred_region
    _
  $region25: #{autoencoder_forward.3} parent=0 // pred_fallthru
    _
  // Predicated region
  $region26: #{autoencoder_forward.3} parent=0 // pred_check
    _
  $region27: #{autoencoder_forward.3} parent=0 // pred_check_branch
    %25 = sbr.rel (0) target = $region29
  $region28: #{autoencoder_forward.3} parent=0 // pred_region
    _
  $region29: #{autoencoder_forward.3} parent=0 // pred_fallthru
    _
  %27 = vst [vmem:[#allocation2] sm:$0xff] 0.0
  %28 = vst [vmem:[#allocation3] sm:$0xff] 0.0
  %vm29 = vcmask 261120
  %30 = vst.msk [vmem:[#allocation6] sm:$0xff] %vm29, 0.0
  %31 = vst.msk [vmem:[#allocation7] sm:$0xff] %vm29, 0.0
  %v32 = vld [vmem:[%s0] sm:$0xff]
  %v33 = vld [vmem:[%s0 + $0x8] sm:$0xff]
  %v34 = vld [vmem:[%s0 + $0x10] sm:$0xff]
  %v35 = vld [vmem:[%s0 + $0x18] sm:$0xff]
  %v36 = vld [vmem:[#allocation2] sm:$0xff]
  %v37 = vpack.c.bf16 %v36, %v36
  %v38 = vld [vmem:[%s2] sm:$0xff]
  %v39 = vld [vmem:[%s2 + $0x8] sm:$0xff]
  %v40 = vld [vmem:[%s2 + $0x10] sm:$0xff]
  %v41 = vld [vmem:[%s2 + $0x18] sm:$0xff]
  %v42 = vld [vmem:[%s2 + $0x20] sm:$0xff]
  %v43 = vld [vmem:[%s2 + $0x28] sm:$0xff]
  %v44 = vld [vmem:[%s2 + $0x30] sm:$0xff]
  %v45 = vld [vmem:[%s2 + $0x38] sm:$0xff]
  %v46 = vld [vmem:[%s2 + $0x40] sm:$0xff]
  %v47 = vld [vmem:[%s2 + $0x48] sm:$0xff]
  %v48 = vld [vmem:[%s2 + $0x50] sm:$0xff]
  %v49 = vld [vmem:[%s2 + $0x58] sm:$0xff]
  %v50 = vld [vmem:[%s2 + $0x60] sm:$0xff]
  %v51 = vld [vmem:[%s2 + $0x68] sm:$0xff]
  %v52 = vld [vmem:[%s2 + $0x70] sm:$0xff]
  %v53 = vld [vmem:[%s2 + $0x78] sm:$0xff]
  %v54 = vld [vmem:[%s2 + $0x80] sm:$0xff]
  %v55 = vld [vmem:[%s2 + $0x88] sm:$0xff]
  %v56 = vld [vmem:[%s2 + $0x90] sm:$0xff]
  %v57 = vld [vmem:[%s2 + $0x98] sm:$0xff]
  %v58 = vld [vmem:[%s2 + $0xa0] sm:$0xff]
  %v59 = vld [vmem:[%s2 + $0xa8] sm:$0xff]
  %v60 = vld [vmem:[%s2 + $0xb0] sm:$0xff]
  %v61 = vld [vmem:[%s2 + $0xb8] sm:$0xff]
  %v62 = vld [vmem:[%s2 + $0xc0] sm:$0xff]
  %v63 = vld [vmem:[%s2 + $0xc8] sm:$0xff]
  %v64 = vld [vmem:[%s2 + $0xd0] sm:$0xff]
  %v65 = vld [vmem:[%s2 + $0xd8] sm:$0xff]
  %v66 = vld [vmem:[%s2 + $0xe0] sm:$0xff]
  %v67 = vld [vmem:[%s2 + $0xe8] sm:$0xff]
  %v68 = vld [vmem:[%s2 + $0xf0] sm:$0xff]
  %v69 = vld [vmem:[%s2 + $0xf8] sm:$0xff]
  %v102 = vunpack.c.l.b16 %v38
  %v103 = vunpack.c.h.b16 %v38
  %v104 = vunpack.c.l.b16 %v39
  %v105 = vunpack.c.h.b16 %v39
  %v106 = vunpack.c.l.b16 %v40
  %v107 = vunpack.c.h.b16 %v40
  %v108 = vunpack.c.l.b16 %v41
  %v109 = vunpack.c.h.b16 %v41
  %v110 = vunpack.c.l.b16 %v42
  %v111 = vunpack.c.h.b16 %v42
  %v112 = vunpack.c.l.b16 %v43
  %v113 = vunpack.c.h.b16 %v43
  %v114 = vunpack.c.l.b16 %v44
  %v115 = vunpack.c.h.b16 %v44
  %v116 = vunpack.c.l.b16 %v45
  %v117 = vunpack.c.h.b16 %v45
  %v118 = vunpack.c.l.b16 %v46
  %v119 = vunpack.c.h.b16 %v46
  %v120 = vunpack.c.l.b16 %v47
  %v121 = vunpack.c.h.b16 %v47
  %v122 = vunpack.c.l.b16 %v48
  %v123 = vunpack.c.h.b16 %v48
  %v124 = vunpack.c.l.b16 %v49
  %v125 = vunpack.c.h.b16 %v49
  %v126 = vunpack.c.l.b16 %v50
  %v127 = vunpack.c.h.b16 %v50
  %v128 = vunpack.c.l.b16 %v51
  %v129 = vunpack.c.h.b16 %v51
  %v130 = vunpack.c.l.b16 %v52
  %v131 = vunpack.c.h.b16 %v52
  %v132 = vunpack.c.l.b16 %v53
  %v133 = vunpack.c.h.b16 %v53
  %v134 = vunpack.c.l.b16 %v54
  %v135 = vunpack.c.h.b16 %v54
  %v136 = vunpack.c.l.b16 %v55
  %v137 = vunpack.c.h.b16 %v55
  %v138 = vunpack.c.l.b16 %v56
  %v139 = vunpack.c.h.b16 %v56
  %v140 = vunpack.c.l.b16 %v57
  %v141 = vunpack.c.h.b16 %v57
  %v142 = vunpack.c.l.b16 %v58
  %v143 = vunpack.c.h.b16 %v58
  %v144 = vunpack.c.l.b16 %v59
  %v145 = vunpack.c.h.b16 %v59
  %v146 = vunpack.c.l.b16 %v60
  %v147 = vunpack.c.h.b16 %v60
  %v148 = vunpack.c.l.b16 %v61
  %v149 = vunpack.c.h.b16 %v61
  %v150 = vunpack.c.l.b16 %v62
  %v151 = vunpack.c.h.b16 %v62
  %v152 = vunpack.c.l.b16 %v63
  %v153 = vunpack.c.h.b16 %v63
  %v154 = vunpack.c.l.b16 %v64
  %v155 = vunpack.c.h.b16 %v64
  %v156 = vunpack.c.l.b16 %v65
  %v157 = vunpack.c.h.b16 %v65
  %v158 = vunpack.c.l.b16 %v66
  %v159 = vunpack.c.h.b16 %v66
  %v160 = vunpack.c.l.b16 %v67
  %v161 = vunpack.c.h.b16 %v67
  %v162 = vunpack.c.l.b16 %v68
  %v163 = vunpack.c.h.b16 %v68
  %v164 = vunpack.c.l.b16 %v69
  %v165 = vunpack.c.h.b16 %v69
  %v166 = vpack.c.b16 %v106, %v102
  %v167 = vpack.c.b16 %v107, %v103
  %v168 = vpack.c.b16 %v108, %v104
  %v169 = vpack.c.b16 %v109, %v105
  %v170 = vpack.c.b16 %v114, %v110
  %v171 = vpack.c.b16 %v115, %v111
  %v172 = vpack.c.b16 %v116, %v112
  %v173 = vpack.c.b16 %v117, %v113
  %v174 = vpack.c.b16 %v122, %v118
  %v175 = vpack.c.b16 %v123, %v119
  %v176 = vpack.c.b16 %v124, %v120
  %v177 = vpack.c.b16 %v125, %v121
  %v178 = vpack.c.b16 %v130, %v126
  %v179 = vpack.c.b16 %v131, %v127
  %v180 = vpack.c.b16 %v132, %v128
  %v181 = vpack.c.b16 %v133, %v129
  %v182 = vpack.c.b16 %v138, %v134
  %v183 = vpack.c.b16 %v139, %v135
  %v184 = vpack.c.b16 %v140, %v136
  %v185 = vpack.c.b16 %v141, %v137
  %v186 = vpack.c.b16 %v146, %v142
  %v187 = vpack.c.b16 %v147, %v143
  %v188 = vpack.c.b16 %v148, %v144
  %v189 = vpack.c.b16 %v149, %v145
  %v190 = vpack.c.b16 %v154, %v150
  %v191 = vpack.c.b16 %v155, %v151
  %v192 = vpack.c.b16 %v156, %v152
  %v193 = vpack.c.b16 %v157, %v153
  %v194 = vpack.c.b16 %v162, %v158
  %v195 = vpack.c.b16 %v163, %v159
  %v196 = vpack.c.b16 %v164, %v160
  %v197 = vpack.c.b16 %v165, %v161
  %230 = vmatprep.subr.bf16.mxu0 %v167
  %231 = vmatpush1.bf16.msra.mxu0 %v166
  %232 = vmatprep.subr.bf16.mxu0 %v171
  %233 = vmatpush1.bf16.msra.mxu0 %v170
  %234 = vmatprep.subr.bf16.mxu0 %v175
  %235 = vmatpush1.bf16.msra.mxu0 %v174
  %236 = vmatprep.subr.bf16.mxu0 %v179
  %237 = vmatpush1.bf16.msra.mxu0 %v178
  %238 = vmatprep.subr.bf16.mxu0 %v183
  %239 = vmatpush1.bf16.msra.mxu0 %v182
  %240 = vmatprep.subr.bf16.mxu0 %v187
  %241 = vmatpush1.bf16.msra.mxu0 %v186
  %242 = vmatprep.subr.bf16.mxu0 %v191
  %243 = vmatpush1.bf16.msra.mxu0 %v190
  %244 = vmatprep.subr.bf16.mxu0 %v195
  %245 = vmatpush1.bf16.msra.mxu0 %v194
  %246 = vmatprep.subr.bf16.mxu0 0
  %247 = vmatpush1.bf16.msra.mxu0 0
  %248 = vmatprep.subr.bf16.mxu0 0
  %249 = vmatpush1.bf16.msra.mxu0 0
  %250 = vmatprep.subr.bf16.mxu0 0
  %251 = vmatpush1.bf16.msra.mxu0 0
  %252 = vmatprep.subr.bf16.mxu0 0
  %253 = vmatpush1.bf16.msra.mxu0 0
  %254 = vmatprep.subr.bf16.mxu0 0
  %255 = vmatpush1.bf16.msra.mxu0 0
  %256 = vmatprep.subr.bf16.mxu0 0
  %257 = vmatpush1.bf16.msra.mxu0 0
  %258 = vmatprep.subr.bf16.mxu0 0
  %259 = vmatpush1.bf16.msra.mxu0 0
  %260 = vmatprep.subr.bf16.mxu0 0
  %261 = vmatpush1.bf16.msra.mxu0 0
  %262 = vmatprep.mubr.bf16.mxu0 0
  %263 = vmatmul.mubr.bf16.gmra.mrb[0].mxu0 %v37
  %v264 = vpop.f32.mrb[0].mxu0
  %v265 = vadd.f32 0.0, %v264
  %v266 = vpop.f32.mrb[0].mxu0
  %v267 = vadd.f32 0.0, %v266
  %v268 = vpop.f32.mrb[0].mxu0
  %v269 = vpop.f32.mrb[0].mxu0
  %270 = vdwg.mxu0
  %271 = vmatprep.subr.bf16.mxu0 %v169
  %272 = vmatpush1.bf16.msra.mxu0 %v168
  %273 = vmatprep.subr.bf16.mxu0 %v173
  %274 = vmatpush1.bf16.msra.mxu0 %v172
  %275 = vmatprep.subr.bf16.mxu0 %v177
  %276 = vmatpush1.bf16.msra.mxu0 %v176
  %277 = vmatprep.subr.bf16.mxu0 %v181
  %278 = vmatpush1.bf16.msra.mxu0 %v180
  %279 = vmatprep.subr.bf16.mxu0 %v185
  %280 = vmatpush1.bf16.msra.mxu0 %v184
  %281 = vmatprep.subr.bf16.mxu0 %v189
  %282 = vmatpush1.bf16.msra.mxu0 %v188
  %283 = vmatprep.subr.bf16.mxu0 %v193
  %284 = vmatpush1.bf16.msra.mxu0 %v192
  %285 = vmatprep.subr.bf16.mxu0 %v197
  %286 = vmatpush1.bf16.msra.mxu0 %v196
  %287 = vmatprep.subr.bf16.mxu0 0
  %288 = vmatpush1.bf16.msra.mxu0 0
  %289 = vmatprep.subr.bf16.mxu0 0
  %290 = vmatpush1.bf16.msra.mxu0 0
  %291 = vmatprep.subr.bf16.mxu0 0
  %292 = vmatpush1.bf16.msra.mxu0 0
  %293 = vmatprep.subr.bf16.mxu0 0
  %294 = vmatpush1.bf16.msra.mxu0 0
  %295 = vmatprep.subr.bf16.mxu0 0
  %296 = vmatpush1.bf16.msra.mxu0 0
  %297 = vmatprep.subr.bf16.mxu0 0
  %298 = vmatpush1.bf16.msra.mxu0 0
  %299 = vmatprep.subr.bf16.mxu0 0
  %300 = vmatpush1.bf16.msra.mxu0 0
  %301 = vmatprep.subr.bf16.mxu0 0
  %302 = vmatpush1.bf16.msra.mxu0 0
  %303 = vmatprep.mubr.bf16.mxu0 0
  %304 = vmatmul.mubr.bf16.gmra.mrb[0].mxu0 %v37
  %v305 = vpop.f32.mrb[0].mxu0
  %v306 = vadd.f32 0.0, %v305
  %v307 = vpop.f32.mrb[0].mxu0
  %v308 = vadd.f32 0.0, %v307
  %v309 = vpop.f32.mrb[0].mxu0
  %v310 = vpop.f32.mrb[0].mxu0
  %311 = vdwg.mxu0
  %v312 = vadd.f32 %v32, %v265
  %v313 = vadd.f32 %v33, %v267
  %v314 = vadd.f32 %v34, %v306
  %v315 = vadd.f32 %v35, %v308
  %v316 = vxor.u32 %v312, 2147483648
  %v317 = vmul.f32 %v316, 1.442695
  %v318 = vpow.pop %v317
  %v319 = vadd.f32 %v318, 1.0
  %v320 = vrcp.pop %v319
  %v321 = vmul.f32 1.0, %v320
  %v322 = vxor.u32 %v313, 2147483648
  %v323 = vmul.f32 %v322, 1.442695
  %v324 = vpow.pop %v323
  %v325 = vadd.f32 %v324, 1.0
  %v326 = vrcp.pop %v325
  %v327 = vmul.f32 1.0, %v326
  %v328 = vtanh.pop %v314
  %v329 = vxor.u32 %v315, 2147483648
  %v330 = vmul.f32 %v329, 1.442695
  %v331 = vpow.pop %v330
  %v332 = vadd.f32 %v331, 1.0
  %v333 = vrcp.pop %v332
  %v334 = vmul.f32 1.0, %v333
  %v335 = vld [vmem:[#allocation3] sm:$0xff]
  %v336 = vmul.f32 %v327, %v335
  %v337 = vmul.f32 %v321, %v328
  %v338 = vadd.f32 %v336, %v337
  %v339 = vtanh.pop %v338
  %v340 = vmul.f32 %v334, %v339
  %341 = vst [vmem:[#allocation3] sm:$0xff] %v338
  %342 = vst [vmem:[#allocation2] sm:$0xff] %v340
  %v343 = vld [vmem:[%s1] sm:$0xff]
  %v344 = vmul.f32 %v340, %v343
  %v345 = vpack.c.bf16 %v344, %v344
  %346 = vst [vmem:[#allocation4] sm:$0xf] %v345
  %s347 = scalar_lea.vmem %s0, 32
  %v348 = vld [vmem:[%s347] sm:$0xff]
  %v349 = vld [vmem:[%s347 + $0x8] sm:$0xff]
  %v350 = vld [vmem:[%s347 + $0x10] sm:$0xff]
  %v351 = vld [vmem:[%s347 + $0x18] sm:$0xff]
  %v352 = vld [vmem:[#allocation2] sm:$0xff]
  %v353 = vpack.c.bf16 %v352, %v352
  %v354 = vld [vmem:[%s2] sm:$0xff]
  %v355 = vld [vmem:[%s2 + $0x8] sm:$0xff]
  %v356 = vld [vmem:[%s2 + $0x10] sm:$0xff]
  %v357 = vld [vmem:[%s2 + $0x18] sm:$0xff]
  %v358 = vld [vmem:[%s2 + $0x20] sm:$0xff]
  %v359 = vld [vmem:[%s2 + $0x28] sm:$0xff]
  %v360 = vld [vmem:[%s2 + $0x30] sm:$0xff]
  %v361 = vld [vmem:[%s2 + $0x38] sm:$0xff]
  %v362 = vld [vmem:[%s2 + $0x40] sm:$0xff]
  %v363 = vld [vmem:[%s2 + $0x48] sm:$0xff]
  %v364 = vld [vmem:[%s2 + $0x50] sm:$0xff]
  %v365 = vld [vmem:[%s2 + $0x58] sm:$0xff]
  %v366 = vld [vmem:[%s2 + $0x60] sm:$0xff]
  %v367 = vld [vmem:[%s2 + $0x68] sm:$0xff]
  %v368 = vld [vmem:[%s2 + $0x70] sm:$0xff]
  %v369 = vld [vmem:[%s2 + $0x78] sm:$0xff]
  %v370 = vld [vmem:[%s2 + $0x80] sm:$0xff]
  %v371 = vld [vmem:[%s2 + $0x88] sm:$0xff]
  %v372 = vld [vmem:[%s2 + $0x90] sm:$0xff]
  %v373 = vld [vmem:[%s2 + $0x98] sm:$0xff]
  %v374 = vld [vmem:[%s2 + $0xa0] sm:$0xff]
  %v375 = vld [vmem:[%s2 + $0xa8] sm:$0xff]
  %v376 = vld [vmem:[%s2 + $0xb0] sm:$0xff]
  %v377 = vld [vmem:[%s2 + $0xb8] sm:$0xff]
  %v378 = vld [vmem:[%s2 + $0xc0] sm:$0xff]
  %v379 = vld [vmem:[%s2 + $0xc8] sm:$0xff]
  %v380 = vld [vmem:[%s2 + $0xd0] sm:$0xff]
  %v381 = vld [vmem:[%s2 + $0xd8] sm:$0xff]
  %v382 = vld [vmem:[%s2 + $0xe0] sm:$0xff]
  %v383 = vld [vmem:[%s2 + $0xe8] sm:$0xff]
  %v384 = vld [vmem:[%s2 + $0xf0] sm:$0xff]
  %v385 = vld [vmem:[%s2 + $0xf8] sm:$0xff]
  %v418 = vunpack.c.l.b16 %v354
  %v419 = vunpack.c.h.b16 %v354
  %v420 = vunpack.c.l.b16 %v355
  %v421 = vunpack.c.h.b16 %v355
  %v422 = vunpack.c.l.b16 %v356
  %v423 = vunpack.c.h.b16 %v356
  %v424 = vunpack.c.l.b16 %v357
  %v425 = vunpack.c.h.b16 %v357
  %v426 = vunpack.c.l.b16 %v358
  %v427 = vunpack.c.h.b16 %v358
  %v428 = vunpack.c.l.b16 %v359
  %v429 = vunpack.c.h.b16 %v359
  %v430 = vunpack.c.l.b16 %v360
  %v431 = vunpack.c.h.b16 %v360
  %v432 = vunpack.c.l.b16 %v361
  %v433 = vunpack.c.h.b16 %v361
  %v434 = vunpack.c.l.b16 %v362
  %v435 = vunpack.c.h.b16 %v362
  %v436 = vunpack.c.l.b16 %v363
  %v437 = vunpack.c.h.b16 %v363
  %v438 = vunpack.c.l.b16 %v364
  %v439 = vunpack.c.h.b16 %v364
  %v440 = vunpack.c.l.b16 %v365
  %v441 = vunpack.c.h.b16 %v365
  %v442 = vunpack.c.l.b16 %v366
  %v443 = vunpack.c.h.b16 %v366
  %v444 = vunpack.c.l.b16 %v367
  %v445 = vunpack.c.h.b16 %v367
  %v446 = vunpack.c.l.b16 %v368
  %v447 = vunpack.c.h.b16 %v368
  %v448 = vunpack.c.l.b16 %v369
  %v449 = vunpack.c.h.b16 %v369
  %v450 = vunpack.c.l.b16 %v370
  %v451 = vunpack.c.h.b16 %v370
  %v452 = vunpack.c.l.b16 %v371
  %v453 = vunpack.c.h.b16 %v371
  %v454 = vunpack.c.l.b16 %v372
  %v455 = vunpack.c.h.b16 %v372
  %v456 = vunpack.c.l.b16 %v373
  %v457 = vunpack.c.h.b16 %v373
  %v458 = vunpack.c.l.b16 %v374
  %v459 = vunpack.c.h.b16 %v374
  %v460 = vunpack.c.l.b16 %v375
  %v461 = vunpack.c.h.b16 %v375
  %v462 = vunpack.c.l.b16 %v376
  %v463 = vunpack.c.h.b16 %v376
  %v464 = vunpack.c.l.b16 %v377
  %v465 = vunpack.c.h.b16 %v377
  %v466 = vunpack.c.l.b16 %v378
  %v467 = vunpack.c.h.b16 %v378
  %v468 = vunpack.c.l.b16 %v379
  %v469 = vunpack.c.h.b16 %v379
  %v470 = vunpack.c.l.b16 %v380
  %v471 = vunpack.c.h.b16 %v380
  %v472 = vunpack.c.l.b16 %v381
  %v473 = vunpack.c.h.b16 %v381
  %v474 = vunpack.c.l.b16 %v382
  %v475 = vunpack.c.h.b16 %v382
  %v476 = vunpack.c.l.b16 %v383
  %v477 = vunpack.c.h.b16 %v383
  %v478 = vunpack.c.l.b16 %v384
  %v479 = vunpack.c.h.b16 %v384
  %v480 = vunpack.c.l.b16 %v385
  %v481 = vunpack.c.h.b16 %v385
  %v482 = vpack.c.b16 %v422, %v418
  %v483 = vpack.c.b16 %v423, %v419
  %v484 = vpack.c.b16 %v424, %v420
  %v485 = vpack.c.b16 %v425, %v421
  %v486 = vpack.c.b16 %v430, %v426
  %v487 = vpack.c.b16 %v431, %v427
  %v488 = vpack.c.b16 %v432, %v428
  %v489 = vpack.c.b16 %v433, %v429
  %v490 = vpack.c.b16 %v438, %v434
  %v491 = vpack.c.b16 %v439, %v435
  %v492 = vpack.c.b16 %v440, %v436
  %v493 = vpack.c.b16 %v441, %v437
  %v494 = vpack.c.b16 %v446, %v442
  %v495 = vpack.c.b16 %v447, %v443
  %v496 = vpack.c.b16 %v448, %v444
  %v497 = vpack.c.b16 %v449, %v445
  %v498 = vpack.c.b16 %v454, %v450
  %v499 = vpack.c.b16 %v455, %v451
  %v500 = vpack.c.b16 %v456, %v452
  %v501 = vpack.c.b16 %v457, %v453
  %v502 = vpack.c.b16 %v462, %v458
  %v503 = vpack.c.b16 %v463, %v459
  %v504 = vpack.c.b16 %v464, %v460
  %v505 = vpack.c.b16 %v465, %v461
  %v506 = vpack.c.b16 %v470, %v466
  %v507 = vpack.c.b16 %v471, %v467
  %v508 = vpack.c.b16 %v472, %v468
  %v509 = vpack.c.b16 %v473, %v469
  %v510 = vpack.c.b16 %v478, %v474
  %v511 = vpack.c.b16 %v479, %v475
  %v512 = vpack.c.b16 %v480, %v476
  %v513 = vpack.c.b16 %v481, %v477
  %546 = vmatprep.subr.bf16.mxu0 %v483
  %547 = vmatpush1.bf16.msra.mxu0 %v482
  %548 = vmatprep.subr.bf16.mxu0 %v487
  %549 = vmatpush1.bf16.msra.mxu0 %v486
  %550 = vmatprep.subr.bf16.mxu0 %v491
  %551 = vmatpush1.bf16.msra.mxu0 %v490
  %552 = vmatprep.subr.bf16.mxu0 %v495
  %553 = vmatpush1.bf16.msra.mxu0 %v494
  %554 = vmatprep.subr.bf16.mxu0 %v499
  %555 = vmatpush1.bf16.msra.mxu0 %v498
  %556 = vmatprep.subr.bf16.mxu0 %v503
  %557 = vmatpush1.bf16.msra.mxu0 %v502
  %558 = vmatprep.subr.bf16.mxu0 %v507
  %559 = vmatpush1.bf16.msra.mxu0 %v506
  %560 = vmatprep.subr.bf16.mxu0 %v511
  %561 = vmatpush1.bf16.msra.mxu0 %v510
  %562 = vmatprep.subr.bf16.mxu0 0
  %563 = vmatpush1.bf16.msra.mxu0 0
  %564 = vmatprep.subr.bf16.mxu0 0
  %565 = vmatpush1.bf16.msra.mxu0 0
  %566 = vmatprep.subr.bf16.mxu0 0
  %567 = vmatpush1.bf16.msra.mxu0 0
  %568 = vmatprep.subr.bf16.mxu0 0
  %569 = vmatpush1.bf16.msra.mxu0 0
  %570 = vmatprep.subr.bf16.mxu0 0
  %571 = vmatpush1.bf16.msra.mxu0 0
  %572 = vmatprep.subr.bf16.mxu0 0
  %573 = vmatpush1.bf16.msra.mxu0 0
  %574 = vmatprep.subr.bf16.mxu0 0
  %575 = vmatpush1.bf16.msra.mxu0 0
  %576 = vmatprep.subr.bf16.mxu0 0
  %577 = vmatpush1.bf16.msra.mxu0 0
  %578 = vmatprep.mubr.bf16.mxu0 0
  %579 = vmatmul.mubr.bf16.gmra.mrb[0].mxu0 %v353
  %v580 = vpop.f32.mrb[0].mxu0
  %v581 = vadd.f32 0.0, %v580
  %v582 = vpop.f32.mrb[0].mxu0
  %v583 = vadd.f32 0.0, %v582
  %v584 = vpop.f32.mrb[0].mxu0
  %v585 = vpop.f32.mrb[0].mxu0
  %586 = vdwg.mxu0
  %587 = vmatprep.subr.bf16.mxu0 %v485
  %588 = vmatpush1.bf16.msra.mxu0 %v484
  %589 = vmatprep.subr.bf16.mxu0 %v489
  %590 = vmatpush1.bf16.msra.mxu0 %v488
  %591 = vmatprep.subr.bf16.mxu0 %v493
  %592 = vmatpush1.bf16.msra.mxu0 %v492
  %593 = vmatprep.subr.bf16.mxu0 %v497
  %594 = vmatpush1.bf16.msra.mxu0 %v496
  %595 = vmatprep.subr.bf16.mxu0 %v501
  %596 = vmatpush1.bf16.msra.mxu0 %v500
  %597 = vmatprep.subr.bf16.mxu0 %v505
  %598 = vmatpush1.bf16.msra.mxu0 %v504
  %599 = vmatprep.subr.bf16.mxu0 %v509
  %600 = vmatpush1.bf16.msra.mxu0 %v508
  %601 = vmatprep.subr.bf16.mxu0 %v513
  %602 = vmatpush1.bf16.msra.mxu0 %v512
  %603 = vmatprep.subr.bf16.mxu0 0
  %604 = vmatpush1.bf16.msra.mxu0 0
  %605 = vmatprep.subr.bf16.mxu0 0
  %606 = vmatpush1.bf16.msra.mxu0 0
  %607 = vmatprep.subr.bf16.mxu0 0
  %608 = vmatpush1.bf16.msra.mxu0 0
  %609 = vmatprep.subr.bf16.mxu0 0
  %610 = vmatpush1.bf16.msra.mxu0 0
  %611 = vmatprep.subr.bf16.mxu0 0
  %612 = vmatpush1.bf16.msra.mxu0 0
  %613 = vmatprep.subr.bf16.mxu0 0
  %614 = vmatpush1.bf16.msra.mxu0 0
  %615 = vmatprep.subr.bf16.mxu0 0
  %616 = vmatpush1.bf16.msra.mxu0 0
  %617 = vmatprep.subr.bf16.mxu0 0
  %618 = vmatpush1.bf16.msra.mxu0 0
  %619 = vmatprep.mubr.bf16.mxu0 0
  %620 = vmatmul.mubr.bf16.gmra.mrb[0].mxu0 %v353
  %v621 = vpop.f32.mrb[0].mxu0
  %v622 = vadd.f32 0.0, %v621
  %v623 = vpop.f32.mrb[0].mxu0
  %v624 = vadd.f32 0.0, %v623
  %v625 = vpop.f32.mrb[0].mxu0
  %v626 = vpop.f32.mrb[0].mxu0
  %627 = vdwg.mxu0
  %v628 = vadd.f32 %v348, %v581
  %v629 = vadd.f32 %v349, %v583
  %v630 = vadd.f32 %v350, %v622
  %v631 = vadd.f32 %v351, %v624
  %v632 = vxor.u32 %v628, 2147483648
  %v633 = vmul.f32 %v632, 1.442695
  %v634 = vpow.pop %v633
  %v635 = vadd.f32 %v634, 1.0
  %v636 = vrcp.pop %v635
  %v637 = vmul.f32 1.0, %v636
  %v638 = vxor.u32 %v629, 2147483648
  %v639 = vmul.f32 %v638, 1.442695
  %v640 = vpow.pop %v639
  %v641 = vadd.f32 %v640, 1.0
  %v642 = vrcp.pop %v641
  %v643 = vmul.f32 1.0, %v642
  %v644 = vtanh.pop %v630
  %v645 = vxor.u32 %v631, 2147483648
  %v646 = vmul.f32 %v645, 1.442695
  %v647 = vpow.pop %v646
  %v648 = vadd.f32 %v647, 1.0
  %v649 = vrcp.pop %v648
  %v650 = vmul.f32 1.0, %v649
  %v651 = vld [vmem:[#allocation3] sm:$0xff]
  %v652 = vmul.f32 %v643, %v651
  %v653 = vmul.f32 %v637, %v644
  %v654 = vadd.f32 %v652, %v653
  %v655 = vtanh.pop %v654
  %v656 = vmul.f32 %v650, %v655
  %657 = vst [vmem:[#allocation3] sm:$0xff] %v654
  %658 = vst [vmem:[#allocation2] sm:$0xff] %v656
  %s659 = scalar_lea.vmem %s1, 8
  %v660 = vld [vmem:[%s659] sm:$0xff]
  %v661 = vmul.f32 %v656, %v660
  %v662 = vpack.c.bf16 %v661, %v661
  %s663 = scalar_lea.vmem [#allocation4], 4
  %664 = vst [vmem:[%s663] sm:$0xf] %v662
  %s665 = scalar_lea.vmem %s0, 64
  %v666 = vld [vmem:[%s665] sm:$0xff]
  %v667 = vld [vmem:[%s665 + $0x8] sm:$0xff]
  %v668 = vld [vmem:[%s665 + $0x10] sm:$0xff]
  %v669 = vld [vmem:[%s665 + $0x18] sm:$0xff]
  %v670 = vld [vmem:[#allocation2] sm:$0xff]
  %v671 = vpack.c.bf16 %v670, %v670
  %v672 = vld [vmem:[%s2] sm:$0xff]
  %v673 = vld [vmem:[%s2 + $0x8] sm:$0xff]
  %v674 = vld [vmem:[%s2 + $0x10] sm:$0xff]
  %v675 = vld [vmem:[%s2 + $0x18] sm:$0xff]
  %v676 = vld [vmem:[%s2 + $0x20] sm:$0xff]
  %v677 = vld [vmem:[%s2 + $0x28] sm:$0xff]
  %v678 = vld [vmem:[%s2 + $0x30] sm:$0xff]
  %v679 = vld [vmem:[%s2 + $0x38] sm:$0xff]
  %v680 = vld [vmem:[%s2 + $0x40] sm:$0xff]
  %v681 = vld [vmem:[%s2 + $0x48] sm:$0xff]
  %v682 = vld [vmem:[%s2 + $0x50] sm:$0xff]
  %v683 = vld [vmem:[%s2 + $0x58] sm:$0xff]
  %v684 = vld [vmem:[%s2 + $0x60] sm:$0xff]
  %v685 = vld [vmem:[%s2 + $0x68] sm:$0xff]
  %v686 = vld [vmem:[%s2 + $0x70] sm:$0xff]
  %v687 = vld [vmem:[%s2 + $0x78] sm:$0xff]
  %v688 = vld [vmem:[%s2 + $0x80] sm:$0xff]
  %v689 = vld [vmem:[%s2 + $0x88] sm:$0xff]
  %v690 = vld [vmem:[%s2 + $0x90] sm:$0xff]
  %v691 = vld [vmem:[%s2 + $0x98] sm:$0xff]
  %v692 = vld [vmem:[%s2 + $0xa0] sm:$0xff]
  %v693 = vld [vmem:[%s2 + $0xa8] sm:$0xff]
  %v694 = vld [vmem:[%s2 + $0xb0] sm:$0xff]
  %v695 = vld [vmem:[%s2 + $0xb8] sm:$0xff]
  %v696 = vld [vmem:[%s2 + $0xc0] sm:$0xff]
  %v697 = vld [vmem:[%s2 + $0xc8] sm:$0xff]
  %v698 = vld [vmem:[%s2 + $0xd0] sm:$0xff]
  %v699 = vld [vmem:[%s2 + $0xd8] sm:$0xff]
  %v700 = vld [vmem:[%s2 + $0xe0] sm:$0xff]
  %v701 = vld [vmem:[%s2 + $0xe8] sm:$0xff]
  %v702 = vld [vmem:[%s2 + $0xf0] sm:$0xff]
  %v703 = vld [vmem:[%s2 + $0xf8] sm:$0xff]
  %v736 = vunpack.c.l.b16 %v672
  %v737 = vunpack.c.h.b16 %v672
  %v738 = vunpack.c.l.b16 %v673
  %v739 = vunpack.c.h.b16 %v673
  %v740 = vunpack.c.l.b16 %v674
  %v741 = vunpack.c.h.b16 %v674
  %v742 = vunpack.c.l.b16 %v675
  %v743 = vunpack.c.h.b16 %v675
  %v744 = vunpack.c.l.b16 %v676
  %v745 = vunpack.c.h.b16 %v676
  %v746 = vunpack.c.l.b16 %v677
  %v747 = vunpack.c.h.b16 %v677
  %v748 = vunpack.c.l.b16 %v678
  %v749 = vunpack.c.h.b16 %v678
  %v750 = vunpack.c.l.b16 %v679
  %v751 = vunpack.c.h.b16 %v679
  %v752 = vunpack.c.l.b16 %v680
  %v753 = vunpack.c.h.b16 %v680
  %v754 = vunpack.c.l.b16 %v681
  %v755 = vunpack.c.h.b16 %v681
  %v756 = vunpack.c.l.b16 %v682
  %v757 = vunpack.c.h.b16 %v682
  %v758 = vunpack.c.l.b16 %v683
  %v759 = vunpack.c.h.b16 %v683
  %v760 = vunpack.c.l.b16 %v684
  %v761 = vunpack.c.h.b16 %v684
  %v762 = vunpack.c.l.b16 %v685
  %v763 = vunpack.c.h.b16 %v685
  %v764 = vunpack.c.l.b16 %v686
  %v765 = vunpack.c.h.b16 %v686
  %v766 = vunpack.c.l.b16 %v687
  %v767 = vunpack.c.h.b16 %v687
  %v768 = vunpack.c.l.b16 %v688
  %v769 = vunpack.c.h.b16 %v688
  %v770 = vunpack.c.l.b16 %v689
  %v771 = vunpack.c.h.b16 %v689
  %v772 = vunpack.c.l.b16 %v690
  %v773 = vunpack.c.h.b16 %v690
  %v774 = vunpack.c.l.b16 %v691
  %v775 = vunpack.c.h.b16 %v691
  %v776 = vunpack.c.l.b16 %v692
  %v777 = vunpack.c.h.b16 %v692
  %v778 = vunpack.c.l.b16 %v693
  %v779 = vunpack.c.h.b16 %v693
  %v780 = vunpack.c.l.b16 %v694
  %v781 = vunpack.c.h.b16 %v694
  %v782 = vunpack.c.l.b16 %v695
  %v783 = vunpack.c.h.b16 %v695
  %v784 = vunpack.c.l.b16 %v696
  %v785 = vunpack.c.h.b16 %v696
  %v786 = vunpack.c.l.b16 %v697
  %v787 = vunpack.c.h.b16 %v697
  %v788 = vunpack.c.l.b16 %v698
  %v789 = vunpack.c.h.b16 %v698
  %v790 = vunpack.c.l.b16 %v699
  %v791 = vunpack.c.h.b16 %v699
  %v792 = vunpack.c.l.b16 %v700
  %v793 = vunpack.c.h.b16 %v700
  %v794 = vunpack.c.l.b16 %v701
  %v795 = vunpack.c.h.b16 %v701
  %v796 = vunpack.c.l.b16 %v702
  %v797 = vunpack.c.h.b16 %v702
  %v798 = vunpack.c.l.b16 %v703
  %v799 = vunpack.c.h.b16 %v703
  %v800 = vpack.c.b16 %v740, %v736
  %v801 = vpack.c.b16 %v741, %v737
  %v802 = vpack.c.b16 %v742, %v738
  %v803 = vpack.c.b16 %v743, %v739
  %v804 = vpack.c.b16 %v748, %v744
  %v805 = vpack.c.b16 %v749, %v745
  %v806 = vpack.c.b16 %v750, %v746
  %v807 = vpack.c.b16 %v751, %v747
  %v808 = vpack.c.b16 %v756, %v752
  %v809 = vpack.c.b16 %v757, %v753
  %v810 = vpack.c.b16 %v758, %v754
  %v811 = vpack.c.b16 %v759, %v755
  %v812 = vpack.c.b16 %v764, %v760
  %v813 = vpack.c.b16 %v765, %v761
  %v814 = vpack.c.b16 %v766, %v762
  %v815 = vpack.c.b16 %v767, %v763
  %v816 = vpack.c.b16 %v772, %v768
  %v817 = vpack.c.b16 %v773, %v769
  %v818 = vpack.c.b16 %v774, %v770
  %v819 = vpack.c.b16 %v775, %v771
  %v820 = vpack.c.b16 %v780, %v776
  %v821 = vpack.c.b16 %v781, %v777
  %v822 = vpack.c.b16 %v782, %v778
  %v823 = vpack.c.b16 %v783, %v779
  %v824 = vpack.c.b16 %v788, %v784
  %v825 = vpack.c.b16 %v789, %v785
  %v826 = vpack.c.b16 %v790, %v786
  %v827 = vpack.c.b16 %v791, %v787
  %v828 = vpack.c.b16 %v796, %v792
  %v829 = vpack.c.b16 %v797, %v793
  %v830 = vpack.c.b16 %v798, %v794
  %v831 = vpack.c.b16 %v799, %v795
  %864 = vmatprep.subr.bf16.mxu0 %v801
  %865 = vmatpush1.bf16.msra.mxu0 %v800
  %866 = vmatprep.subr.bf16.mxu0 %v805
  %867 = vmatpush1.bf16.msra.mxu0 %v804
  %868 = vmatprep.subr.bf16.mxu0 %v809
  %869 = vmatpush1.bf16.msra.mxu0 %v808
  %870 = vmatprep.subr.bf16.mxu0 %v813
  %871 = vmatpush1.bf16.msra.mxu0 %v812
  %872 = vmatprep.subr.bf16.mxu0 %v817
  %873 = vmatpush1.bf16.msra.mxu0 %v816
  %874 = vmatprep.subr.bf16.mxu0 %v821
  %875 = vmatpush1.bf16.msra.mxu0 %v820
  %876 = vmatprep.subr.bf16.mxu0 %v825
  %877 = vmatpush1.bf16.msra.mxu0 %v824
  %878 = vmatprep.subr.bf16.mxu0 %v829
  %879 = vmatpush1.bf16.msra.mxu0 %v828
  %880 = vmatprep.subr.bf16.mxu0 0
  %881 = vmatpush1.bf16.msra.mxu0 0
  %882 = vmatprep.subr.bf16.mxu0 0
  %883 = vmatpush1.bf16.msra.mxu0 0
  %884 = vmatprep.subr.bf16.mxu0 0
  %885 = vmatpush1.bf16.msra.mxu0 0
  %886 = vmatprep.subr.bf16.mxu0 0
  %887 = vmatpush1.bf16.msra.mxu0 0
  %888 = vmatprep.subr.bf16.mxu0 0
  %889 = vmatpush1.bf16.msra.mxu0 0
  %890 = vmatprep.subr.bf16.mxu0 0
  %891 = vmatpush1.bf16.msra.mxu0 0
  %892 = vmatprep.subr.bf16.mxu0 0
  %893 = vmatpush1.bf16.msra.mxu0 0
  %894 = vmatprep.subr.bf16.mxu0 0
  %895 = vmatpush1.bf16.msra.mxu0 0
  %896 = vmatprep.mubr.bf16.mxu0 0
  %897 = vmatmul.mubr.bf16.gmra.mrb[0].mxu0 %v671
  %v898 = vpop.f32.mrb[0].mxu0
  %v899 = vadd.f32 0.0, %v898
  %v900 = vpop.f32.mrb[0].mxu0
  %v901 = vadd.f32 0.0, %v900
  %v902 = vpop.f32.mrb[0].mxu0
  %v903 = vpop.f32.mrb[0].mxu0
  %904 = vdwg.mxu0
  %905 = vmatprep.subr.bf16.mxu0 %v803
  %906 = vmatpush1.bf16.msra.mxu0 %v802
  %907 = vmatprep.subr.bf16.mxu0 %v807
  %908 = vmatpush1.bf16.msra.mxu0 %v806
  %909 = vmatprep.subr.bf16.mxu0 %v811
  %910 = vmatpush1.bf16.msra.mxu0 %v810
  %911 = vmatprep.subr.bf16.mxu0 %v815
  %912 = vmatpush1.bf16.msra.mxu0 %v814
  %913 = vmatprep.subr.bf16.mxu0 %v819
  %914 = vmatpush1.bf16.msra.mxu0 %v818
  %915 = vmatprep.subr.bf16.mxu0 %v823
  %916 = vmatpush1.bf16.msra.mxu0 %v822
  %917 = vmatprep.subr.bf16.mxu0 %v827
  %918 = vmatpush1.bf16.msra.mxu0 %v826
  %919 = vmatprep.subr.bf16.mxu0 %v831
  %920 = vmatpush1.bf16.msra.mxu0 %v830
  %921 = vmatprep.subr.bf16.mxu0 0
  %922 = vmatpush1.bf16.msra.mxu0 0
  %923 = vmatprep.subr.bf16.mxu0 0
  %924 = vmatpush1.bf16.msra.mxu0 0
  %925 = vmatprep.subr.bf16.mxu0 0
  %926 = vmatpush1.bf16.msra.mxu0 0
  %927 = vmatprep.subr.bf16.mxu0 0
  %928 = vmatpush1.bf16.msra.mxu0 0
  %929 = vmatprep.subr.bf16.mxu0 0
  %930 = vmatpush1.bf16.msra.mxu0 0
  %931 = vmatprep.subr.bf16.mxu0 0
  %932 = vmatpush1.bf16.msra.mxu0 0
  %933 = vmatprep.subr.bf16.mxu0 0
  %934 = vmatpush1.bf16.msra.mxu0 0
  %935 = vmatprep.subr.bf16.mxu0 0
  %936 = vmatpush1.bf16.msra.mxu0 0
  %937 = vmatprep.mubr.bf16.mxu0 0
  %938 = vmatmul.mubr.bf16.gmra.mrb[0].mxu0 %v671
  %v939 = vpop.f32.mrb[0].mxu0
  %v940 = vadd.f32 0.0, %v939
  %v941 = vpop.f32.mrb[0].mxu0
  %v942 = vadd.f32 0.0, %v941
  %v943 = vpop.f32.mrb[0].mxu0
  %v944 = vpop.f32.mrb[0].mxu0
  %945 = vdwg.mxu0
  %v946 = vadd.f32 %v666, %v899
  %v947 = vadd.f32 %v667, %v901
  %v948 = vadd.f32 %v668, %v940
  %v949 = vadd.f32 %v669, %v942
  %v950 = vxor.u32 %v946, 2147483648
  %v951 = vmul.f32 %v950, 1.442695
  %v952 = vpow.pop %v951
  %v953 = vadd.f32 %v952, 1.0
  %v954 = vrcp.pop %v953
  %v955 = vmul.f32 1.0, %v954
  %v956 = vxor.u32 %v947, 2147483648
  %v957 = vmul.f32 %v956, 1.442695
  %v958 = vpow.pop %v957
  %v959 = vadd.f32 %v958, 1.0
  %v960 = vrcp.pop %v959
  %v961 = vmul.f32 1.0, %v960
  %v962 = vtanh.pop %v948
  %v963 = vxor.u32 %v949, 2147483648
  %v964 = vmul.f32 %v963, 1.442695
  %v965 = vpow.pop %v964
  %v966 = vadd.f32 %v965, 1.0
  %v967 = vrcp.pop %v966
  %v968 = vmul.f32 1.0, %v967
  %v969 = vld [vmem:[#allocation3] sm:$0xff]
  %v970 = vmul.f32 %v961, %v969
  %v971 = vmul.f32 %v955, %v962
  %v972 = vadd.f32 %v970, %v971
  %v973 = vtanh.pop %v972
  %v974 = vmul.f32 %v968, %v973
  %975 = vst [vmem:[#allocation3] sm:$0xff] %v972
  %976 = vst [vmem:[#allocation2] sm:$0xff] %v974
  %s977 = scalar_lea.vmem %s1, 16
  %v978 = vld [vmem:[%s977] sm:$0xff]
  %v979 = vmul.f32 %v974, %v978
  %v980 = vpack.c.bf16 %v979, %v979
  %s981 = scalar_lea.vmem [#allocation4], 8
  %982 = vst [vmem:[%s981] sm:$0xf] %v980
  %s983 = scalar_lea.vmem %s0, 96
  %v984 = vld [vmem:[%s983] sm:$0xff]
  %v985 = vld [vmem:[%s983 + $0x8] sm:$0xff]
  %v986 = vld [vmem:[%s983 + $0x10] sm:$0xff]
  %v987 = vld [vmem:[%s983 + $0x18] sm:$0xff]
  %v988 = vld [vmem:[#allocation2] sm:$0xff]
  %v989 = vpack.c.bf16 %v988, %v988
  %v990 = vld [vmem:[%s2] sm:$0xff]
  %v991 = vld [vmem:[%s2 + $0x8] sm:$0xff]
  %v992 = vld [vmem:[%s2 + $0x10] sm:$0xff]
  %v993 = vld [vmem:[%s2 + $0x18] sm:$0xff]
  %v994 = vld [vmem:[%s2 + $0x20] sm:$0xff]
  %v995 = vld [vmem:[%s2 + $0x28] sm:$0xff]
  %v996 = vld [vmem:[%s2 + $0x30] sm:$0xff]
  %v997 = vld [vmem:[%s2 + $0x38] sm:$0xff]
  %v998 = vld [vmem:[%s2 + $0x40] sm:$0xff]
  %v999 = vld [vmem:[%s2 + $0x48] sm:$0xff]
  %v1000 = vld [vmem:[%s2 + $0x50] sm:$0xff]
  %v1001 = vld [vmem:[%s2 + $0x58] sm:$0xff]
  %v1002 = vld [vmem:[%s2 + $0x60] sm:$0xff]
  %v1003 = vld [vmem:[%s2 + $0x68] sm:$0xff]
  %v1004 = vld [vmem:[%s2 + $0x70] sm:$0xff]
  %v1005 = vld [vmem:[%s2 + $0x78] sm:$0xff]
  %v1006 = vld [vmem:[%s2 + $0x80] sm:$0xff]
  %v1007 = vld [vmem:[%s2 + $0x88] sm:$0xff]
  %v1008 = vld [vmem:[%s2 + $0x90] sm:$0xff]
  %v1009 = vld [vmem:[%s2 + $0x98] sm:$0xff]
  %v1010 = vld [vmem:[%s2 + $0xa0] sm:$0xff]
  %v1011 = vld [vmem:[%s2 + $0xa8] sm:$0xff]
  %v1012 = vld [vmem:[%s2 + $0xb0] sm:$0xff]
  %v1013 = vld [vmem:[%s2 + $0xb8] sm:$0xff]
  %v1014 = vld [vmem:[%s2 + $0xc0] sm:$0xff]
  %v1015 = vld [vmem:[%s2 + $0xc8] sm:$0xff]
  %v1016 = vld [vmem:[%s2 + $0xd0] sm:$0xff]
  %v1017 = vld [vmem:[%s2 + $0xd8] sm:$0xff]
  %v1018 = vld [vmem:[%s2 + $0xe0] sm:$0xff]
  %v1019 = vld [vmem:[%s2 + $0xe8] sm:$0xff]
  %v1020 = vld [vmem:[%s2 + $0xf0] sm:$0xff]
  %v1021 = vld [vmem:[%s2 + $0xf8] sm:$0xff]
  %v1054 = vunpack.c.l.b16 %v990
  %v1055 = vunpack.c.h.b16 %v990
  %v1056 = vunpack.c.l.b16 %v991
  %v1057 = vunpack.c.h.b16 %v991
  %v1058 = vunpack.c.l.b16 %v992
  %v1059 = vunpack.c.h.b16 %v992
  %v1060 = vunpack.c.l.b16 %v993
  %v1061 = vunpack.c.h.b16 %v993
  %v1062 = vunpack.c.l.b16 %v994
  %v1063 = vunpack.c.h.b16 %v994
  %v1064 = vunpack.c.l.b16 %v995
  %v1065 = vunpack.c.h.b16 %v995
  %v1066 = vunpack.c.l.b16 %v996
  %v1067 = vunpack.c.h.b16 %v996
  %v1068 = vunpack.c.l.b16 %v997
  %v1069 = vunpack.c.h.b16 %v997
  %v1070 = vunpack.c.l.b16 %v998
  %v1071 = vunpack.c.h.b16 %v998
  %v1072 = vunpack.c.l.b16 %v999
  %v1073 = vunpack.c.h.b16 %v999
  %v1074 = vunpack.c.l.b16 %v1000
  %v1075 = vunpack.c.h.b16 %v1000
  %v1076 = vunpack.c.l.b16 %v1001
  %v1077 = vunpack.c.h.b16 %v1001
  %v1078 = vunpack.c.l.b16 %v1002
  %v1079 = vunpack.c.h.b16 %v1002
  %v1080 = vunpack.c.l.b16 %v1003
  %v1081 = vunpack.c.h.b16 %v1003
  %v1082 = vunpack.c.l.b16 %v1004
  %v1083 = vunpack.c.h.b16 %v1004
  %v1084 = vunpack.c.l.b16 %v1005
  %v1085 = vunpack.c.h.b16 %v1005
  %v1086 = vunpack.c.l.b16 %v1006
  %v1087 = vunpack.c.h.b16 %v1006
  %v1088 = vunpack.c.l.b16 %v1007
  %v1089 = vunpack.c.h.b16 %v1007
  %v1090 = vunpack.c.l.b16 %v1008
  %v1091 = vunpack.c.h.b16 %v1008
  %v1092 = vunpack.c.l.b16 %v1009
  %v1093 = vunpack.c.h.b16 %v1009
  %v1094 = vunpack.c.l.b16 %v1010
  %v1095 = vunpack.c.h.b16 %v1010
  %v1096 = vunpack.c.l.b16 %v1011
  %v1097 = vunpack.c.h.b16 %v1011
  %v1098 = vunpack.c.l.b16 %v1012
  %v1099 = vunpack.c.h.b16 %v1012
  %v1100 = vunpack.c.l.b16 %v1013
  %v1101 = vunpack.c.h.b16 %v1013
  %v1102 = vunpack.c.l.b16 %v1014
  %v1103 = vunpack.c.h.b16 %v1014
  %v1104 = vunpack.c.l.b16 %v1015
  %v1105 = vunpack.c.h.b16 %v1015
  %v1106 = vunpack.c.l.b16 %v1016
  %v1107 = vunpack.c.h.b16 %v1016
  %v1108 = vunpack.c.l.b16 %v1017
  %v1109 = vunpack.c.h.b16 %v1017
  %v1110 = vunpack.c.l.b16 %v1018
  %v1111 = vunpack.c.h.b16 %v1018
  %v1112 = vunpack.c.l.b16 %v1019
  %v1113 = vunpack.c.h.b16 %v1019
  %v1114 = vunpack.c.l.b16 %v1020
  %v1115 = vunpack.c.h.b16 %v1020
  %v1116 = vunpack.c.l.b16 %v1021
  %v1117 = vunpack.c.h.b16 %v1021
  %v1118 = vpack.c.b16 %v1058, %v1054
  %v1119 = vpack.c.b16 %v1059, %v1055
  %v1120 = vpack.c.b16 %v1060, %v1056
  %v1121 = vpack.c.b16 %v1061, %v1057
  %v1122 = vpack.c.b16 %v1066, %v1062
  %v1123 = vpack.c.b16 %v1067, %v1063
  %v1124 = vpack.c.b16 %v1068, %v1064
  %v1125 = vpack.c.b16 %v1069, %v1065
  %v1126 = vpack.c.b16 %v1074, %v1070
  %v1127 = vpack.c.b16 %v1075, %v1071
  %v1128 = vpack.c.b16 %v1076, %v1072
  %v1129 = vpack.c.b16 %v1077, %v1073
  %v1130 = vpack.c.b16 %v1082, %v1078
  %v1131 = vpack.c.b16 %v1083, %v1079
  %v1132 = vpack.c.b16 %v1084, %v1080
  %v1133 = vpack.c.b16 %v1085, %v1081
  %v1134 = vpack.c.b16 %v1090, %v1086
  %v1135 = vpack.c.b16 %v1091, %v1087
  %v1136 = vpack.c.b16 %v1092, %v1088
  %v1137 = vpack.c.b16 %v1093, %v1089
  %v1138 = vpack.c.b16 %v1098, %v1094
  %v1139 = vpack.c.b16 %v1099, %v1095
  %v1140 = vpack.c.b16 %v1100, %v1096
  %v1141 = vpack.c.b16 %v1101, %v1097
  %v1142 = vpack.c.b16 %v1106, %v1102
  %v1143 = vpack.c.b16 %v1107, %v1103
  %v1144 = vpack.c.b16 %v1108, %v1104
  %v1145 = vpack.c.b16 %v1109, %v1105
  %v1146 = vpack.c.b16 %v1114, %v1110
  %v1147 = vpack.c.b16 %v1115, %v1111
  %v1148 = vpack.c.b16 %v1116, %v1112
  %v1149 = vpack.c.b16 %v1117, %v1113
  %1182 = vmatprep.subr.bf16.mxu0 %v1119
  %1183 = vmatpush1.bf16.msra.mxu0 %v1118
  %1184 = vmatprep.subr.bf16.mxu0 %v1123
  %1185 = vmatpush1.bf16.msra.mxu0 %v1122
  %1186 = vmatprep.subr.bf16.mxu0 %v1127
  %1187 = vmatpush1.bf16.msra.mxu0 %v1126
  %1188 = vmatprep.subr.bf16.mxu0 %v1131
  %1189 = vmatpush1.bf16.msra.mxu0 %v1130
  %1190 = vmatprep.subr.bf16.mxu0 %v1135
  %1191 = vmatpush1.bf16.msra.mxu0 %v1134
  %1192 = vmatprep.subr.bf16.mxu0 %v1139
  %1193 = vmatpush1.bf16.msra.mxu0 %v1138
  %1194 = vmatprep.subr.bf16.mxu0 %v1143
  %1195 = vmatpush1.bf16.msra.mxu0 %v1142
  %1196 = vmatprep.subr.bf16.mxu0 %v1147
  %1197 = vmatpush1.bf16.msra.mxu0 %v1146
  %1198 = vmatprep.subr.bf16.mxu0 0
  %1199 = vmatpush1.bf16.msra.mxu0 0
  %1200 = vmatprep.subr.bf16.mxu0 0
  %1201 = vmatpush1.bf16.msra.mxu0 0
  %1202 = vmatprep.subr.bf16.mxu0 0
  %1203 = vmatpush1.bf16.msra.mxu0 0
  %1204 = vmatprep.subr.bf16.mxu0 0
  %1205 = vmatpush1.bf16.msra.mxu0 0
  %1206 = vmatprep.subr.bf16.mxu0 0
  %1207 = vmatpush1.bf16.msra.mxu0 0
  %1208 = vmatprep.subr.bf16.mxu0 0
  %1209 = vmatpush1.bf16.msra.mxu0 0
  %1210 = vmatprep.subr.bf16.mxu0 0
  %1211 = vmatpush1.bf16.msra.mxu0 0
  %1212 = vmatprep.subr.bf16.mxu0 0
  %1213 = vmatpush1.bf16.msra.mxu0 0
  %1214 = vmatprep.mubr.bf16.mxu0 0
  %1215 = vmatmul.mubr.bf16.gmra.mrb[0].mxu0 %v989
  %v1216 = vpop.f32.mrb[0].mxu0
  %v1217 = vadd.f32 0.0, %v1216
  %v1218 = vpop.f32.mrb[0].mxu0
  %v1219 = vadd.f32 0.0, %v1218
  %v1220 = vpop.f32.mrb[0].mxu0
  %v1221 = vpop.f32.mrb[0].mxu0
  %1222 = vdwg.mxu0
  %1223 = vmatprep.subr.bf16.mxu0 %v1121
  %1224 = vmatpush1.bf16.msra.mxu0 %v1120
  %1225 = vmatprep.subr.bf16.mxu0 %v1125
  %1226 = vmatpush1.bf16.msra.mxu0 %v1124
  %1227 = vmatprep.subr.bf16.mxu0 %v1129
  %1228 = vmatpush1.bf16.msra.mxu0 %v1128
  %1229 = vmatprep.subr.bf16.mxu0 %v1133
  %1230 = vmatpush1.bf16.msra.mxu0 %v1132
  %1231 = vmatprep.subr.bf16.mxu0 %v1137
  %1232 = vmatpush1.bf16.msra.mxu0 %v1136
  %1233 = vmatprep.subr.bf16.mxu0 %v1141
  %1234 = vmatpush1.bf16.msra.mxu0 %v1140
  %1235 = vmatprep.subr.bf16.mxu0 %v1145
  %1236 = vmatpush1.bf16.msra.mxu0 %v1144
  %1237 = vmatprep.subr.bf16.mxu0 %v1149
  %1238 = vmatpush1.bf16.msra.mxu0 %v1148
  %1239 = vmatprep.subr.bf16.mxu0 0
  %1240 = vmatpush1.bf16.msra.mxu0 0
  %1241 = vmatprep.subr.bf16.mxu0 0
  %1242 = vmatpush1.bf16.msra.mxu0 0
  %1243 = vmatprep.subr.bf16.mxu0 0
  %1244 = vmatpush1.bf16.msra.mxu0 0
  %1245 = vmatprep.subr.bf16.mxu0 0
  %1246 = vmatpush1.bf16.msra.mxu0 0
  %1247 = vmatprep.subr.bf16.mxu0 0
  %1248 = vmatpush1.bf16.msra.mxu0 0
  %1249 = vmatprep.subr.bf16.mxu0 0
  %1250 = vmatpush1.bf16.msra.mxu0 0
  %1251 = vmatprep.subr.bf16.mxu0 0
  %1252 = vmatpush1.bf16.msra.mxu0 0
  %1253 = vmatprep.subr.bf16.mxu0 0
  %1254 = vmatpush1.bf16.msra.mxu0 0
  %1255 = vmatprep.mubr.bf16.mxu0 0
  %1256 = vmatmul.mubr.bf16.gmra.mrb[0].mxu0 %v989
  %v1257 = vpop.f32.mrb[0].mxu0
  %v1258 = vadd.f32 0.0, %v1257
  %v1259 = vpop.f32.mrb[0].mxu0
  %v1260 = vadd.f32 0.0, %v1259
  %v1261 = vpop.f32.mrb[0].mxu0
  %v1262 = vpop.f32.mrb[0].mxu0
  %1263 = vdwg.mxu0
  %v1264 = vadd.f32 %v984, %v1217
  %v1265 = vadd.f32 %v985, %v1219
  %v1266 = vadd.f32 %v986, %v1258
  %v1267 = vadd.f32 %v987, %v1260
  %v1268 = vxor.u32 %v1264, 2147483648
  %v1269 = vmul.f32 %v1268, 1.442695
  %v1270 = vpow.pop %v1269
  %v1271 = vadd.f32 %v1270, 1.0
  %v1272 = vrcp.pop %v1271
  %v1273 = vmul.f32 1.0, %v1272
  %v1274 = vxor.u32 %v1265, 2147483648
  %v1275 = vmul.f32 %v1274, 1.442695
  %v1276 = vpow.pop %v1275
  %v1277 = vadd.f32 %v1276, 1.0
  %v1278 = vrcp.pop %v1277
  %v1279 = vmul.f32 1.0, %v1278
  %v1280 = vtanh.pop %v1266
  %v1281 = vxor.u32 %v1267, 2147483648
  %v1282 = vmul.f32 %v1281, 1.442695
  %v1283 = vpow.pop %v1282
  %v1284 = vadd.f32 %v1283, 1.0
  %v1285 = vrcp.pop %v1284
  %v1286 = vmul.f32 1.0, %v1285
  %v1287 = vld [vmem:[#allocation3] sm:$0xff]
  %v1288 = vmul.f32 %v1279, %v1287
  %v1289 = vmul.f32 %v1273, %v1280
  %v1290 = vadd.f32 %v1288, %v1289
  %v1291 = vtanh.pop %v1290
  %v1292 = vmul.f32 %v1286, %v1291
  %1293 = vst [vmem:[#allocation3] sm:$0xff] %v1290
  %1294 = vst [vmem:[#allocation2] sm:$0xff] %v1292
  %s1295 = scalar_lea.vmem %s1, 24
  %v1296 = vld [vmem:[%s1295] sm:$0xff]
  %v1297 = vmul.f32 %v1292, %v1296
  %v1298 = vpack.c.bf16 %v1297, %v1297
  %s1299 = scalar_lea.vmem [#allocation4], 12
  %1300 = vst [vmem:[%s1299] sm:$0xf] %v1298
  %s1301 = scalar_lea.vmem %s0, 128
  %v1302 = vld [vmem:[%s1301] sm:$0xff]
  %v1303 = vld [vmem:[%s1301 + $0x8] sm:$0xff]
  %v1304 = vld [vmem:[%s1301 + $0x10] sm:$0xff]
  %v1305 = vld [vmem:[%s1301 + $0x18] sm:$0xff]
  %v1306 = vld [vmem:[#allocation2] sm:$0xff]
  %v1307 = vpack.c.bf16 %v1306, %v1306
  %v1308 = vld [vmem:[%s2] sm:$0xff]
  %v1309 = vld [vmem:[%s2 + $0x8] sm:$0xff]
  %v1310 = vld [vmem:[%s2 + $0x10] sm:$0xff]
  %v1311 = vld [vmem:[%s2 + $0x18] sm:$0xff]
  %v1312 = vld [vmem:[%s2 + $0x20] sm:$0xff]
  %v1313 = vld [vmem:[%s2 + $0x28] sm:$0xff]
  %v1314 = vld [vmem:[%s2 + $0x30] sm:$0xff]
  %v1315 = vld [vmem:[%s2 + $0x38] sm:$0xff]
  %v1316 = vld [vmem:[%s2 + $0x40] sm:$0xff]
  %v1317 = vld [vmem:[%s2 + $0x48] sm:$0xff]
  %v1318 = vld [vmem:[%s2 + $0x50] sm:$0xff]
  %v1319 = vld [vmem:[%s2 + $0x58] sm:$0xff]
  %v1320 = vld [vmem:[%s2 + $0x60] sm:$0xff]
  %v1321 = vld [vmem:[%s2 + $0x68] sm:$0xff]
  %v1322 = vld [vmem:[%s2 + $0x70] sm:$0xff]
  %v1323 = vld [vmem:[%s2 + $0x78] sm:$0xff]
  %v1324 = vld [vmem:[%s2 + $0x80] sm:$0xff]
  %v1325 = vld [vmem:[%s2 + $0x88] sm:$0xff]
  %v1326 = vld [vmem:[%s2 + $0x90] sm:$0xff]
  %v1327 = vld [vmem:[%s2 + $0x98] sm:$0xff]
  %v1328 = vld [vmem:[%s2 + $0xa0] sm:$0xff]
  %v1329 = vld [vmem:[%s2 + $0xa8] sm:$0xff]
  %v1330 = vld [vmem:[%s2 + $0xb0] sm:$0xff]
  %v1331 = vld [vmem:[%s2 + $0xb8] sm:$0xff]
  %v1332 = vld [vmem:[%s2 + $0xc0] sm:$0xff]
  %v1333 = vld [vmem:[%s2 + $0xc8] sm:$0xff]
  %v1334 = vld [vmem:[%s2 + $0xd0] sm:$0xff]
  %v1335 = vld [vmem:[%s2 + $0xd8] sm:$0xff]
  %v1336 = vld [vmem:[%s2 + $0xe0] sm:$0xff]
  %v1337 = vld [vmem:[%s2 + $0xe8] sm:$0xff]
  %v1338 = vld [vmem:[%s2 + $0xf0] sm:$0xff]
  %v1339 = vld [vmem:[%s2 + $0xf8] sm:$0xff]
  %v1372 = vunpack.c.l.b16 %v1308
  %v1373 = vunpack.c.h.b16 %v1308
  %v1374 = vunpack.c.l.b16 %v1309
  %v1375 = vunpack.c.h.b16 %v1309
  %v1376 = vunpack.c.l.b16 %v1310
  %v1377 = vunpack.c.h.b16 %v1310
  %v1378 = vunpack.c.l.b16 %v1311
  %v1379 = vunpack.c.h.b16 %v1311
  %v1380 = vunpack.c.l.b16 %v1312
  %v1381 = vunpack.c.h.b16 %v1312
  %v1382 = vunpack.c.l.b16 %v1313
  %v1383 = vunpack.c.h.b16 %v1313
  %v1384 = vunpack.c.l.b16 %v1314
  %v1385 = vunpack.c.h.b16 %v1314
  %v1386 = vunpack.c.l.b16 %v1315
  %v1387 = vunpack.c.h.b16 %v1315
  %v1388 = vunpack.c.l.b16 %v1316
  %v1389 = vunpack.c.h.b16 %v1316
  %v1390 = vunpack.c.l.b16 %v1317
  %v1391 = vunpack.c.h.b16 %v1317
  %v1392 = vunpack.c.l.b16 %v1318
  %v1393 = vunpack.c.h.b16 %v1318
  %v1394 = vunpack.c.l.b16 %v1319
  %v1395 = vunpack.c.h.b16 %v1319
  %v1396 = vunpack.c.l.b16 %v1320
  %v1397 = vunpack.c.h.b16 %v1320
  %v1398 = vunpack.c.l.b16 %v1321
  %v1399 = vunpack.c.h.b16 %v1321
  %v1400 = vunpack.c.l.b16 %v1322
  %v1401 = vunpack.c.h.b16 %v1322
  %v1402 = vunpack.c.l.b16 %v1323
  %v1403 = vunpack.c.h.b16 %v1323
  %v1404 = vunpack.c.l.b16 %v1324
  %v1405 = vunpack.c.h.b16 %v1324
  %v1406 = vunpack.c.l.b16 %v1325
  %v1407 = vunpack.c.h.b16 %v1325
  %v1408 = vunpack.c.l.b16 %v1326
  %v1409 = vunpack.c.h.b16 %v1326
  %v1410 = vunpack.c.l.b16 %v1327
  %v1411 = vunpack.c.h.b16 %v1327
  %v1412 = vunpack.c.l.b16 %v1328
  %v1413 = vunpack.c.h.b16 %v1328
  %v1414 = vunpack.c.l.b16 %v1329
  %v1415 = vunpack.c.h.b16 %v1329
  %v1416 = vunpack.c.l.b16 %v1330
  %v1417 = vunpack.c.h.b16 %v1330
  %v1418 = vunpack.c.l.b16 %v1331
  %v1419 = vunpack.c.h.b16 %v1331
  %v1420 = vunpack.c.l.b16 %v1332
  %v1421 = vunpack.c.h.b16 %v1332
  %v1422 = vunpack.c.l.b16 %v1333
  %v1423 = vunpack.c.h.b16 %v1333
  %v1424 = vunpack.c.l.b16 %v1334
  %v1425 = vunpack.c.h.b16 %v1334
  %v1426 = vunpack.c.l.b16 %v1335
  %v1427 = vunpack.c.h.b16 %v1335
  %v1428 = vunpack.c.l.b16 %v1336
  %v1429 = vunpack.c.h.b16 %v1336
  %v1430 = vunpack.c.l.b16 %v1337
  %v1431 = vunpack.c.h.b16 %v1337
  %v1432 = vunpack.c.l.b16 %v1338
  %v1433 = vunpack.c.h.b16 %v1338
  %v1434 = vunpack.c.l.b16 %v1339
  %v1435 = vunpack.c.h.b16 %v1339
  %v1436 = vpack.c.b16 %v1376, %v1372
  %v1437 = vpack.c.b16 %v1377, %v1373
  %v1438 = vpack.c.b16 %v1378, %v1374
  %v1439 = vpack.c.b16 %v1379, %v1375
  %v1440 = vpack.c.b16 %v1384, %v1380
  %v1441 = vpack.c.b16 %v1385, %v1381
  %v1442 = vpack.c.b16 %v1386, %v1382
  %v1443 = vpack.c.b16 %v1387, %v1383
  %v1444 = vpack.c.b16 %v1392, %v1388
  %v1445 = vpack.c.b16 %v1393, %v1389
  %v1446 = vpack.c.b16 %v1394, %v1390
  %v1447 = vpack.c.b16 %v1395, %v1391
  %v1448 = vpack.c.b16 %v1400, %v1396
  %v1449 = vpack.c.b16 %v1401, %v1397
  %v1450 = vpack.c.b16 %v1402, %v1398
  %v1451 = vpack.c.b16 %v1403, %v1399
  %v1452 = vpack.c.b16 %v1408, %v1404
  %v1453 = vpack.c.b16 %v1409, %v1405
  %v1454 = vpack.c.b16 %v1410, %v1406
  %v1455 = vpack.c.b16 %v1411, %v1407
  %v1456 = vpack.c.b16 %v1416, %v1412
  %v1457 = vpack.c.b16 %v1417, %v1413
  %v1458 = vpack.c.b16 %v1418, %v1414
  %v1459 = vpack.c.b16 %v1419, %v1415
  %v1460 = vpack.c.b16 %v1424, %v1420
  %v1461 = vpack.c.b16 %v1425, %v1421
  %v1462 = vpack.c.b16 %v1426, %v1422
  %v1463 = vpack.c.b16 %v1427, %v1423
  %v1464 = vpack.c.b16 %v1432, %v1428
  %v1465 = vpack.c.b16 %v1433, %v1429
  %v1466 = vpack.c.b16 %v1434, %v1430
  %v1467 = vpack.c.b16 %v1435, %v1431
  %1500 = vmatprep.subr.bf16.mxu0 %v1437
  %1501 = vmatpush1.bf16.msra.mxu0 %v1436
  %1502 = vmatprep.subr.bf16.mxu0 %v1441
  %1503 = vmatpush1.bf16.msra.mxu0 %v1440
  %1504 = vmatprep.subr.bf16.mxu0 %v1445
  %1505 = vmatpush1.bf16.msra.mxu0 %v1444
  %1506 = vmatprep.subr.bf16.mxu0 %v1449
  %1507 = vmatpush1.bf16.msra.mxu0 %v1448
  %1508 = vmatprep.subr.bf16.mxu0 %v1453
  %1509 = vmatpush1.bf16.msra.mxu0 %v1452
  %1510 = vmatprep.subr.bf16.mxu0 %v1457
  %1511 = vmatpush1.bf16.msra.mxu0 %v1456
  %1512 = vmatprep.subr.bf16.mxu0 %v1461
  %1513 = vmatpush1.bf16.msra.mxu0 %v1460
  %1514 = vmatprep.subr.bf16.mxu0 %v1465
  %1515 = vmatpush1.bf16.msra.mxu0 %v1464
  %1516 = vmatprep.subr.bf16.mxu0 0
  %1517 = vmatpush1.bf16.msra.mxu0 0
  %1518 = vmatprep.subr.bf16.mxu0 0
  %1519 = vmatpush1.bf16.msra.mxu0 0
  %1520 = vmatprep.subr.bf16.mxu0 0
  %1521 = vmatpush1.bf16.msra.mxu0 0
  %1522 = vmatprep.subr.bf16.mxu0 0
  %1523 = vmatpush1.bf16.msra.mxu0 0
  %1524 = vmatprep.subr.bf16.mxu0 0
  %1525 = vmatpush1.bf16.msra.mxu0 0
  %1526 = vmatprep.subr.bf16.mxu0 0
  %1527 = vmatpush1.bf16.msra.mxu0 0
  %1528 = vmatprep.subr.bf16.mxu0 0
  %1529 = vmatpush1.bf16.msra.mxu0 0
  %1530 = vmatprep.subr.bf16.mxu0 0
  %1531 = vmatpush1.bf16.msra.mxu0 0
  %1532 = vmatprep.mubr.bf16.mxu0 0
  %1533 = vmatmul.mubr.bf16.gmra.mrb[0].mxu0 %v1307
  %v1534 = vpop.f32.mrb[0].mxu0
  %v1535 = vadd.f32 0.0, %v1534
  %v1536 = vpop.f32.mrb[0].mxu0
  %v1537 = vadd.f32 0.0, %v1536
  %v1538 = vpop.f32.mrb[0].mxu0
  %v1539 = vpop.f32.mrb[0].mxu0
  %1540 = vdwg.mxu0
  %1541 = vmatprep.subr.bf16.mxu0 %v1439
  %1542 = vmatpush1.bf16.msra.mxu0 %v1438
  %1543 = vmatprep.subr.bf16.mxu0 %v1443
  %1544 = vmatpush1.bf16.msra.mxu0 %v1442
  %1545 = vmatprep.subr.bf16.mxu0 %v1447
  %1546 = vmatpush1.bf16.msra.mxu0 %v1446
  %1547 = vmatprep.subr.bf16.mxu0 %v1451
  %1548 = vmatpush1.bf16.msra.mxu0 %v1450
  %1549 = vmatprep.subr.bf16.mxu0 %v1455
  %1550 = vmatpush1.bf16.msra.mxu0 %v1454
  %1551 = vmatprep.subr.bf16.mxu0 %v1459
  %1552 = vmatpush1.bf16.msra.mxu0 %v1458
  %1553 = vmatprep.subr.bf16.mxu0 %v1463
  %1554 = vmatpush1.bf16.msra.mxu0 %v1462
  %1555 = vmatprep.subr.bf16.mxu0 %v1467
  %1556 = vmatpush1.bf16.msra.mxu0 %v1466
  %1557 = vmatprep.subr.bf16.mxu0 0
  %1558 = vmatpush1.bf16.msra.mxu0 0
  %1559 = vmatprep.subr.bf16.mxu0 0
  %1560 = vmatpush1.bf16.msra.mxu0 0
  %1561 = vmatprep.subr.bf16.mxu0 0
  %1562 = vmatpush1.bf16.msra.mxu0 0
  %1563 = vmatprep.subr.bf16.mxu0 0
  %1564 = vmatpush1.bf16.msra.mxu0 0
  %1565 = vmatprep.subr.bf16.mxu0 0
  %1566 = vmatpush1.bf16.msra.mxu0 0
  %1567 = vmatprep.subr.bf16.mxu0 0
  %1568 = vmatpush1.bf16.msra.mxu0 0
  %1569 = vmatprep.subr.bf16.mxu0 0
  %1570 = vmatpush1.bf16.msra.mxu0 0
  %1571 = vmatprep.subr.bf16.mxu0 0
  %1572 = vmatpush1.bf16.msra.mxu0 0
  %1573 = vmatprep.mubr.bf16.mxu0 0
  %1574 = vmatmul.mubr.bf16.gmra.mrb[0].mxu0 %v1307
  %v1575 = vpop.f32.mrb[0].mxu0
  %v1576 = vadd.f32 0.0, %v1575
  %v1577 = vpop.f32.mrb[0].mxu0
  %v1578 = vadd.f32 0.0, %v1577
  %v1579 = vpop.f32.mrb[0].mxu0
  %v1580 = vpop.f32.mrb[0].mxu0
  %1581 = vdwg.mxu0
  %v1582 = vadd.f32 %v1302, %v1535
  %v1583 = vadd.f32 %v1303, %v1537
  %v1584 = vadd.f32 %v1304, %v1576
  %v1585 = vadd.f32 %v1305, %v1578
  %v1586 = vxor.u32 %v1582, 2147483648
  %v1587 = vmul.f32 %v1586, 1.442695
  %v1588 = vpow.pop %v1587
  %v1589 = vadd.f32 %v1588, 1.0
  %v1590 = vrcp.pop %v1589
  %v1591 = vmul.f32 1.0, %v1590
  %v1592 = vxor.u32 %v1583, 2147483648
  %v1593 = vmul.f32 %v1592, 1.442695
  %v1594 = vpow.pop %v1593
  %v1595 = vadd.f32 %v1594, 1.0
  %v1596 = vrcp.pop %v1595
  %v1597 = vmul.f32 1.0, %v1596
  %v1598 = vtanh.pop %v1584
  %v1599 = vxor.u32 %v1585, 2147483648
  %v1600 = vmul.f32 %v1599, 1.442695
  %v1601 = vpow.pop %v1600
  %v1602 = vadd.f32 %v1601, 1.0
  %v1603 = vrcp.pop %v1602
  %v1604 = vmul.f32 1.0, %v1603
  %v1605 = vld [vmem:[#allocation3] sm:$0xff]
  %v1606 = vmul.f32 %v1597, %v1605
  %v1607 = vmul.f32 %v1591, %v1598
  %v1608 = vadd.f32 %v1606, %v1607
  %v1609 = vtanh.pop %v1608
  %v1610 = vmul.f32 %v1604, %v1609
  %1611 = vst [vmem:[#allocation3] sm:$0xff] %v1608
  %1612 = vst [vmem:[#allocation2] sm:$0xff] %v1610
  %s1613 = scalar_lea.vmem %s1, 32
  %v1614 = vld [vmem:[%s1613] sm:$0xff]
  %v1615 = vmul.f32 %v1610, %v1614
  %v1616 = vpack.c.bf16 %v1615, %v1615
  %s1617 = scalar_lea.vmem [#allocation4], 16
  %1618 = vst [vmem:[%s1617] sm:$0xf] %v1616
  %s1619 = scalar_lea.vmem %s0, 160
  %v1620 = vld [vmem:[%s1619] sm:$0xff]
  %v1621 = vld [vmem:[%s1619 + $0x8] sm:$0xff]
  %v1622 = vld [vmem:[%s1619 + $0x10] sm:$0xff]
  %v1623 = vld [vmem:[%s1619 + $0x18] sm:$0xff]
  %v1624 = vld [vmem:[#allocation2] sm:$0xff]
  %v1625 = vpack.c.bf16 %v1624, %v1624
  %v1626 = vld [vmem:[%s2] sm:$0xff]
  %v1627 = vld [vmem:[%s2 + $0x8] sm:$0xff]
  %v1628 = vld [vmem:[%s2 + $0x10] sm:$0xff]
  %v1629 = vld [vmem:[%s2 + $0x18] sm:$0xff]
  %v1630 = vld [vmem:[%s2 + $0x20] sm:$0xff]
  %v1631 = vld [vmem:[%s2 + $0x28] sm:$0xff]
  %v1632 = vld [vmem:[%s2 + $0x30] sm:$0xff]
  %v1633 = vld [vmem:[%s2 + $0x38] sm:$0xff]
  %v1634 = vld [vmem:[%s2 + $0x40] sm:$0xff]
  %v1635 = vld [vmem:[%s2 + $0x48] sm:$0xff]
  %v1636 = vld [vmem:[%s2 + $0x50] sm:$0xff]
  %v1637 = vld [vmem:[%s2 + $0x58] sm:$0xff]
  %v1638 = vld [vmem:[%s2 + $0x60] sm:$0xff]
  %v1639 = vld [vmem:[%s2 + $0x68] sm:$0xff]
  %v1640 = vld [vmem:[%s2 + $0x70] sm:$0xff]
  %v1641 = vld [vmem:[%s2 + $0x78] sm:$0xff]
  %v1642 = vld [vmem:[%s2 + $0x80] sm:$0xff]
  %v1643 = vld [vmem:[%s2 + $0x88] sm:$0xff]
  %v1644 = vld [vmem:[%s2 + $0x90] sm:$0xff]
  %v1645 = vld [vmem:[%s2 + $0x98] sm:$0xff]
  %v1646 = vld [vmem:[%s2 + $0xa0] sm:$0xff]
  %v1647 = vld [vmem:[%s2 + $0xa8] sm:$0xff]
  %v1648 = vld [vmem:[%s2 + $0xb0] sm:$0xff]
  %v1649 = vld [vmem:[%s2 + $0xb8] sm:$0xff]
  %v1650 = vld [vmem:[%s2 + $0xc0] sm:$0xff]
  %v1651 = vld [vmem:[%s2 + $0xc8] sm:$0xff]
  %v1652 = vld [vmem:[%s2 + $0xd0] sm:$0xff]
  %v1653 = vld [vmem:[%s2 + $0xd8] sm:$0xff]
  %v1654 = vld [vmem:[%s2 + $0xe0] sm:$0xff]
  %v1655 = vld [vmem:[%s2 + $0xe8] sm:$0xff]
  %v1656 = vld [vmem:[%s2 + $0xf0] sm:$0xff]
  %v1657 = vld [vmem:[%s2 + $0xf8] sm:$0xff]
  %v1690 = vunpack.c.l.b16 %v1626
  %v1691 = vunpack.c.h.b16 %v1626
  %v1692 = vunpack.c.l.b16 %v1627
  %v1693 = vunpack.c.h.b16 %v1627
  %v1694 = vunpack.c.l.b16 %v1628
  %v1695 = vunpack.c.h.b16 %v1628
  %v1696 = vunpack.c.l.b16 %v1629
  %v1697 = vunpack.c.h.b16 %v1629
  %v1698 = vunpack.c.l.b16 %v1630
  %v1699 = vunpack.c.h.b16 %v1630
  %v1700 = vunpack.c.l.b16 %v1631
  %v1701 = vunpack.c.h.b16 %v1631
  %v1702 = vunpack.c.l.b16 %v1632
  %v1703 = vunpack.c.h.b16 %v1632
  %v1704 = vunpack.c.l.b16 %v1633
  %v1705 = vunpack.c.h.b16 %v1633
  %v1706 = vunpack.c.l.b16 %v1634
  %v1707 = vunpack.c.h.b16 %v1634
  %v1708 = vunpack.c.l.b16 %v1635
  %v1709 = vunpack.c.h.b16 %v1635
  %v1710 = vunpack.c.l.b16 %v1636
  %v1711 = vunpack.c.h.b16 %v1636
  %v1712 = vunpack.c.l.b16 %v1637
  %v1713 = vunpack.c.h.b16 %v1637
  %v1714 = vunpack.c.l.b16 %v1638
  %v1715 = vunpack.c.h.b16 %v1638
  %v1716 = vunpack.c.l.b16 %v1639
  %v1717 = vunpack.c.h.b16 %v1639
  %v1718 = vunpack.c.l.b16 %v1640
  %v1719 = vunpack.c.h.b16 %v1640
  %v1720 = vunpack.c.l.b16 %v1641
  %v1721 = vunpack.c.h.b16 %v1641
  %v1722 = vunpack.c.l.b16 %v1642
  %v1723 = vunpack.c.h.b16 %v1642
  %v1724 = vunpack.c.l.b16 %v1643
  %v1725 = vunpack.c.h.b16 %v1643
  %v1726 = vunpack.c.l.b16 %v1644
  %v1727 = vunpack.c.h.b16 %v1644
  %v1728 = vunpack.c.l.b16 %v1645
  %v1729 = vunpack.c.h.b16 %v1645
  %v1730 = vunpack.c.l.b16 %v1646
  %v1731 = vunpack.c.h.b16 %v1646
  %v1732 = vunpack.c.l.b16 %v1647
  %v1733 = vunpack.c.h.b16 %v1647
  %v1734 = vunpack.c.l.b16 %v1648
  %v1735 = vunpack.c.h.b16 %v1648
  %v1736 = vunpack.c.l.b16 %v1649
  %v1737 = vunpack.c.h.b16 %v1649
  %v1738 = vunpack.c.l.b16 %v1650
  %v1739 = vunpack.c.h.b16 %v1650
  %v1740 = vunpack.c.l.b16 %v1651
  %v1741 = vunpack.c.h.b16 %v1651
  %v1742 = vunpack.c.l.b16 %v1652
  %v1743 = vunpack.c.h.b16 %v1652
  %v1744 = vunpack.c.l.b16 %v1653
  %v1745 = vunpack.c.h.b16 %v1653
  %v1746 = vunpack.c.l.b16 %v1654
  %v1747 = vunpack.c.h.b16 %v1654
  %v1748 = vunpack.c.l.b16 %v1655
  %v1749 = vunpack.c.h.b16 %v1655
  %v1750 = vunpack.c.l.b16 %v1656
  %v1751 = vunpack.c.h.b16 %v1656
  %v1752 = vunpack.c.l.b16 %v1657
  %v1753 = vunpack.c.h.b16 %v1657
  %v1754 = vpack.c.b16 %v1694, %v1690
  %v1755 = vpack.c.b16 %v1695, %v1691
  %v1756 = vpack.c.b16 %v1696, %v1692
  %v1757 = vpack.c.b16 %v1697, %v1693
  %v1758 = vpack.c.b16 %v1702, %v1698
  %v1759 = vpack.c.b16 %v1703, %v1699
  %v1760 = vpack.c.b16 %v1704, %v1700
  %v1761 = vpack.c.b16 %v1705, %v1701
  %v1762 = vpack.c.b16 %v1710, %v1706
  %v1763 = vpack.c.b16 %v1711, %v1707
  %v1764 = vpack.c.b16 %v1712, %v1708
  %v1765 = vpack.c.b16 %v1713, %v1709
  %v1766 = vpack.c.b16 %v1718, %v1714
  %v1767 = vpack.c.b16 %v1719, %v1715
  %v1768 = vpack.c.b16 %v1720, %v1716
  %v1769 = vpack.c.b16 %v1721, %v1717
  %v1770 = vpack.c.b16 %v1726, %v1722
  %v1771 = vpack.c.b16 %v1727, %v1723
  %v1772 = vpack.c.b16 %v1728, %v1724
  %v1773 = vpack.c.b16 %v1729, %v1725
  %v1774 = vpack.c.b16 %v1734, %v1730
  %v1775 = vpack.c.b16 %v1735, %v1731
  %v1776 = vpack.c.b16 %v1736, %v1732
  %v1777 = vpack.c.b16 %v1737, %v1733
  %v1778 = vpack.c.b16 %v1742, %v1738
  %v1779 = vpack.c.b16 %v1743, %v1739
  %v1780 = vpack.c.b16 %v1744, %v1740
  %v1781 = vpack.c.b16 %v1745, %v1741
  %v1782 = vpack.c.b16 %v1750, %v1746
  %v1783 = vpack.c.b16 %v1751, %v1747
  %v1784 = vpack.c.b16 %v1752, %v1748
  %v1785 = vpack.c.b16 %v1753, %v1749
  %1818 = vmatprep.subr.bf16.mxu0 %v1755
  %1819 = vmatpush1.bf16.msra.mxu0 %v1754
  %1820 = vmatprep.subr.bf16.mxu0 %v1759
  %1821 = vmatpush1.bf16.msra.mxu0 %v1758
  %1822 = vmatprep.subr.bf16.mxu0 %v1763
  %1823 = vmatpush1.bf16.msra.mxu0 %v1762
  %1824 = vmatprep.subr.bf16.mxu0 %v1767
  %1825 = vmatpush1.bf16.msra.mxu0 %v1766
  %1826 = vmatprep.subr.bf16.mxu0 %v1771
  %1827 = vmatpush1.bf16.msra.mxu0 %v1770
  %1828 = vmatprep.subr.bf16.mxu0 %v1775
  %1829 = vmatpush1.bf16.msra.mxu0 %v1774
  %1830 = vmatprep.subr.bf16.mxu0 %v1779
  %1831 = vmatpush1.bf16.msra.mxu0 %v1778
  %1832 = vmatprep.subr.bf16.mxu0 %v1783
  %1833 = vmatpush1.bf16.msra.mxu0 %v1782
  %1834 = vmatprep.subr.bf16.mxu0 0
  %1835 = vmatpush1.bf16.msra.mxu0 0
  %1836 = vmatprep.subr.bf16.mxu0 0
  %1837 = vmatpush1.bf16.msra.mxu0 0
  %1838 = vmatprep.subr.bf16.mxu0 0
  %1839 = vmatpush1.bf16.msra.mxu0 0
  %1840 = vmatprep.subr.bf16.mxu0 0
  %1841 = vmatpush1.bf16.msra.mxu0 0
  %1842 = vmatprep.subr.bf16.mxu0 0
  %1843 = vmatpush1.bf16.msra.mxu0 0
  %1844 = vmatprep.subr.bf16.mxu0 0
  %1845 = vmatpush1.bf16.msra.mxu0 0
  %1846 = vmatprep.subr.bf16.mxu0 0
  %1847 = vmatpush1.bf16.msra.mxu0 0
  %1848 = vmatprep.subr.bf16.mxu0 0
  %1849 = vmatpush1.bf16.msra.mxu0 0
  %1850 = vmatprep.mubr.bf16.mxu0 0
  %1851 = vmatmul.mubr.bf16.gmra.mrb[0].mxu0 %v1625
  %v1852 = vpop.f32.mrb[0].mxu0
  %v1853 = vadd.f32 0.0, %v1852
  %v1854 = vpop.f32.mrb[0].mxu0
  %v1855 = vadd.f32 0.0, %v1854
  %v1856 = vpop.f32.mrb[0].mxu0
  %v1857 = vpop.f32.mrb[0].mxu0
  %1858 = vdwg.mxu0
  %1859 = vmatprep.subr.bf16.mxu0 %v1757
  %1860 = vmatpush1.bf16.msra.mxu0 %v1756
  %1861 = vmatprep.subr.bf16.mxu0 %v1761
  %1862 = vmatpush1.bf16.msra.mxu0 %v1760
  %1863 = vmatprep.subr.bf16.mxu0 %v1765
  %1864 = vmatpush1.bf16.msra.mxu0 %v1764
  %1865 = vmatprep.subr.bf16.mxu0 %v1769
  %1866 = vmatpush1.bf16.msra.mxu0 %v1768
  %1867 = vmatprep.subr.bf16.mxu0 %v1773
  %1868 = vmatpush1.bf16.msra.mxu0 %v1772
  %1869 = vmatprep.subr.bf16.mxu0 %v1777
  %1870 = vmatpush1.bf16.msra.mxu0 %v1776
  %1871 = vmatprep.subr.bf16.mxu0 %v1781
  %1872 = vmatpush1.bf16.msra.mxu0 %v1780
  %1873 = vmatprep.subr.bf16.mxu0 %v1785
  %1874 = vmatpush1.bf16.msra.mxu0 %v1784
  %1875 = vmatprep.subr.bf16.mxu0 0
  %1876 = vmatpush1.bf16.msra.mxu0 0
  %1877 = vmatprep.subr.bf16.mxu0 0
  %1878 = vmatpush1.bf16.msra.mxu0 0
  %1879 = vmatprep.subr.bf16.mxu0 0
  %1880 = vmatpush1.bf16.msra.mxu0 0
  %1881 = vmatprep.subr.bf16.mxu0 0
  %1882 = vmatpush1.bf16.msra.mxu0 0
  %1883 = vmatprep.subr.bf16.mxu0 0
  %1884 = vmatpush1.bf16.msra.mxu0 0
  %1885 = vmatprep.subr.bf16.mxu0 0
  %1886 = vmatpush1.bf16.msra.mxu0 0
  %1887 = vmatprep.subr.bf16.mxu0 0
  %1888 = vmatpush1.bf16.msra.mxu0 0
  %1889 = vmatprep.subr.bf16.mxu0 0
  %1890 = vmatpush1.bf16.msra.mxu0 0
  %1891 = vmatprep.mubr.bf16.mxu0 0
  %1892 = vmatmul.mubr.bf16.gmra.mrb[0].mxu0 %v1625
  %v1893 = vpop.f32.mrb[0].mxu0
  %v1894 = vadd.f32 0.0, %v1893
  %v1895 = vpop.f32.mrb[0].mxu0
  %v1896 = vadd.f32 0.0, %v1895
  %v1897 = vpop.f32.mrb[0].mxu0
  %v1898 = vpop.f32.mrb[0].mxu0
  %1899 = vdwg.mxu0
  %v1900 = vadd.f32 %v1620, %v1853
  %v1901 = vadd.f32 %v1621, %v1855
  %v1902 = vadd.f32 %v1622, %v1894
  %v1903 = vadd.f32 %v1623, %v1896
  %v1904 = vxor.u32 %v1900, 2147483648
  %v1905 = vmul.f32 %v1904, 1.442695
  %v1906 = vpow.pop %v1905
  %v1907 = vadd.f32 %v1906, 1.0
  %v1908 = vrcp.pop %v1907
  %v1909 = vmul.f32 1.0, %v1908
  %v1910 = vxor.u32 %v1901, 2147483648
  %v1911 = vmul.f32 %v1910, 1.442695
  %v1912 = vpow.pop %v1911
  %v1913 = vadd.f32 %v1912, 1.0
  %v1914 = vrcp.pop %v1913
  %v1915 = vmul.f32 1.0, %v1914
  %v1916 = vtanh.pop %v1902
  %v1917 = vxor.u32 %v1903, 2147483648
  %v1918 = vmul.f32 %v1917, 1.442695
  %v1919 = vpow.pop %v1918
  %v1920 = vadd.f32 %v1919, 1.0
  %v1921 = vrcp.pop %v1920
  %v1922 = vmul.f32 1.0, %v1921
  %v1923 = vld [vmem:[#allocation3] sm:$0xff]
  %v1924 = vmul.f32 %v1915, %v1923
  %v1925 = vmul.f32 %v1909, %v1916
  %v1926 = vadd.f32 %v1924, %v1925
  %v1927 = vtanh.pop %v1926
  %v1928 = vmul.f32 %v1922, %v1927
  %1929 = vst [vmem:[#allocation3] sm:$0xff] %v1926
  %1930 = vst [vmem:[#allocation2] sm:$0xff] %v1928
  %s1931 = scalar_lea.vmem %s1, 40
  %v1932 = vld [vmem:[%s1931] sm:$0xff]
  %v1933 = vmul.f32 %v1928, %v1932
  %v1934 = vpack.c.bf16 %v1933, %v1933
  %s1935 = scalar_lea.vmem [#allocation4], 20
  %1936 = vst [vmem:[%s1935] sm:$0xf] %v1934
  %s1937 = scalar_lea.vmem %s0, 192
  %v1938 = vld [vmem:[%s1937] sm:$0xff]
  %v1939 = vld [vmem:[%s1937 + $0x8] sm:$0xff]
  %v1940 = vld [vmem:[%s1937 + $0x10] sm:$0xff]
  %v1941 = vld [vmem:[%s1937 + $0x18] sm:$0xff]
  %v1942 = vld [vmem:[#allocation2] sm:$0xff]
  %v1943 = vpack.c.bf16 %v1942, %v1942
  %v1944 = vld [vmem:[%s2] sm:$0xff]
  %v1945 = vld [vmem:[%s2 + $0x8] sm:$0xff]
  %v1946 = vld [vmem:[%s2 + $0x10] sm:$0xff]
  %v1947 = vld [vmem:[%s2 + $0x18] sm:$0xff]
  %v1948 = vld [vmem:[%s2 + $0x20] sm:$0xff]
  %v1949 = vld [vmem:[%s2 + $0x28] sm:$0xff]
  %v1950 = vld [vmem:[%s2 + $0x30] sm:$0xff]
  %v1951 = vld [vmem:[%s2 + $0x38] sm:$0xff]
  %v1952 = vld [vmem:[%s2 + $0x40] sm:$0xff]
  %v1953 = vld [vmem:[%s2 + $0x48] sm:$0xff]
  %v1954 = vld [vmem:[%s2 + $0x50] sm:$0xff]
  %v1955 = vld [vmem:[%s2 + $0x58] sm:$0xff]
  %v1956 = vld [vmem:[%s2 + $0x60] sm:$0xff]
  %v1957 = vld [vmem:[%s2 + $0x68] sm:$0xff]
  %v1958 = vld [vmem:[%s2 + $0x70] sm:$0xff]
  %v1959 = vld [vmem:[%s2 + $0x78] sm:$0xff]
  %v1960 = vld [vmem:[%s2 + $0x80] sm:$0xff]
  %v1961 = vld [vmem:[%s2 + $0x88] sm:$0xff]
  %v1962 = vld [vmem:[%s2 + $0x90] sm:$0xff]
  %v1963 = vld [vmem:[%s2 + $0x98] sm:$0xff]
  %v1964 = vld [vmem:[%s2 + $0xa0] sm:$0xff]
  %v1965 = vld [vmem:[%s2 + $0xa8] sm:$0xff]
  %v1966 = vld [vmem:[%s2 + $0xb0] sm:$0xff]
  %v1967 = vld [vmem:[%s2 + $0xb8] sm:$0xff]
  %v1968 = vld [vmem:[%s2 + $0xc0] sm:$0xff]
  %v1969 = vld [vmem:[%s2 + $0xc8] sm:$0xff]
  %v1970 = vld [vmem:[%s2 + $0xd0] sm:$0xff]
  %v1971 = vld [vmem:[%s2 + $0xd8] sm:$0xff]
  %v1972 = vld [vmem:[%s2 + $0xe0] sm:$0xff]
  %v1973 = vld [vmem:[%s2 + $0xe8] sm:$0xff]
  %v1974 = vld [vmem:[%s2 + $0xf0] sm:$0xff]
  %v1975 = vld [vmem:[%s2 + $0xf8] sm:$0xff]
  %v2008 = vunpack.c.l.b16 %v1944
  %v2009 = vunpack.c.h.b16 %v1944
  %v2010 = vunpack.c.l.b16 %v1945
  %v2011 = vunpack.c.h.b16 %v1945
  %v2012 = vunpack.c.l.b16 %v1946
  %v2013 = vunpack.c.h.b16 %v1946
  %v2014 = vunpack.c.l.b16 %v1947
  %v2015 = vunpack.c.h.b16 %v1947
  %v2016 = vunpack.c.l.b16 %v1948
  %v2017 = vunpack.c.h.b16 %v1948
  %v2018 = vunpack.c.l.b16 %v1949
  %v2019 = vunpack.c.h.b16 %v1949
  %v2020 = vunpack.c.l.b16 %v1950
  %v2021 = vunpack.c.h.b16 %v1950
  %v2022 = vunpack.c.l.b16 %v1951
  %v2023 = vunpack.c.h.b16 %v1951
  %v2024 = vunpack.c.l.b16 %v1952
  %v2025 = vunpack.c.h.b16 %v1952
  %v2026 = vunpack.c.l.b16 %v1953
  %v2027 = vunpack.c.h.b16 %v1953
  %v2028 = vunpack.c.l.b16 %v1954
  %v2029 = vunpack.c.h.b16 %v1954
  %v2030 = vunpack.c.l.b16 %v1955
  %v2031 = vunpack.c.h.b16 %v1955
  %v2032 = vunpack.c.l.b16 %v1956
  %v2033 = vunpack.c.h.b16 %v1956
  %v2034 = vunpack.c.l.b16 %v1957
  %v2035 = vunpack.c.h.b16 %v1957
  %v2036 = vunpack.c.l.b16 %v1958
  %v2037 = vunpack.c.h.b16 %v1958
  %v2038 = vunpack.c.l.b16 %v1959
  %v2039 = vunpack.c.h.b16 %v1959
  %v2040 = vunpack.c.l.b16 %v1960
  %v2041 = vunpack.c.h.b16 %v1960
  %v2042 = vunpack.c.l.b16 %v1961
  %v2043 = vunpack.c.h.b16 %v1961
  %v2044 = vunpack.c.l.b16 %v1962
  %v2045 = vunpack.c.h.b16 %v1962
  %v2046 = vunpack.c.l.b16 %v1963
  %v2047 = vunpack.c.h.b16 %v1963
  %v2048 = vunpack.c.l.b16 %v1964
  %v2049 = vunpack.c.h.b16 %v1964
  %v2050 = vunpack.c.l.b16 %v1965
  %v2051 = vunpack.c.h.b16 %v1965
  %v2052 = vunpack.c.l.b16 %v1966
  %v2053 = vunpack.c.h.b16 %v1966
  %v2054 = vunpack.c.l.b16 %v1967
  %v2055 = vunpack.c.h.b16 %v1967
  %v2056 = vunpack.c.l.b16 %v1968
  %v2057 = vunpack.c.h.b16 %v1968
  %v2058 = vunpack.c.l.b16 %v1969
  %v2059 = vunpack.c.h.b16 %v1969
  %v2060 = vunpack.c.l.b16 %v1970
  %v2061 = vunpack.c.h.b16 %v1970
  %v2062 = vunpack.c.l.b16 %v1971
  %v2063 = vunpack.c.h.b16 %v1971
  %v2064 = vunpack.c.l.b16 %v1972
  %v2065 = vunpack.c.h.b16 %v1972
  %v2066 = vunpack.c.l.b16 %v1973
  %v2067 = vunpack.c.h.b16 %v1973
  %v2068 = vunpack.c.l.b16 %v1974
  %v2069 = vunpack.c.h.b16 %v1974
  %v2070 = vunpack.c.l.b16 %v1975
  %v2071 = vunpack.c.h.b16 %v1975
  %v2072 = vpack.c.b16 %v2012, %v2008
  %v2073 = vpack.c.b16 %v2013, %v2009
  %v2074 = vpack.c.b16 %v2014, %v2010
  %v2075 = vpack.c.b16 %v2015, %v2011
  %v2076 = vpack.c.b16 %v2020, %v2016
  %v2077 = vpack.c.b16 %v2021, %v2017
  %v2078 = vpack.c.b16 %v2022, %v2018
  %v2079 = vpack.c.b16 %v2023, %v2019
  %v2080 = vpack.c.b16 %v2028, %v2024
  %v2081 = vpack.c.b16 %v2029, %v2025
  %v2082 = vpack.c.b16 %v2030, %v2026
  %v2083 = vpack.c.b16 %v2031, %v2027
  %v2084 = vpack.c.b16 %v2036, %v2032
  %v2085 = vpack.c.b16 %v2037, %v2033
  %v2086 = vpack.c.b16 %v2038, %v2034
  %v2087 = vpack.c.b16 %v2039, %v2035
  %v2088 = vpack.c.b16 %v2044, %v2040
  %v2089 = vpack.c.b16 %v2045, %v2041
  %v2090 = vpack.c.b16 %v2046, %v2042
  %v2091 = vpack.c.b16 %v2047, %v2043
  %v2092 = vpack.c.b16 %v2052, %v2048
  %v2093 = vpack.c.b16 %v2053, %v2049
  %v2094 = vpack.c.b16 %v2054, %v2050
  %v2095 = vpack.c.b16 %v2055, %v2051
  %v2096 = vpack.c.b16 %v2060, %v2056
  %v2097 = vpack.c.b16 %v2061, %v2057
  %v2098 = vpack.c.b16 %v2062, %v2058
  %v2099 = vpack.c.b16 %v2063, %v2059
  %v2100 = vpack.c.b16 %v2068, %v2064
  %v2101 = vpack.c.b16 %v2069, %v2065
  %v2102 = vpack.c.b16 %v2070, %v2066
  %v2103 = vpack.c.b16 %v2071, %v2067
  %2136 = vmatprep.subr.bf16.mxu0 %v2073
  %2137 = vmatpush1.bf16.msra.mxu0 %v2072
  %2138 = vmatprep.subr.bf16.mxu0 %v2077
  %2139 = vmatpush1.bf16.msra.mxu0 %v2076
  %2140 = vmatprep.subr.bf16.mxu0 %v2081
  %2141 = vmatpush1.bf16.msra.mxu0 %v2080
  %2142 = vmatprep.subr.bf16.mxu0 %v2085
  %2143 = vmatpush1.bf16.msra.mxu0 %v2084
  %2144 = vmatprep.subr.bf16.mxu0 %v2089
  %2145 = vmatpush1.bf16.msra.mxu0 %v2088
  %2146 = vmatprep.subr.bf16.mxu0 %v2093
  %2147 = vmatpush1.bf16.msra.mxu0 %v2092
  %2148 = vmatprep.subr.bf16.mxu0 %v2097
  %2149 = vmatpush1.bf16.msra.mxu0 %v2096
  %2150 = vmatprep.subr.bf16.mxu0 %v2101
  %2151 = vmatpush1.bf16.msra.mxu0 %v2100
  %2152 = vmatprep.subr.bf16.mxu0 0
  %2153 = vmatpush1.bf16.msra.mxu0 0
  %2154 = vmatprep.subr.bf16.mxu0 0
  %2155 = vmatpush1.bf16.msra.mxu0 0
  %2156 = vmatprep.subr.bf16.mxu0 0
  %2157 = vmatpush1.bf16.msra.mxu0 0
  %2158 = vmatprep.subr.bf16.mxu0 0
  %2159 = vmatpush1.bf16.msra.mxu0 0
  %2160 = vmatprep.subr.bf16.mxu0 0
  %2161 = vmatpush1.bf16.msra.mxu0 0
  %2162 = vmatprep.subr.bf16.mxu0 0
  %2163 = vmatpush1.bf16.msra.mxu0 0
  %2164 = vmatprep.subr.bf16.mxu0 0
  %2165 = vmatpush1.bf16.msra.mxu0 0
  %2166 = vmatprep.subr.bf16.mxu0 0
  %2167 = vmatpush1.bf16.msra.mxu0 0
  %2168 = vmatprep.mubr.bf16.mxu0 0
  %2169 = vmatmul.mubr.bf16.gmra.mrb[0].mxu0 %v1943
  %v2170 = vpop.f32.mrb[0].mxu0
  %v2171 = vadd.f32 0.0, %v2170
  %v2172 = vpop.f32.mrb[0].mxu0
  %v2173 = vadd.f32 0.0, %v2172
  %v2174 = vpop.f32.mrb[0].mxu0
  %v2175 = vpop.f32.mrb[0].mxu0
  %2176 = vdwg.mxu0
  %2177 = vmatprep.subr.bf16.mxu0 %v2075
  %2178 = vmatpush1.bf16.msra.mxu0 %v2074
  %2179 = vmatprep.subr.bf16.mxu0 %v2079
  %2180 = vmatpush1.bf16.msra.mxu0 %v2078
  %2181 = vmatprep.subr.bf16.mxu0 %v2083
  %2182 = vmatpush1.bf16.msra.mxu0 %v2082
  %2183 = vmatprep.subr.bf16.mxu0 %v2087
  %2184 = vmatpush1.bf16.msra.mxu0 %v2086
  %2185 = vmatprep.subr.bf16.mxu0 %v2091
  %2186 = vmatpush1.bf16.msra.mxu0 %v2090
  %2187 = vmatprep.subr.bf16.mxu0 %v2095
  %2188 = vmatpush1.bf16.msra.mxu0 %v2094
  %2189 = vmatprep.subr.bf16.mxu0 %v2099
  %2190 = vmatpush1.bf16.msra.mxu0 %v2098
  %2191 = vmatprep.subr.bf16.mxu0 %v2103
  %2192 = vmatpush1.bf16.msra.mxu0 %v2102
  %2193 = vmatprep.subr.bf16.mxu0 0
  %2194 = vmatpush1.bf16.msra.mxu0 0
  %2195 = vmatprep.subr.bf16.mxu0 0
  %2196 = vmatpush1.bf16.msra.mxu0 0
  %2197 = vmatprep.subr.bf16.mxu0 0
  %2198 = vmatpush1.bf16.msra.mxu0 0
  %2199 = vmatprep.subr.bf16.mxu0 0
  %2200 = vmatpush1.bf16.msra.mxu0 0
  %2201 = vmatprep.subr.bf16.mxu0 0
  %2202 = vmatpush1.bf16.msra.mxu0 0
  %2203 = vmatprep.subr.bf16.mxu0 0
  %2204 = vmatpush1.bf16.msra.mxu0 0
  %2205 = vmatprep.subr.bf16.mxu0 0
  %2206 = vmatpush1.bf16.msra.mxu0 0
  %2207 = vmatprep.subr.bf16.mxu0 0
  %2208 = vmatpush1.bf16.msra.mxu0 0
  %2209 = vmatprep.mubr.bf16.mxu0 0
  %2210 = vmatmul.mubr.bf16.gmra.mrb[0].mxu0 %v1943
  %v2211 = vpop.f32.mrb[0].mxu0
  %v2212 = vadd.f32 0.0, %v2211
  %v2213 = vpop.f32.mrb[0].mxu0
  %v2214 = vadd.f32 0.0, %v2213
  %v2215 = vpop.f32.mrb[0].mxu0
  %v2216 = vpop.f32.mrb[0].mxu0
  %2217 = vdwg.mxu0
  %v2218 = vadd.f32 %v1938, %v2171
  %v2219 = vadd.f32 %v1939, %v2173
  %v2220 = vadd.f32 %v1940, %v2212
  %v2221 = vadd.f32 %v1941, %v2214
  %v2222 = vxor.u32 %v2218, 2147483648
  %v2223 = vmul.f32 %v2222, 1.442695
  %v2224 = vpow.pop %v2223
  %v2225 = vadd.f32 %v2224, 1.0
  %v2226 = vrcp.pop %v2225
  %v2227 = vmul.f32 1.0, %v2226
  %v2228 = vxor.u32 %v2219, 2147483648
  %v2229 = vmul.f32 %v2228, 1.442695
  %v2230 = vpow.pop %v2229
  %v2231 = vadd.f32 %v2230, 1.0
  %v2232 = vrcp.pop %v2231
  %v2233 = vmul.f32 1.0, %v2232
  %v2234 = vtanh.pop %v2220
  %v2235 = vxor.u32 %v2221, 2147483648
  %v2236 = vmul.f32 %v2235, 1.442695
  %v2237 = vpow.pop %v2236
  %v2238 = vadd.f32 %v2237, 1.0
  %v2239 = vrcp.pop %v2238
  %v2240 = vmul.f32 1.0, %v2239
  %v2241 = vld [vmem:[#allocation3] sm:$0xff]
  %v2242 = vmul.f32 %v2233, %v2241
  %v2243 = vmul.f32 %v2227, %v2234
  %v2244 = vadd.f32 %v2242, %v2243
  %v2245 = vtanh.pop %v2244
  %v2246 = vmul.f32 %v2240, %v2245
  %2247 = vst [vmem:[#allocation3] sm:$0xff] %v2244
  %2248 = vst [vmem:[#allocation2] sm:$0xff] %v2246
  %s2249 = scalar_lea.vmem %s1, 48
  %v2250 = vld [vmem:[%s2249] sm:$0xff]
  %v2251 = vmul.f32 %v2246, %v2250
  %v2252 = vpack.c.bf16 %v2251, %v2251
  %s2253 = scalar_lea.vmem [#allocation4], 24
  %2254 = vst [vmem:[%s2253] sm:$0xf] %v2252
  %s2255 = scalar_lea.vmem %s0, 224
  %v2256 = vld [vmem:[%s2255] sm:$0xff]
  %v2257 = vld [vmem:[%s2255 + $0x8] sm:$0xff]
  %v2258 = vld [vmem:[%s2255 + $0x10] sm:$0xff]
  %v2259 = vld [vmem:[%s2255 + $0x18] sm:$0xff]
  %v2260 = vld [vmem:[#allocation2] sm:$0xff]
  %v2261 = vpack.c.bf16 %v2260, %v2260
  %v2262 = vld [vmem:[%s2] sm:$0xff]
  %v2263 = vld [vmem:[%s2 + $0x8] sm:$0xff]
  %v2264 = vld [vmem:[%s2 + $0x10] sm:$0xff]
  %v2265 = vld [vmem:[%s2 + $0x18] sm:$0xff]
  %v2266 = vld [vmem:[%s2 + $0x20] sm:$0xff]
  %v2267 = vld [vmem:[%s2 + $0x28] sm:$0xff]
  %v2268 = vld [vmem:[%s2 + $0x30] sm:$0xff]
  %v2269 = vld [vmem:[%s2 + $0x38] sm:$0xff]
  %v2270 = vld [vmem:[%s2 + $0x40] sm:$0xff]
  %v2271 = vld [vmem:[%s2 + $0x48] sm:$0xff]
  %v2272 = vld [vmem:[%s2 + $0x50] sm:$0xff]
  %v2273 = vld [vmem:[%s2 + $0x58] sm:$0xff]
  %v2274 = vld [vmem:[%s2 + $0x60] sm:$0xff]
  %v2275 = vld [vmem:[%s2 + $0x68] sm:$0xff]
  %v2276 = vld [vmem:[%s2 + $0x70] sm:$0xff]
  %v2277 = vld [vmem:[%s2 + $0x78] sm:$0xff]
  %v2278 = vld [vmem:[%s2 + $0x80] sm:$0xff]
  %v2279 = vld [vmem:[%s2 + $0x88] sm:$0xff]
  %v2280 = vld [vmem:[%s2 + $0x90] sm:$0xff]
  %v2281 = vld [vmem:[%s2 + $0x98] sm:$0xff]
  %v2282 = vld [vmem:[%s2 + $0xa0] sm:$0xff]
  %v2283 = vld [vmem:[%s2 + $0xa8] sm:$0xff]
  %v2284 = vld [vmem:[%s2 + $0xb0] sm:$0xff]
  %v2285 = vld [vmem:[%s2 + $0xb8] sm:$0xff]
  %v2286 = vld [vmem:[%s2 + $0xc0] sm:$0xff]
  %v2287 = vld [vmem:[%s2 + $0xc8] sm:$0xff]
  %v2288 = vld [vmem:[%s2 + $0xd0] sm:$0xff]
  %v2289 = vld [vmem:[%s2 + $0xd8] sm:$0xff]
  %v2290 = vld [vmem:[%s2 + $0xe0] sm:$0xff]
  %v2291 = vld [vmem:[%s2 + $0xe8] sm:$0xff]
  %v2292 = vld [vmem:[%s2 + $0xf0] sm:$0xff]
  %v2293 = vld [vmem:[%s2 + $0xf8] sm:$0xff]
  %v2326 = vunpack.c.l.b16 %v2262
  %v2327 = vunpack.c.h.b16 %v2262
  %v2328 = vunpack.c.l.b16 %v2263
  %v2329 = vunpack.c.h.b16 %v2263
  %v2330 = vunpack.c.l.b16 %v2264
  %v2331 = vunpack.c.h.b16 %v2264
  %v2332 = vunpack.c.l.b16 %v2265
  %v2333 = vunpack.c.h.b16 %v2265
  %v2334 = vunpack.c.l.b16 %v2266
  %v2335 = vunpack.c.h.b16 %v2266
  %v2336 = vunpack.c.l.b16 %v2267
  %v2337 = vunpack.c.h.b16 %v2267
  %v2338 = vunpack.c.l.b16 %v2268
  %v2339 = vunpack.c.h.b16 %v2268
  %v2340 = vunpack.c.l.b16 %v2269
  %v2341 = vunpack.c.h.b16 %v2269
  %v2342 = vunpack.c.l.b16 %v2270
  %v2343 = vunpack.c.h.b16 %v2270
  %v2344 = vunpack.c.l.b16 %v2271
  %v2345 = vunpack.c.h.b16 %v2271
  %v2346 = vunpack.c.l.b16 %v2272
  %v2347 = vunpack.c.h.b16 %v2272
  %v2348 = vunpack.c.l.b16 %v2273
  %v2349 = vunpack.c.h.b16 %v2273
  %v2350 = vunpack.c.l.b16 %v2274
  %v2351 = vunpack.c.h.b16 %v2274
  %v2352 = vunpack.c.l.b16 %v2275
  %v2353 = vunpack.c.h.b16 %v2275
  %v2354 = vunpack.c.l.b16 %v2276
  %v2355 = vunpack.c.h.b16 %v2276
  %v2356 = vunpack.c.l.b16 %v2277
  %v2357 = vunpack.c.h.b16 %v2277
  %v2358 = vunpack.c.l.b16 %v2278
  %v2359 = vunpack.c.h.b16 %v2278
  %v2360 = vunpack.c.l.b16 %v2279
  %v2361 = vunpack.c.h.b16 %v2279
  %v2362 = vunpack.c.l.b16 %v2280
  %v2363 = vunpack.c.h.b16 %v2280
  %v2364 = vunpack.c.l.b16 %v2281
  %v2365 = vunpack.c.h.b16 %v2281
  %v2366 = vunpack.c.l.b16 %v2282
  %v2367 = vunpack.c.h.b16 %v2282
  %v2368 = vunpack.c.l.b16 %v2283
  %v2369 = vunpack.c.h.b16 %v2283
  %v2370 = vunpack.c.l.b16 %v2284
  %v2371 = vunpack.c.h.b16 %v2284
  %v2372 = vunpack.c.l.b16 %v2285
  %v2373 = vunpack.c.h.b16 %v2285
  %v2374 = vunpack.c.l.b16 %v2286
  %v2375 = vunpack.c.h.b16 %v2286
  %v2376 = vunpack.c.l.b16 %v2287
  %v2377 = vunpack.c.h.b16 %v2287
  %v2378 = vunpack.c.l.b16 %v2288
  %v2379 = vunpack.c.h.b16 %v2288
  %v2380 = vunpack.c.l.b16 %v2289
  %v2381 = vunpack.c.h.b16 %v2289
  %v2382 = vunpack.c.l.b16 %v2290
  %v2383 = vunpack.c.h.b16 %v2290
  %v2384 = vunpack.c.l.b16 %v2291
  %v2385 = vunpack.c.h.b16 %v2291
  %v2386 = vunpack.c.l.b16 %v2292
  %v2387 = vunpack.c.h.b16 %v2292
  %v2388 = vunpack.c.l.b16 %v2293
  %v2389 = vunpack.c.h.b16 %v2293
  %v2390 = vpack.c.b16 %v2330, %v2326
  %v2391 = vpack.c.b16 %v2331, %v2327
  %v2392 = vpack.c.b16 %v2332, %v2328
  %v2393 = vpack.c.b16 %v2333, %v2329
  %v2394 = vpack.c.b16 %v2338, %v2334
  %v2395 = vpack.c.b16 %v2339, %v2335
  %v2396 = vpack.c.b16 %v2340, %v2336
  %v2397 = vpack.c.b16 %v2341, %v2337
  %v2398 = vpack.c.b16 %v2346, %v2342
  %v2399 = vpack.c.b16 %v2347, %v2343
  %v2400 = vpack.c.b16 %v2348, %v2344
  %v2401 = vpack.c.b16 %v2349, %v2345
  %v2402 = vpack.c.b16 %v2354, %v2350
  %v2403 = vpack.c.b16 %v2355, %v2351
  %v2404 = vpack.c.b16 %v2356, %v2352
  %v2405 = vpack.c.b16 %v2357, %v2353
  %v2406 = vpack.c.b16 %v2362, %v2358
  %v2407 = vpack.c.b16 %v2363, %v2359
  %v2408 = vpack.c.b16 %v2364, %v2360
  %v2409 = vpack.c.b16 %v2365, %v2361
  %v2410 = vpack.c.b16 %v2370, %v2366
  %v2411 = vpack.c.b16 %v2371, %v2367
  %v2412 = vpack.c.b16 %v2372, %v2368
  %v2413 = vpack.c.b16 %v2373, %v2369
  %v2414 = vpack.c.b16 %v2378, %v2374
  %v2415 = vpack.c.b16 %v2379, %v2375
  %v2416 = vpack.c.b16 %v2380, %v2376
  %v2417 = vpack.c.b16 %v2381, %v2377
  %v2418 = vpack.c.b16 %v2386, %v2382
  %v2419 = vpack.c.b16 %v2387, %v2383
  %v2420 = vpack.c.b16 %v2388, %v2384
  %v2421 = vpack.c.b16 %v2389, %v2385
  %2454 = vmatprep.subr.bf16.mxu0 %v2391
  %2455 = vmatpush1.bf16.msra.mxu0 %v2390
  %2456 = vmatprep.subr.bf16.mxu0 %v2395
  %2457 = vmatpush1.bf16.msra.mxu0 %v2394
  %2458 = vmatprep.subr.bf16.mxu0 %v2399
  %2459 = vmatpush1.bf16.msra.mxu0 %v2398
  %2460 = vmatprep.subr.bf16.mxu0 %v2403
  %2461 = vmatpush1.bf16.msra.mxu0 %v2402
  %2462 = vmatprep.subr.bf16.mxu0 %v2407
  %2463 = vmatpush1.bf16.msra.mxu0 %v2406
  %2464 = vmatprep.subr.bf16.mxu0 %v2411
  %2465 = vmatpush1.bf16.msra.mxu0 %v2410
  %2466 = vmatprep.subr.bf16.mxu0 %v2415
  %2467 = vmatpush1.bf16.msra.mxu0 %v2414
  %2468 = vmatprep.subr.bf16.mxu0 %v2419
  %2469 = vmatpush1.bf16.msra.mxu0 %v2418
  %2470 = vmatprep.subr.bf16.mxu0 0
  %2471 = vmatpush1.bf16.msra.mxu0 0
  %2472 = vmatprep.subr.bf16.mxu0 0
  %2473 = vmatpush1.bf16.msra.mxu0 0
  %2474 = vmatprep.subr.bf16.mxu0 0
  %2475 = vmatpush1.bf16.msra.mxu0 0
  %2476 = vmatprep.subr.bf16.mxu0 0
  %2477 = vmatpush1.bf16.msra.mxu0 0
  %2478 = vmatprep.subr.bf16.mxu0 0
  %2479 = vmatpush1.bf16.msra.mxu0 0
  %2480 = vmatprep.subr.bf16.mxu0 0
  %2481 = vmatpush1.bf16.msra.mxu0 0
  %2482 = vmatprep.subr.bf16.mxu0 0
  %2483 = vmatpush1.bf16.msra.mxu0 0
  %2484 = vmatprep.subr.bf16.mxu0 0
  %2485 = vmatpush1.bf16.msra.mxu0 0
  %2486 = vmatprep.mubr.bf16.mxu0 0
  %2487 = vmatmul.mubr.bf16.gmra.mrb[0].mxu0 %v2261
  %v2488 = vpop.f32.mrb[0].mxu0
  %v2489 = vadd.f32 0.0, %v2488
  %v2490 = vpop.f32.mrb[0].mxu0
  %v2491 = vadd.f32 0.0, %v2490
  %v2492 = vpop.f32.mrb[0].mxu0
  %v2493 = vpop.f32.mrb[0].mxu0
  %2494 = vdwg.mxu0
  %2495 = vmatprep.subr.bf16.mxu0 %v2393
  %2496 = vmatpush1.bf16.msra.mxu0 %v2392
  %2497 = vmatprep.subr.bf16.mxu0 %v2397
  %2498 = vmatpush1.bf16.msra.mxu0 %v2396
  %2499 = vmatprep.subr.bf16.mxu0 %v2401
  %2500 = vmatpush1.bf16.msra.mxu0 %v2400
  %2501 = vmatprep.subr.bf16.mxu0 %v2405
  %2502 = vmatpush1.bf16.msra.mxu0 %v2404
  %2503 = vmatprep.subr.bf16.mxu0 %v2409
  %2504 = vmatpush1.bf16.msra.mxu0 %v2408
  %2505 = vmatprep.subr.bf16.mxu0 %v2413
  %2506 = vmatpush1.bf16.msra.mxu0 %v2412
  %2507 = vmatprep.subr.bf16.mxu0 %v2417
  %2508 = vmatpush1.bf16.msra.mxu0 %v2416
  %2509 = vmatprep.subr.bf16.mxu0 %v2421
  %2510 = vmatpush1.bf16.msra.mxu0 %v2420
  %2511 = vmatprep.subr.bf16.mxu0 0
  %2512 = vmatpush1.bf16.msra.mxu0 0
  %2513 = vmatprep.subr.bf16.mxu0 0
  %2514 = vmatpush1.bf16.msra.mxu0 0
  %2515 = vmatprep.subr.bf16.mxu0 0
  %2516 = vmatpush1.bf16.msra.mxu0 0
  %2517 = vmatprep.subr.bf16.mxu0 0
  %2518 = vmatpush1.bf16.msra.mxu0 0
  %2519 = vmatprep.subr.bf16.mxu0 0
  %2520 = vmatpush1.bf16.msra.mxu0 0
  %2521 = vmatprep.subr.bf16.mxu0 0
  %2522 = vmatpush1.bf16.msra.mxu0 0
  %2523 = vmatprep.subr.bf16.mxu0 0
  %2524 = vmatpush1.bf16.msra.mxu0 0
  %2525 = vmatprep.subr.bf16.mxu0 0
  %2526 = vmatpush1.bf16.msra.mxu0 0
  %2527 = vmatprep.mubr.bf16.mxu0 0
  %2528 = vmatmul.mubr.bf16.gmra.mrb[0].mxu0 %v2261
  %v2529 = vpop.f32.mrb[0].mxu0
  %v2530 = vadd.f32 0.0, %v2529
  %v2531 = vpop.f32.mrb[0].mxu0
  %v2532 = vadd.f32 0.0, %v2531
  %v2533 = vpop.f32.mrb[0].mxu0
  %v2534 = vpop.f32.mrb[0].mxu0
  %2535 = vdwg.mxu0
  %v2536 = vadd.f32 %v2256, %v2489
  %v2537 = vadd.f32 %v2257, %v2491
  %v2538 = vadd.f32 %v2258, %v2530
  %v2539 = vadd.f32 %v2259, %v2532
  %v2540 = vxor.u32 %v2536, 2147483648
  %v2541 = vmul.f32 %v2540, 1.442695
  %v2542 = vpow.pop %v2541
  %v2543 = vadd.f32 %v2542, 1.0
  %v2544 = vrcp.pop %v2543
  %v2545 = vmul.f32 1.0, %v2544
  %v2546 = vxor.u32 %v2537, 2147483648
  %v2547 = vmul.f32 %v2546, 1.442695
  %v2548 = vpow.pop %v2547
  %v2549 = vadd.f32 %v2548, 1.0
  %v2550 = vrcp.pop %v2549
  %v2551 = vmul.f32 1.0, %v2550
  %v2552 = vtanh.pop %v2538
  %v2553 = vxor.u32 %v2539, 2147483648
  %v2554 = vmul.f32 %v2553, 1.442695
  %v2555 = vpow.pop %v2554
  %v2556 = vadd.f32 %v2555, 1.0
  %v2557 = vrcp.pop %v2556
  %v2558 = vmul.f32 1.0, %v2557
  %v2559 = vld [vmem:[#allocation3] sm:$0xff]
  %v2560 = vmul.f32 %v2551, %v2559
  %v2561 = vmul.f32 %v2545, %v2552
  %v2562 = vadd.f32 %v2560, %v2561
  %v2563 = vtanh.pop %v2562
  %v2564 = vmul.f32 %v2558, %v2563
  %2565 = vst [vmem:[#allocation3] sm:$0xff] %v2562
  %2566 = vst [vmem:[#allocation2] sm:$0xff] %v2564
  %s2567 = scalar_lea.vmem %s1, 56
  %v2568 = vld [vmem:[%s2567] sm:$0xff]
  %v2569 = vmul.f32 %v2564, %v2568
  %v2570 = vpack.c.bf16 %v2569, %v2569
  %s2571 = scalar_lea.vmem [#allocation4], 28
  %2572 = vst [vmem:[%s2571] sm:$0xf] %v2570
  %v2573 = vld [vmem:[#allocation4] sm:$0xf]
  %v2574 = vld [vmem:[#allocation4 + $0x4] sm:$0xf]
  %v2575 = vld [vmem:[#allocation4 + $0x8] sm:$0xf]
  %v2576 = vld [vmem:[#allocation4 + $0xc] sm:$0xf]
  %v2577 = vld [vmem:[#allocation4 + $0x10] sm:$0xf]
  %v2578 = vld [vmem:[#allocation4 + $0x14] sm:$0xf]
  %v2579 = vld [vmem:[#allocation4 + $0x18] sm:$0xf]
  %v2580 = vld [vmem:[#allocation4 + $0x1c] sm:$0xf]
  %v2581 = vld [vmem:[%s3] sm:$0xf]
  %v2582 = vld [vmem:[%s3 + $0x4] sm:$0xf]
  %v2583 = vld [vmem:[%s3 + $0x8] sm:$0xf]
  %v2584 = vld [vmem:[%s3 + $0xc] sm:$0xf]
  %v2585 = vld [vmem:[%s3 + $0x10] sm:$0xf]
  %v2586 = vld [vmem:[%s3 + $0x14] sm:$0xf]
  %v2587 = vld [vmem:[%s3 + $0x18] sm:$0xf]
  %v2588 = vld [vmem:[%s3 + $0x1c] sm:$0xf]
  %v2589 = vld [vmem:[%s3 + $0x20] sm:$0xf]
  %v2590 = vld [vmem:[%s3 + $0x24] sm:$0xf]
  %v2591 = vld [vmem:[%s3 + $0x28] sm:$0xf]
  %v2592 = vld [vmem:[%s3 + $0x2c] sm:$0xf]
  %v2593 = vld [vmem:[%s3 + $0x30] sm:$0xf]
  %v2594 = vld [vmem:[%s3 + $0x34] sm:$0xf]
  %v2595 = vld [vmem:[%s3 + $0x38] sm:$0xf]
  %v2596 = vld [vmem:[%s3 + $0x3c] sm:$0xf]
  %v2597 = vld [vmem:[%s4] sm:$0x1]
  %v2599 = vlaneseq
  %v2600 = vshrl.u32 %v2599, 7
  %v2601 = vsub.s32 0, %v2600
  %v2602 = vrot.slane %v2597, %v2601
  %v2612 = vunpack.c.l.b16 %v2573
  %v2613 = vunpack.c.l.b16 %v2574
  %v2614 = vunpack.c.l.b16 %v2575
  %v2615 = vunpack.c.l.b16 %v2576
  %v2616 = vunpack.c.l.b16 %v2577
  %v2617 = vunpack.c.l.b16 %v2578
  %v2618 = vunpack.c.l.b16 %v2579
  %v2619 = vunpack.c.l.b16 %v2580
  %v2620 = vpack.c.b16 %v2613, %v2612
  %v2621 = vpack.c.b16 %v2615, %v2614
  %v2622 = vpack.c.b16 %v2617, %v2616
  %v2623 = vpack.c.b16 %v2619, %v2618
  %v2644 = vunpack.c.l.b16 %v2581
  %v2645 = vunpack.c.l.b16 %v2582
  %v2646 = vunpack.c.l.b16 %v2583
  %v2647 = vunpack.c.l.b16 %v2584
  %v2648 = vunpack.c.l.b16 %v2585
  %v2649 = vunpack.c.l.b16 %v2586
  %v2650 = vunpack.c.l.b16 %v2587
  %v2651 = vunpack.c.l.b16 %v2588
  %v2652 = vunpack.c.l.b16 %v2589
  %v2653 = vunpack.c.l.b16 %v2590
  %v2654 = vunpack.c.l.b16 %v2591
  %v2655 = vunpack.c.l.b16 %v2592
  %v2656 = vunpack.c.l.b16 %v2593
  %v2657 = vunpack.c.l.b16 %v2594
  %v2658 = vunpack.c.l.b16 %v2595
  %v2659 = vunpack.c.l.b16 %v2596
  %v2660 = vpack.c.b16 %v2645, %v2644
  %v2661 = vpack.c.b16 %v2647, %v2646
  %v2662 = vpack.c.b16 %v2649, %v2648
  %v2663 = vpack.c.b16 %v2651, %v2650
  %v2664 = vpack.c.b16 %v2653, %v2652
  %v2665 = vpack.c.b16 %v2655, %v2654
  %v2666 = vpack.c.b16 %v2657, %v2656
  %v2667 = vpack.c.b16 %v2659, %v2658
  %2676 = vmatprep.subr.bf16.mxu0 0
  %2677 = vmatpush1.bf16.msra.mxu0 %v2660
  %2678 = vmatprep.subr.bf16.mxu0 0
  %2679 = vmatpush1.bf16.msra.mxu0 %v2661
  %2680 = vmatprep.subr.bf16.mxu0 0
  %2681 = vmatpush1.bf16.msra.mxu0 %v2662
  %2682 = vmatprep.subr.bf16.mxu0 0
  %2683 = vmatpush1.bf16.msra.mxu0 %v2663
  %2684 = vmatprep.subr.bf16.mxu0 0
  %2685 = vmatpush1.bf16.msra.mxu0 %v2664
  %2686 = vmatprep.subr.bf16.mxu0 0
  %2687 = vmatpush1.bf16.msra.mxu0 %v2665
  %2688 = vmatprep.subr.bf16.mxu0 0
  %2689 = vmatpush1.bf16.msra.mxu0 %v2666
  %2690 = vmatprep.subr.bf16.mxu0 0
  %2691 = vmatpush1.bf16.msra.mxu0 %v2667
  %2692 = vmatprep.subr.bf16.mxu0 0
  %2693 = vmatpush1.bf16.msra.mxu0 0
  %2694 = vmatprep.subr.bf16.mxu0 0
  %2695 = vmatpush1.bf16.msra.mxu0 0
  %2696 = vmatprep.subr.bf16.mxu0 0
  %2697 = vmatpush1.bf16.msra.mxu0 0
  %2698 = vmatprep.subr.bf16.mxu0 0
  %2699 = vmatpush1.bf16.msra.mxu0 0
  %2700 = vmatprep.subr.bf16.mxu0 0
  %2701 = vmatpush1.bf16.msra.mxu0 0
  %2702 = vmatprep.subr.bf16.mxu0 0
  %2703 = vmatpush1.bf16.msra.mxu0 0
  %2704 = vmatprep.subr.bf16.mxu0 0
  %2705 = vmatpush1.bf16.msra.mxu0 0
  %2706 = vmatprep.subr.bf16.mxu0 0
  %2707 = vmatpush1.bf16.msra.mxu0 0
  %2708 = vmatprep.mubr.bf16.mxu0 0
  %2709 = vmatmul.mubr.bf16.gmra.mrb[0].mxu0 %v2620
  %v2710 = vpop.f32.mrb[0].mxu0
  %v2711 = vadd.f32 %v2602, %v2710
  %v2712 = vpop.f32.mrb[0].mxu0
  %v2713 = vpop.f32.mrb[0].mxu0
  %v2714 = vadd.f32 %v2602, %v2713
  %v2715 = vpop.f32.mrb[0].mxu0
  %2716 = vmatprep.mubr.bf16.mxu0 0
  %2717 = vmatmul.mubr.bf16.gmra.mrb[0].mxu0 %v2621
  %v2718 = vpop.f32.mrb[0].mxu0
  %v2719 = vadd.f32 %v2602, %v2718
  %v2720 = vpop.f32.mrb[0].mxu0
  %v2721 = vpop.f32.mrb[0].mxu0
  %v2722 = vadd.f32 %v2602, %v2721
  %v2723 = vpop.f32.mrb[0].mxu0
  %2724 = vmatprep.mubr.bf16.mxu0 0
  %2725 = vmatmul.mubr.bf16.gmra.mrb[0].mxu0 %v2622
  %v2726 = vpop.f32.mrb[0].mxu0
  %v2727 = vadd.f32 %v2602, %v2726
  %v2728 = vpop.f32.mrb[0].mxu0
  %v2729 = vpop.f32.mrb[0].mxu0
  %v2730 = vadd.f32 %v2602, %v2729
  %v2731 = vpop.f32.mrb[0].mxu0
  %2732 = vmatprep.mubr.bf16.mxu0 0
  %2733 = vmatmul.mubr.bf16.gmra.mrb[0].mxu0 %v2623
  %v2734 = vpop.f32.mrb[0].mxu0
  %v2735 = vadd.f32 %v2602, %v2734
  %v2736 = vpop.f32.mrb[0].mxu0
  %v2737 = vpop.f32.mrb[0].mxu0
  %v2738 = vadd.f32 %v2602, %v2737
  %v2739 = vpop.f32.mrb[0].mxu0
  %2740 = vdwg.mxu0
  %2741 = vst [vmem:[#allocation5] sm:$0xff] %v2711
  %2742 = vst [vmem:[#allocation5 + $0x8] sm:$0xff] %v2714
  %2743 = vst [vmem:[#allocation5 + $0x10] sm:$0xff] %v2719
  %2744 = vst [vmem:[#allocation5 + $0x18] sm:$0xff] %v2722
  %2745 = vst [vmem:[#allocation5 + $0x20] sm:$0xff] %v2727
  %2746 = vst [vmem:[#allocation5 + $0x28] sm:$0xff] %v2730
  %2747 = vst [vmem:[#allocation5 + $0x30] sm:$0xff] %v2735
  %2748 = vst [vmem:[#allocation5 + $0x38] sm:$0xff] %v2738
  %v2749 = vld [vmem:[#allocation5] sm:$0xff]
  %v2750 = vld [vmem:[#allocation6] sm:$0xff]
  %v2751 = vpack.c.bf16 %v2750, %v2750
  %v2752 = vld [vmem:[%s5] sm:$0xf]
  %v2753 = vld [vmem:[%s5 + $0x4] sm:$0xf]
  %v2754 = vld [vmem:[%s5 + $0x8] sm:$0xf]
  %v2755 = vld [vmem:[%s5 + $0xc] sm:$0xf]
  %v2760 = vunpack.c.l.b16 %v2752
  %v2761 = vunpack.c.l.b16 %v2753
  %v2762 = vunpack.c.l.b16 %v2754
  %v2763 = vunpack.c.l.b16 %v2755
  %v2764 = vpack.c.b16 %v2761, %v2760
  %v2765 = vpack.c.b16 %v2763, %v2762
  %v2769 = vsel %vm29, %v2751, 0
  %2771 = vmatprep.subr.bf16.mxu0 0
  %2772 = vmatpush1.bf16.msra.mxu0 %v2764
  %2773 = vmatprep.subr.bf16.mxu0 0
  %2774 = vmatpush1.bf16.msra.mxu0 %v2765
  %2775 = vmatprep.subr.bf16.mxu0 0
  %2776 = vmatpush1.bf16.msra.mxu0 0
  %2777 = vmatprep.subr.bf16.mxu0 0
  %2778 = vmatpush1.bf16.msra.mxu0 0
  %2779 = vmatprep.subr.bf16.mxu0 0
  %2780 = vmatpush1.bf16.msra.mxu0 0
  %2781 = vmatprep.subr.bf16.mxu0 0
  %2782 = vmatpush1.bf16.msra.mxu0 0
  %2783 = vmatprep.subr.bf16.mxu0 0
  %2784 = vmatpush1.bf16.msra.mxu0 0
  %2785 = vmatprep.subr.bf16.mxu0 0
  %2786 = vmatpush1.bf16.msra.mxu0 0
  %2787 = vmatprep.subr.bf16.mxu0 0
  %2788 = vmatpush1.bf16.msra.mxu0 0
  %2789 = vmatprep.subr.bf16.mxu0 0
  %2790 = vmatpush1.bf16.msra.mxu0 0
  %2791 = vmatprep.subr.bf16.mxu0 0
  %2792 = vmatpush1.bf16.msra.mxu0 0
  %2793 = vmatprep.subr.bf16.mxu0 0
  %2794 = vmatpush1.bf16.msra.mxu0 0
  %2795 = vmatprep.subr.bf16.mxu0 0
  %2796 = vmatpush1.bf16.msra.mxu0 0
  %2797 = vmatprep.subr.bf16.mxu0 0
  %2798 = vmatpush1.bf16.msra.mxu0 0
  %2799 = vmatprep.subr.bf16.mxu0 0
  %2800 = vmatpush1.bf16.msra.mxu0 0
  %2801 = vmatprep.subr.bf16.mxu0 0
  %2802 = vmatpush1.bf16.msra.mxu0 0
  %2803 = vmatprep.mubr.bf16.mxu0 0
  %2804 = vmatmul.mubr.bf16.gmra.mrb[0].mxu0 %v2769
  %v2805 = vpop.f32.mrb[0].mxu0
  %v2806 = vadd.f32 0.0, %v2805
  %v2807 = vpop.f32.mrb[0].mxu0
  %v2808 = vpop.f32.mrb[0].mxu0
  %v2809 = vpop.f32.mrb[0].mxu0
  %2810 = vdwg.mxu0
  %v2811 = vadd.f32 %v2749, %v2806
  %v2812 = vxor.u32 %v2811, 2147483648
  %v2813 = vmul.f32 %v2812, 1.442695
  %v2814 = vpow.pop %v2813
  %v2815 = vadd.f32 %v2814, 1.0
  %v2816 = vrcp.pop %v2815
  %v2817 = vmul.f32 1.0, %v2816
  %v2818 = vtanh.pop %v2811
  %v2819 = vld [vmem:[#allocation7] sm:$0xff]
  %2821 = vrot.lane.b32.xlu0 %v2819, 32
  %v2822 = vpop.permute.xlu0 %2821
  %v2824 = vmul.f32 %v2817, %v2822
  %2826 = vrot.lane.b32.xlu0 %v2818, 64
  %v2827 = vpop.permute.xlu0 %2826
  %v2829 = vmul.f32 %v2817, %v2827
  %2831 = vrot.lane.b32.xlu0 %v2829, 32
  %v2832 = vpop.permute.xlu0 %2831
  %v2834 = vadd.f32 %v2824, %v2832
  %v2835 = vtanh.pop %v2834
  %2837 = vrot.lane.b32.xlu0 %v2835, 64
  %v2838 = vpop.permute.xlu0 %2837
  %v2840 = vmul.f32 %v2817, %v2838
  %2842 = vrot.lane.b32.xlu0 %v2834, 96
  %v2843 = vpop.permute.xlu0 %2842
  %2845 = vst.msk [vmem:[#allocation7] sm:$0xff] %vm29, %v2843
  %2847 = vrot.lane.b32.xlu0 %v2840, 32
  %v2848 = vpop.permute.xlu0 %2847
  %2850 = vst.msk [vmem:[#allocation6] sm:$0xff] %vm29, %v2848
  %v2851 = vld [vmem:[%s6] sm:$0xff]
  %2853 = vrot.lane.b32.xlu0 %v2851, 96
  %v2854 = vpop.permute.xlu0 %2853
  %v2856 = vmul.f32 %v2840, %v2854
  %2858 = vrot.lane.b32.xlu0 %v2856, 32
  %v2859 = vpop.permute.xlu0 %2858
  %2861 = vst.msk [vmem:[%s7] sm:$0xff] %vm29, %v2859
  %s2862 = scalar_lea.vmem [#allocation5], 8
  %v2863 = vld [vmem:[%s2862] sm:$0xff]
  %v2864 = vld [vmem:[#allocation6] sm:$0xff]
  %v2865 = vpack.c.bf16 %v2864, %v2864
  %v2866 = vld [vmem:[%s5] sm:$0xf]
  %v2867 = vld [vmem:[%s5 + $0x4] sm:$0xf]
  %v2868 = vld [vmem:[%s5 + $0x8] sm:$0xf]
  %v2869 = vld [vmem:[%s5 + $0xc] sm:$0xf]
  %v2874 = vunpack.c.l.b16 %v2866
  %v2875 = vunpack.c.l.b16 %v2867
  %v2876 = vunpack.c.l.b16 %v2868
  %v2877 = vunpack.c.l.b16 %v2869
  %v2878 = vpack.c.b16 %v2875, %v2874
  %v2879 = vpack.c.b16 %v2877, %v2876
  %v2883 = vsel %vm29, %v2865, 0
  %2885 = vmatprep.subr.bf16.mxu0 0
  %2886 = vmatpush1.bf16.msra.mxu0 %v2878
  %2887 = vmatprep.subr.bf16.mxu0 0
  %2888 = vmatpush1.bf16.msra.mxu0 %v2879
  %2889 = vmatprep.subr.bf16.mxu0 0
  %2890 = vmatpush1.bf16.msra.mxu0 0
  %2891 = vmatprep.subr.bf16.mxu0 0
  %2892 = vmatpush1.bf16.msra.mxu0 0
  %2893 = vmatprep.subr.bf16.mxu0 0
  %2894 = vmatpush1.bf16.msra.mxu0 0
  %2895 = vmatprep.subr.bf16.mxu0 0
  %2896 = vmatpush1.bf16.msra.mxu0 0
  %2897 = vmatprep.subr.bf16.mxu0 0
  %2898 = vmatpush1.bf16.msra.mxu0 0
  %2899 = vmatprep.subr.bf16.mxu0 0
  %2900 = vmatpush1.bf16.msra.mxu0 0
  %2901 = vmatprep.subr.bf16.mxu0 0
  %2902 = vmatpush1.bf16.msra.mxu0 0
  %2903 = vmatprep.subr.bf16.mxu0 0
  %2904 = vmatpush1.bf16.msra.mxu0 0
  %2905 = vmatprep.subr.bf16.mxu0 0
  %2906 = vmatpush1.bf16.msra.mxu0 0
  %2907 = vmatprep.subr.bf16.mxu0 0
  %2908 = vmatpush1.bf16.msra.mxu0 0
  %2909 = vmatprep.subr.bf16.mxu0 0
  %2910 = vmatpush1.bf16.msra.mxu0 0
  %2911 = vmatprep.subr.bf16.mxu0 0
  %2912 = vmatpush1.bf16.msra.mxu0 0
  %2913 = vmatprep.subr.bf16.mxu0 0
  %2914 = vmatpush1.bf16.msra.mxu0 0
  %2915 = vmatprep.subr.bf16.mxu0 0
  %2916 = vmatpush1.bf16.msra.mxu0 0
  %2917 = vmatprep.mubr.bf16.mxu0 0
  %2918 = vmatmul.mubr.bf16.gmra.mrb[0].mxu0 %v2883
  %v2919 = vpop.f32.mrb[0].mxu0
  %v2920 = vadd.f32 0.0, %v2919
  %v2921 = vpop.f32.mrb[0].mxu0
  %v2922 = vpop.f32.mrb[0].mxu0
  %v2923 = vpop.f32.mrb[0].mxu0
  %2924 = vdwg.mxu0
  %v2925 = vadd.f32 %v2863, %v2920
  %v2926 = vxor.u32 %v2925, 2147483648
  %v2927 = vmul.f32 %v2926, 1.442695
  %v2928 = vpow.pop %v2927
  %v2929 = vadd.f32 %v2928, 1.0
  %v2930 = vrcp.pop %v2929
  %v2931 = vmul.f32 1.0, %v2930
  %v2932 = vtanh.pop %v2925
  %v2933 = vld [vmem:[#allocation7] sm:$0xff]
  %2935 = vrot.lane.b32.xlu0 %v2933, 32
  %v2936 = vpop.permute.xlu0 %2935
  %v2938 = vmul.f32 %v2931, %v2936
  %2940 = vrot.lane.b32.xlu0 %v2932, 64
  %v2941 = vpop.permute.xlu0 %2940
  %v2943 = vmul.f32 %v2931, %v2941
  %2945 = vrot.lane.b32.xlu0 %v2943, 32
  %v2946 = vpop.permute.xlu0 %2945
  %v2948 = vadd.f32 %v2938, %v2946
  %v2949 = vtanh.pop %v2948
  %2951 = vrot.lane.b32.xlu0 %v2949, 64
  %v2952 = vpop.permute.xlu0 %2951
  %v2954 = vmul.f32 %v2931, %v2952
  %2956 = vrot.lane.b32.xlu0 %v2948, 96
  %v2957 = vpop.permute.xlu0 %2956
  %2959 = vst.msk [vmem:[#allocation7] sm:$0xff] %vm29, %v2957
  %2961 = vrot.lane.b32.xlu0 %v2954, 32
  %v2962 = vpop.permute.xlu0 %2961
  %2964 = vst.msk [vmem:[#allocation6] sm:$0xff] %vm29, %v2962
  %s2965 = scalar_lea.vmem %s6, 8
  %v2966 = vld [vmem:[%s2965] sm:$0xff]
  %2968 = vrot.lane.b32.xlu0 %v2966, 96
  %v2969 = vpop.permute.xlu0 %2968
  %v2971 = vmul.f32 %v2954, %v2969
  %2973 = vrot.lane.b32.xlu0 %v2971, 32
  %v2974 = vpop.permute.xlu0 %2973
  %s2976 = scalar_lea.vmem %s7, 8
  %2977 = vst.msk [vmem:[%s2976] sm:$0xff] %vm29, %v2974
  %s2978 = scalar_lea.vmem [#allocation5], 16
  %v2979 = vld [vmem:[%s2978] sm:$0xff]
  %v2980 = vld [vmem:[#allocation6] sm:$0xff]
  %v2981 = vpack.c.bf16 %v2980, %v2980
  %v2982 = vld [vmem:[%s5] sm:$0xf]
  %v2983 = vld [vmem:[%s5 + $0x4] sm:$0xf]
  %v2984 = vld [vmem:[%s5 + $0x8] sm:$0xf]
  %v2985 = vld [vmem:[%s5 + $0xc] sm:$0xf]
  %v2990 = vunpack.c.l.b16 %v2982
  %v2991 = vunpack.c.l.b16 %v2983
  %v2992 = vunpack.c.l.b16 %v2984
  %v2993 = vunpack.c.l.b16 %v2985
  %v2994 = vpack.c.b16 %v2991, %v2990
  %v2995 = vpack.c.b16 %v2993, %v2992
  %v2999 = vsel %vm29, %v2981, 0
  %3001 = vmatprep.subr.bf16.mxu0 0
  %3002 = vmatpush1.bf16.msra.mxu0 %v2994
  %3003 = vmatprep.subr.bf16.mxu0 0
  %3004 = vmatpush1.bf16.msra.mxu0 %v2995
  %3005 = vmatprep.subr.bf16.mxu0 0
  %3006 = vmatpush1.bf16.msra.mxu0 0
  %3007 = vmatprep.subr.bf16.mxu0 0
  %3008 = vmatpush1.bf16.msra.mxu0 0
  %3009 = vmatprep.subr.bf16.mxu0 0
  %3010 = vmatpush1.bf16.msra.mxu0 0
  %3011 = vmatprep.subr.bf16.mxu0 0
  %3012 = vmatpush1.bf16.msra.mxu0 0
  %3013 = vmatprep.subr.bf16.mxu0 0
  %3014 = vmatpush1.bf16.msra.mxu0 0
  %3015 = vmatprep.subr.bf16.mxu0 0
  %3016 = vmatpush1.bf16.msra.mxu0 0
  %3017 = vmatprep.subr.bf16.mxu0 0
  %3018 = vmatpush1.bf16.msra.mxu0 0
  %3019 = vmatprep.subr.bf16.mxu0 0
  %3020 = vmatpush1.bf16.msra.mxu0 0
  %3021 = vmatprep.subr.bf16.mxu0 0
  %3022 = vmatpush1.bf16.msra.mxu0 0
  %3023 = vmatprep.subr.bf16.mxu0 0
  %3024 = vmatpush1.bf16.msra.mxu0 0
  %3025 = vmatprep.subr.bf16.mxu0 0
  %3026 = vmatpush1.bf16.msra.mxu0 0
  %3027 = vmatprep.subr.bf16.mxu0 0
  %3028 = vmatpush1.bf16.msra.mxu0 0
  %3029 = vmatprep.subr.bf16.mxu0 0
  %3030 = vmatpush1.bf16.msra.mxu0 0
  %3031 = vmatprep.subr.bf16.mxu0 0
  %3032 = vmatpush1.bf16.msra.mxu0 0
  %3033 = vmatprep.mubr.bf16.mxu0 0
  %3034 = vmatmul.mubr.bf16.gmra.mrb[0].mxu0 %v2999
  %v3035 = vpop.f32.mrb[0].mxu0
  %v3036 = vadd.f32 0.0, %v3035
  %v3037 = vpop.f32.mrb[0].mxu0
  %v3038 = vpop.f32.mrb[0].mxu0
  %v3039 = vpop.f32.mrb[0].mxu0
  %3040 = vdwg.mxu0
  %v3041 = vadd.f32 %v2979, %v3036
  %v3042 = vxor.u32 %v3041, 2147483648
  %v3043 = vmul.f32 %v3042, 1.442695
  %v3044 = vpow.pop %v3043
  %v3045 = vadd.f32 %v3044, 1.0
  %v3046 = vrcp.pop %v3045
  %v3047 = vmul.f32 1.0, %v3046
  %v3048 = vtanh.pop %v3041
  %v3049 = vld [vmem:[#allocation7] sm:$0xff]
  %3051 = vrot.lane.b32.xlu0 %v3049, 32
  %v3052 = vpop.permute.xlu0 %3051
  %v3054 = vmul.f32 %v3047, %v3052
  %3056 = vrot.lane.b32.xlu0 %v3048, 64
  %v3057 = vpop.permute.xlu0 %3056
  %v3059 = vmul.f32 %v3047, %v3057
  %3061 = vrot.lane.b32.xlu0 %v3059, 32
  %v3062 = vpop.permute.xlu0 %3061
  %v3064 = vadd.f32 %v3054, %v3062
  %v3065 = vtanh.pop %v3064
  %3067 = vrot.lane.b32.xlu0 %v3065, 64
  %v3068 = vpop.permute.xlu0 %3067
  %v3070 = vmul.f32 %v3047, %v3068
  %3072 = vrot.lane.b32.xlu0 %v3064, 96
  %v3073 = vpop.permute.xlu0 %3072
  %3075 = vst.msk [vmem:[#allocation7] sm:$0xff] %vm29, %v3073
  %3077 = vrot.lane.b32.xlu0 %v3070, 32
  %v3078 = vpop.permute.xlu0 %3077
  %3080 = vst.msk [vmem:[#allocation6] sm:$0xff] %vm29, %v3078
  %s3081 = scalar_lea.vmem %s6, 16
  %v3082 = vld [vmem:[%s3081] sm:$0xff]
  %3084 = vrot.lane.b32.xlu0 %v3082, 96
  %v3085 = vpop.permute.xlu0 %3084
  %v3087 = vmul.f32 %v3070, %v3085
  %3089 = vrot.lane.b32.xlu0 %v3087, 32
  %v3090 = vpop.permute.xlu0 %3089
  %s3092 = scalar_lea.vmem %s7, 16
  %3093 = vst.msk [vmem:[%s3092] sm:$0xff] %vm29, %v3090
  %s3094 = scalar_lea.vmem [#allocation5], 24
  %v3095 = vld [vmem:[%s3094] sm:$0xff]
  %v3096 = vld [vmem:[#allocation6] sm:$0xff]
  %v3097 = vpack.c.bf16 %v3096, %v3096
  %v3098 = vld [vmem:[%s5] sm:$0xf]
  %v3099 = vld [vmem:[%s5 + $0x4] sm:$0xf]
  %v3100 = vld [vmem:[%s5 + $0x8] sm:$0xf]
  %v3101 = vld [vmem:[%s5 + $0xc] sm:$0xf]
  %v3106 = vunpack.c.l.b16 %v3098
  %v3107 = vunpack.c.l.b16 %v3099
  %v3108 = vunpack.c.l.b16 %v3100
  %v3109 = vunpack.c.l.b16 %v3101
  %v3110 = vpack.c.b16 %v3107, %v3106
  %v3111 = vpack.c.b16 %v3109, %v3108
  %v3115 = vsel %vm29, %v3097, 0
  %3117 = vmatprep.subr.bf16.mxu0 0
  %3118 = vmatpush1.bf16.msra.mxu0 %v3110
  %3119 = vmatprep.subr.bf16.mxu0 0
  %3120 = vmatpush1.bf16.msra.mxu0 %v3111
  %3121 = vmatprep.subr.bf16.mxu0 0
  %3122 = vmatpush1.bf16.msra.mxu0 0
  %3123 = vmatprep.subr.bf16.mxu0 0
  %3124 = vmatpush1.bf16.msra.mxu0 0
  %3125 = vmatprep.subr.bf16.mxu0 0
  %3126 = vmatpush1.bf16.msra.mxu0 0
  %3127 = vmatprep.subr.bf16.mxu0 0
  %3128 = vmatpush1.bf16.msra.mxu0 0
  %3129 = vmatprep.subr.bf16.mxu0 0
  %3130 = vmatpush1.bf16.msra.mxu0 0
  %3131 = vmatprep.subr.bf16.mxu0 0
  %3132 = vmatpush1.bf16.msra.mxu0 0
  %3133 = vmatprep.subr.bf16.mxu0 0
  %3134 = vmatpush1.bf16.msra.mxu0 0
  %3135 = vmatprep.subr.bf16.mxu0 0
  %3136 = vmatpush1.bf16.msra.mxu0 0
  %3137 = vmatprep.subr.bf16.mxu0 0
  %3138 = vmatpush1.bf16.msra.mxu0 0
  %3139 = vmatprep.subr.bf16.mxu0 0
  %3140 = vmatpush1.bf16.msra.mxu0 0
  %3141 = vmatprep.subr.bf16.mxu0 0
  %3142 = vmatpush1.bf16.msra.mxu0 0
  %3143 = vmatprep.subr.bf16.mxu0 0
  %3144 = vmatpush1.bf16.msra.mxu0 0
  %3145 = vmatprep.subr.bf16.mxu0 0
  %3146 = vmatpush1.bf16.msra.mxu0 0
  %3147 = vmatprep.subr.bf16.mxu0 0
  %3148 = vmatpush1.bf16.msra.mxu0 0
  %3149 = vmatprep.mubr.bf16.mxu0 0
  %3150 = vmatmul.mubr.bf16.gmra.mrb[0].mxu0 %v3115
  %v3151 = vpop.f32.mrb[0].mxu0
  %v3152 = vadd.f32 0.0, %v3151
  %v3153 = vpop.f32.mrb[0].mxu0
  %v3154 = vpop.f32.mrb[0].mxu0
  %v3155 = vpop.f32.mrb[0].mxu0
  %3156 = vdwg.mxu0
  %v3157 = vadd.f32 %v3095, %v3152
  %v3158 = vxor.u32 %v3157, 2147483648
  %v3159 = vmul.f32 %v3158, 1.442695
  %v3160 = vpow.pop %v3159
  %v3161 = vadd.f32 %v3160, 1.0
  %v3162 = vrcp.pop %v3161
  %v3163 = vmul.f32 1.0, %v3162
  %v3164 = vtanh.pop %v3157
  %v3165 = vld [vmem:[#allocation7] sm:$0xff]
  %3167 = vrot.lane.b32.xlu0 %v3165, 32
  %v3168 = vpop.permute.xlu0 %3167
  %v3170 = vmul.f32 %v3163, %v3168
  %3172 = vrot.lane.b32.xlu0 %v3164, 64
  %v3173 = vpop.permute.xlu0 %3172
  %v3175 = vmul.f32 %v3163, %v3173
  %3177 = vrot.lane.b32.xlu0 %v3175, 32
  %v3178 = vpop.permute.xlu0 %3177
  %v3180 = vadd.f32 %v3170, %v3178
  %v3181 = vtanh.pop %v3180
  %3183 = vrot.lane.b32.xlu0 %v3181, 64
  %v3184 = vpop.permute.xlu0 %3183
  %v3186 = vmul.f32 %v3163, %v3184
  %3188 = vrot.lane.b32.xlu0 %v3180, 96
  %v3189 = vpop.permute.xlu0 %3188
  %3191 = vst.msk [vmem:[#allocation7] sm:$0xff] %vm29, %v3189
  %3193 = vrot.lane.b32.xlu0 %v3186, 32
  %v3194 = vpop.permute.xlu0 %3193
  %3196 = vst.msk [vmem:[#allocation6] sm:$0xff] %vm29, %v3194
  %s3197 = scalar_lea.vmem %s6, 24
  %v3198 = vld [vmem:[%s3197] sm:$0xff]
  %3200 = vrot.lane.b32.xlu0 %v3198, 96
  %v3201 = vpop.permute.xlu0 %3200
  %v3203 = vmul.f32 %v3186, %v3201
  %3205 = vrot.lane.b32.xlu0 %v3203, 32
  %v3206 = vpop.permute.xlu0 %3205
  %s3208 = scalar_lea.vmem %s7, 24
  %3209 = vst.msk [vmem:[%s3208] sm:$0xff] %vm29, %v3206
  %s3210 = scalar_lea.vmem [#allocation5], 32
  %v3211 = vld [vmem:[%s3210] sm:$0xff]
  %v3212 = vld [vmem:[#allocation6] sm:$0xff]
  %v3213 = vpack.c.bf16 %v3212, %v3212
  %v3214 = vld [vmem:[%s5] sm:$0xf]
  %v3215 = vld [vmem:[%s5 + $0x4] sm:$0xf]
  %v3216 = vld [vmem:[%s5 + $0x8] sm:$0xf]
  %v3217 = vld [vmem:[%s5 + $0xc] sm:$0xf]
  %v3222 = vunpack.c.l.b16 %v3214
  %v3223 = vunpack.c.l.b16 %v3215
  %v3224 = vunpack.c.l.b16 %v3216
  %v3225 = vunpack.c.l.b16 %v3217
  %v3226 = vpack.c.b16 %v3223, %v3222
  %v3227 = vpack.c.b16 %v3225, %v3224
  %v3231 = vsel %vm29, %v3213, 0
  %3233 = vmatprep.subr.bf16.mxu0 0
  %3234 = vmatpush1.bf16.msra.mxu0 %v3226
  %3235 = vmatprep.subr.bf16.mxu0 0
  %3236 = vmatpush1.bf16.msra.mxu0 %v3227
  %3237 = vmatprep.subr.bf16.mxu0 0
  %3238 = vmatpush1.bf16.msra.mxu0 0
  %3239 = vmatprep.subr.bf16.mxu0 0
  %3240 = vmatpush1.bf16.msra.mxu0 0
  %3241 = vmatprep.subr.bf16.mxu0 0
  %3242 = vmatpush1.bf16.msra.mxu0 0
  %3243 = vmatprep.subr.bf16.mxu0 0
  %3244 = vmatpush1.bf16.msra.mxu0 0
  %3245 = vmatprep.subr.bf16.mxu0 0
  %3246 = vmatpush1.bf16.msra.mxu0 0
  %3247 = vmatprep.subr.bf16.mxu0 0
  %3248 = vmatpush1.bf16.msra.mxu0 0
  %3249 = vmatprep.subr.bf16.mxu0 0
  %3250 = vmatpush1.bf16.msra.mxu0 0
  %3251 = vmatprep.subr.bf16.mxu0 0
  %3252 = vmatpush1.bf16.msra.mxu0 0
  %3253 = vmatprep.subr.bf16.mxu0 0
  %3254 = vmatpush1.bf16.msra.mxu0 0
  %3255 = vmatprep.subr.bf16.mxu0 0
  %3256 = vmatpush1.bf16.msra.mxu0 0
  %3257 = vmatprep.subr.bf16.mxu0 0
  %3258 = vmatpush1.bf16.msra.mxu0 0
  %3259 = vmatprep.subr.bf16.mxu0 0
  %3260 = vmatpush1.bf16.msra.mxu0 0
  %3261 = vmatprep.subr.bf16.mxu0 0
  %3262 = vmatpush1.bf16.msra.mxu0 0
  %3263 = vmatprep.subr.bf16.mxu0 0
  %3264 = vmatpush1.bf16.msra.mxu0 0
  %3265 = vmatprep.mubr.bf16.mxu0 0
  %3266 = vmatmul.mubr.bf16.gmra.mrb[0].mxu0 %v3231
  %v3267 = vpop.f32.mrb[0].mxu0
  %v3268 = vadd.f32 0.0, %v3267
  %v3269 = vpop.f32.mrb[0].mxu0
  %v3270 = vpop.f32.mrb[0].mxu0
  %v3271 = vpop.f32.mrb[0].mxu0
  %3272 = vdwg.mxu0
  %v3273 = vadd.f32 %v3211, %v3268
  %v3274 = vxor.u32 %v3273, 2147483648
  %v3275 = vmul.f32 %v3274, 1.442695
  %v3276 = vpow.pop %v3275
  %v3277 = vadd.f32 %v3276, 1.0
  %v3278 = vrcp.pop %v3277
  %v3279 = vmul.f32 1.0, %v3278
  %v3280 = vtanh.pop %v3273
  %v3281 = vld [vmem:[#allocation7] sm:$0xff]
  %3283 = vrot.lane.b32.xlu0 %v3281, 32
  %v3284 = vpop.permute.xlu0 %3283
  %v3286 = vmul.f32 %v3279, %v3284
  %3288 = vrot.lane.b32.xlu0 %v3280, 64
  %v3289 = vpop.permute.xlu0 %3288
  %v3291 = vmul.f32 %v3279, %v3289
  %3293 = vrot.lane.b32.xlu0 %v3291, 32
  %v3294 = vpop.permute.xlu0 %3293
  %v3296 = vadd.f32 %v3286, %v3294
  %v3297 = vtanh.pop %v3296
  %3299 = vrot.lane.b32.xlu0 %v3297, 64
  %v3300 = vpop.permute.xlu0 %3299
  %v3302 = vmul.f32 %v3279, %v3300
  %3304 = vrot.lane.b32.xlu0 %v3296, 96
  %v3305 = vpop.permute.xlu0 %3304
  %3307 = vst.msk [vmem:[#allocation7] sm:$0xff] %vm29, %v3305
  %3309 = vrot.lane.b32.xlu0 %v3302, 32
  %v3310 = vpop.permute.xlu0 %3309
  %3312 = vst.msk [vmem:[#allocation6] sm:$0xff] %vm29, %v3310
  %s3313 = scalar_lea.vmem %s6, 32
  %v3314 = vld [vmem:[%s3313] sm:$0xff]
  %3316 = vrot.lane.b32.xlu0 %v3314, 96
  %v3317 = vpop.permute.xlu0 %3316
  %v3319 = vmul.f32 %v3302, %v3317
  %3321 = vrot.lane.b32.xlu0 %v3319, 32
  %v3322 = vpop.permute.xlu0 %3321
  %s3324 = scalar_lea.vmem %s7, 32
  %3325 = vst.msk [vmem:[%s3324] sm:$0xff] %vm29, %v3322
  %s3326 = scalar_lea.vmem [#allocation5], 40
  %v3327 = vld [vmem:[%s3326] sm:$0xff]
  %v3328 = vld [vmem:[#allocation6] sm:$0xff]
  %v3329 = vpack.c.bf16 %v3328, %v3328
  %v3330 = vld [vmem:[%s5] sm:$0xf]
  %v3331 = vld [vmem:[%s5 + $0x4] sm:$0xf]
  %v3332 = vld [vmem:[%s5 + $0x8] sm:$0xf]
  %v3333 = vld [vmem:[%s5 + $0xc] sm:$0xf]
  %v3338 = vunpack.c.l.b16 %v3330
  %v3339 = vunpack.c.l.b16 %v3331
  %v3340 = vunpack.c.l.b16 %v3332
  %v3341 = vunpack.c.l.b16 %v3333
  %v3342 = vpack.c.b16 %v3339, %v3338
  %v3343 = vpack.c.b16 %v3341, %v3340
  %v3347 = vsel %vm29, %v3329, 0
  %3349 = vmatprep.subr.bf16.mxu0 0
  %3350 = vmatpush1.bf16.msra.mxu0 %v3342
  %3351 = vmatprep.subr.bf16.mxu0 0
  %3352 = vmatpush1.bf16.msra.mxu0 %v3343
  %3353 = vmatprep.subr.bf16.mxu0 0
  %3354 = vmatpush1.bf16.msra.mxu0 0
  %3355 = vmatprep.subr.bf16.mxu0 0
  %3356 = vmatpush1.bf16.msra.mxu0 0
  %3357 = vmatprep.subr.bf16.mxu0 0
  %3358 = vmatpush1.bf16.msra.mxu0 0
  %3359 = vmatprep.subr.bf16.mxu0 0
  %3360 = vmatpush1.bf16.msra.mxu0 0
  %3361 = vmatprep.subr.bf16.mxu0 0
  %3362 = vmatpush1.bf16.msra.mxu0 0
  %3363 = vmatprep.subr.bf16.mxu0 0
  %3364 = vmatpush1.bf16.msra.mxu0 0
  %3365 = vmatprep.subr.bf16.mxu0 0
  %3366 = vmatpush1.bf16.msra.mxu0 0
  %3367 = vmatprep.subr.bf16.mxu0 0
  %3368 = vmatpush1.bf16.msra.mxu0 0
  %3369 = vmatprep.subr.bf16.mxu0 0
  %3370 = vmatpush1.bf16.msra.mxu0 0
  %3371 = vmatprep.subr.bf16.mxu0 0
  %3372 = vmatpush1.bf16.msra.mxu0 0
  %3373 = vmatprep.subr.bf16.mxu0 0
  %3374 = vmatpush1.bf16.msra.mxu0 0
  %3375 = vmatprep.subr.bf16.mxu0 0
  %3376 = vmatpush1.bf16.msra.mxu0 0
  %3377 = vmatprep.subr.bf16.mxu0 0
  %3378 = vmatpush1.bf16.msra.mxu0 0
  %3379 = vmatprep.subr.bf16.mxu0 0
  %3380 = vmatpush1.bf16.msra.mxu0 0
  %3381 = vmatprep.mubr.bf16.mxu0 0
  %3382 = vmatmul.mubr.bf16.gmra.mrb[0].mxu0 %v3347
  %v3383 = vpop.f32.mrb[0].mxu0
  %v3384 = vadd.f32 0.0, %v3383
  %v3385 = vpop.f32.mrb[0].mxu0
  %v3386 = vpop.f32.mrb[0].mxu0
  %v3387 = vpop.f32.mrb[0].mxu0
  %3388 = vdwg.mxu0
  %v3389 = vadd.f32 %v3327, %v3384
  %v3390 = vxor.u32 %v3389, 2147483648
  %v3391 = vmul.f32 %v3390, 1.442695
  %v3392 = vpow.pop %v3391
  %v3393 = vadd.f32 %v3392, 1.0
  %v3394 = vrcp.pop %v3393
  %v3395 = vmul.f32 1.0, %v3394
  %v3396 = vtanh.pop %v3389
  %v3397 = vld [vmem:[#allocation7] sm:$0xff]
  %3399 = vrot.lane.b32.xlu0 %v3397, 32
  %v3400 = vpop.permute.xlu0 %3399
  %v3402 = vmul.f32 %v3395, %v3400
  %3404 = vrot.lane.b32.xlu0 %v3396, 64
  %v3405 = vpop.permute.xlu0 %3404
  %v3407 = vmul.f32 %v3395, %v3405
  %3409 = vrot.lane.b32.xlu0 %v3407, 32
  %v3410 = vpop.permute.xlu0 %3409
  %v3412 = vadd.f32 %v3402, %v3410
  %v3413 = vtanh.pop %v3412
  %3415 = vrot.lane.b32.xlu0 %v3413, 64
  %v3416 = vpop.permute.xlu0 %3415
  %v3418 = vmul.f32 %v3395, %v3416
  %3420 = vrot.lane.b32.xlu0 %v3412, 96
  %v3421 = vpop.permute.xlu0 %3420
  %3423 = vst.msk [vmem:[#allocation7] sm:$0xff] %vm29, %v3421
  %3425 = vrot.lane.b32.xlu0 %v3418, 32
  %v3426 = vpop.permute.xlu0 %3425
  %3428 = vst.msk [vmem:[#allocation6] sm:$0xff] %vm29, %v3426
  %s3429 = scalar_lea.vmem %s6, 40
  %v3430 = vld [vmem:[%s3429] sm:$0xff]
  %3432 = vrot.lane.b32.xlu0 %v3430, 96
  %v3433 = vpop.permute.xlu0 %3432
  %v3435 = vmul.f32 %v3418, %v3433
  %3437 = vrot.lane.b32.xlu0 %v3435, 32
  %v3438 = vpop.permute.xlu0 %3437
  %s3440 = scalar_lea.vmem %s7, 40
  %3441 = vst.msk [vmem:[%s3440] sm:$0xff] %vm29, %v3438
  %s3442 = scalar_lea.vmem [#allocation5], 48
  %v3443 = vld [vmem:[%s3442] sm:$0xff]
  %v3444 = vld [vmem:[#allocation6] sm:$0xff]
  %v3445 = vpack.c.bf16 %v3444, %v3444
  %v3446 = vld [vmem:[%s5] sm:$0xf]
  %v3447 = vld [vmem:[%s5 + $0x4] sm:$0xf]
  %v3448 = vld [vmem:[%s5 + $0x8] sm:$0xf]
  %v3449 = vld [vmem:[%s5 + $0xc] sm:$0xf]
  %v3454 = vunpack.c.l.b16 %v3446
  %v3455 = vunpack.c.l.b16 %v3447
  %v3456 = vunpack.c.l.b16 %v3448
  %v3457 = vunpack.c.l.b16 %v3449
  %v3458 = vpack.c.b16 %v3455, %v3454
  %v3459 = vpack.c.b16 %v3457, %v3456
  %v3463 = vsel %vm29, %v3445, 0
  %3465 = vmatprep.subr.bf16.mxu0 0
  %3466 = vmatpush1.bf16.msra.mxu0 %v3458
  %3467 = vmatprep.subr.bf16.mxu0 0
  %3468 = vmatpush1.bf16.msra.mxu0 %v3459
  %3469 = vmatprep.subr.bf16.mxu0 0
  %3470 = vmatpush1.bf16.msra.mxu0 0
  %3471 = vmatprep.subr.bf16.mxu0 0
  %3472 = vmatpush1.bf16.msra.mxu0 0
  %3473 = vmatprep.subr.bf16.mxu0 0
  %3474 = vmatpush1.bf16.msra.mxu0 0
  %3475 = vmatprep.subr.bf16.mxu0 0
  %3476 = vmatpush1.bf16.msra.mxu0 0
  %3477 = vmatprep.subr.bf16.mxu0 0
  %3478 = vmatpush1.bf16.msra.mxu0 0
  %3479 = vmatprep.subr.bf16.mxu0 0
  %3480 = vmatpush1.bf16.msra.mxu0 0
  %3481 = vmatprep.subr.bf16.mxu0 0
  %3482 = vmatpush1.bf16.msra.mxu0 0
  %3483 = vmatprep.subr.bf16.mxu0 0
  %3484 = vmatpush1.bf16.msra.mxu0 0
  %3485 = vmatprep.subr.bf16.mxu0 0
  %3486 = vmatpush1.bf16.msra.mxu0 0
  %3487 = vmatprep.subr.bf16.mxu0 0
  %3488 = vmatpush1.bf16.msra.mxu0 0
  %3489 = vmatprep.subr.bf16.mxu0 0
  %3490 = vmatpush1.bf16.msra.mxu0 0
  %3491 = vmatprep.subr.bf16.mxu0 0
  %3492 = vmatpush1.bf16.msra.mxu0 0
  %3493 = vmatprep.subr.bf16.mxu0 0
  %3494 = vmatpush1.bf16.msra.mxu0 0
  %3495 = vmatprep.subr.bf16.mxu0 0
  %3496 = vmatpush1.bf16.msra.mxu0 0
  %3497 = vmatprep.mubr.bf16.mxu0 0
  %3498 = vmatmul.mubr.bf16.gmra.mrb[0].mxu0 %v3463
  %v3499 = vpop.f32.mrb[0].mxu0
  %v3500 = vadd.f32 0.0, %v3499
  %v3501 = vpop.f32.mrb[0].mxu0
  %v3502 = vpop.f32.mrb[0].mxu0
  %v3503 = vpop.f32.mrb[0].mxu0
  %3504 = vdwg.mxu0
  %v3505 = vadd.f32 %v3443, %v3500
  %v3506 = vxor.u32 %v3505, 2147483648
  %v3507 = vmul.f32 %v3506, 1.442695
  %v3508 = vpow.pop %v3507
  %v3509 = vadd.f32 %v3508, 1.0
  %v3510 = vrcp.pop %v3509
  %v3511 = vmul.f32 1.0, %v3510
  %v3512 = vtanh.pop %v3505
  %v3513 = vld [vmem:[#allocation7] sm:$0xff]
  %3515 = vrot.lane.b32.xlu0 %v3513, 32
  %v3516 = vpop.permute.xlu0 %3515
  %v3518 = vmul.f32 %v3511, %v3516
  %3520 = vrot.lane.b32.xlu0 %v3512, 64
  %v3521 = vpop.permute.xlu0 %3520
  %v3523 = vmul.f32 %v3511, %v3521
  %3525 = vrot.lane.b32.xlu0 %v3523, 32
  %v3526 = vpop.permute.xlu0 %3525
  %v3528 = vadd.f32 %v3518, %v3526
  %v3529 = vtanh.pop %v3528
  %3531 = vrot.lane.b32.xlu0 %v3529, 64
  %v3532 = vpop.permute.xlu0 %3531
  %v3534 = vmul.f32 %v3511, %v3532
  %3536 = vrot.lane.b32.xlu0 %v3528, 96
  %v3537 = vpop.permute.xlu0 %3536
  %3539 = vst.msk [vmem:[#allocation7] sm:$0xff] %vm29, %v3537
  %3541 = vrot.lane.b32.xlu0 %v3534, 32
  %v3542 = vpop.permute.xlu0 %3541
  %3544 = vst.msk [vmem:[#allocation6] sm:$0xff] %vm29, %v3542
  %s3545 = scalar_lea.vmem %s6, 48
  %v3546 = vld [vmem:[%s3545] sm:$0xff]
  %3548 = vrot.lane.b32.xlu0 %v3546, 96
  %v3549 = vpop.permute.xlu0 %3548
  %v3551 = vmul.f32 %v3534, %v3549
  %3553 = vrot.lane.b32.xlu0 %v3551, 32
  %v3554 = vpop.permute.xlu0 %3553
  %s3556 = scalar_lea.vmem %s7, 48
  %3557 = vst.msk [vmem:[%s3556] sm:$0xff] %vm29, %v3554
  %s3558 = scalar_lea.vmem [#allocation5], 56
  %v3559 = vld [vmem:[%s3558] sm:$0xff]
  %v3560 = vld [vmem:[#allocation6] sm:$0xff]
  %v3561 = vpack.c.bf16 %v3560, %v3560
  %v3562 = vld [vmem:[%s5] sm:$0xf]
  %v3563 = vld [vmem:[%s5 + $0x4] sm:$0xf]
  %v3564 = vld [vmem:[%s5 + $0x8] sm:$0xf]
  %v3565 = vld [vmem:[%s5 + $0xc] sm:$0xf]
  %v3570 = vunpack.c.l.b16 %v3562
  %v3571 = vunpack.c.l.b16 %v3563
  %v3572 = vunpack.c.l.b16 %v3564
  %v3573 = vunpack.c.l.b16 %v3565
  %v3574 = vpack.c.b16 %v3571, %v3570
  %v3575 = vpack.c.b16 %v3573, %v3572
  %v3579 = vsel %vm29, %v3561, 0
  %3581 = vmatprep.subr.bf16.mxu0 0
  %3582 = vmatpush1.bf16.msra.mxu0 %v3574
  %3583 = vmatprep.subr.bf16.mxu0 0
  %3584 = vmatpush1.bf16.msra.mxu0 %v3575
  %3585 = vmatprep.subr.bf16.mxu0 0
  %3586 = vmatpush1.bf16.msra.mxu0 0
  %3587 = vmatprep.subr.bf16.mxu0 0
  %3588 = vmatpush1.bf16.msra.mxu0 0
  %3589 = vmatprep.subr.bf16.mxu0 0
  %3590 = vmatpush1.bf16.msra.mxu0 0
  %3591 = vmatprep.subr.bf16.mxu0 0
  %3592 = vmatpush1.bf16.msra.mxu0 0
  %3593 = vmatprep.subr.bf16.mxu0 0
  %3594 = vmatpush1.bf16.msra.mxu0 0
  %3595 = vmatprep.subr.bf16.mxu0 0
  %3596 = vmatpush1.bf16.msra.mxu0 0
  %3597 = vmatprep.subr.bf16.mxu0 0
  %3598 = vmatpush1.bf16.msra.mxu0 0
  %3599 = vmatprep.subr.bf16.mxu0 0
  %3600 = vmatpush1.bf16.msra.mxu0 0
  %3601 = vmatprep.subr.bf16.mxu0 0
  %3602 = vmatpush1.bf16.msra.mxu0 0
  %3603 = vmatprep.subr.bf16.mxu0 0
  %3604 = vmatpush1.bf16.msra.mxu0 0
  %3605 = vmatprep.subr.bf16.mxu0 0
  %3606 = vmatpush1.bf16.msra.mxu0 0
  %3607 = vmatprep.subr.bf16.mxu0 0
  %3608 = vmatpush1.bf16.msra.mxu0 0
  %3609 = vmatprep.subr.bf16.mxu0 0
  %3610 = vmatpush1.bf16.msra.mxu0 0
  %3611 = vmatprep.subr.bf16.mxu0 0
  %3612 = vmatpush1.bf16.msra.mxu0 0
  %3613 = vmatprep.mubr.bf16.mxu0 0
  %3614 = vmatmul.mubr.bf16.gmra.mrb[0].mxu0 %v3579
  %v3615 = vpop.f32.mrb[0].mxu0
  %v3616 = vadd.f32 0.0, %v3615
  %v3617 = vpop.f32.mrb[0].mxu0
  %v3618 = vpop.f32.mrb[0].mxu0
  %v3619 = vpop.f32.mrb[0].mxu0
  %3620 = vdwg.mxu0
  %v3621 = vadd.f32 %v3559, %v3616
  %v3622 = vxor.u32 %v3621, 2147483648
  %v3623 = vmul.f32 %v3622, 1.442695
  %v3624 = vpow.pop %v3623
  %v3625 = vadd.f32 %v3624, 1.0
  %v3626 = vrcp.pop %v3625
  %v3627 = vmul.f32 1.0, %v3626
  %v3628 = vtanh.pop %v3621
  %v3629 = vld [vmem:[#allocation7] sm:$0xff]
  %3631 = vrot.lane.b32.xlu0 %v3629, 32
  %v3632 = vpop.permute.xlu0 %3631
  %v3634 = vmul.f32 %v3627, %v3632
  %3636 = vrot.lane.b32.xlu0 %v3628, 64
  %v3637 = vpop.permute.xlu0 %3636
  %v3639 = vmul.f32 %v3627, %v3637
  %3641 = vrot.lane.b32.xlu0 %v3639, 32
  %v3642 = vpop.permute.xlu0 %3641
  %v3644 = vadd.f32 %v3634, %v3642
  %v3645 = vtanh.pop %v3644
  %3647 = vrot.lane.b32.xlu0 %v3645, 64
  %v3648 = vpop.permute.xlu0 %3647
  %v3650 = vmul.f32 %v3627, %v3648
  %3652 = vrot.lane.b32.xlu0 %v3644, 96
  %v3653 = vpop.permute.xlu0 %3652
  %3655 = vst.msk [vmem:[#allocation7] sm:$0xff] %vm29, %v3653
  %3657 = vrot.lane.b32.xlu0 %v3650, 32
  %v3658 = vpop.permute.xlu0 %3657
  %3660 = vst.msk [vmem:[#allocation6] sm:$0xff] %vm29, %v3658
  %s3661 = scalar_lea.vmem %s6, 56
  %v3662 = vld [vmem:[%s3661] sm:$0xff]
  %3664 = vrot.lane.b32.xlu0 %v3662, 96
  %v3665 = vpop.permute.xlu0 %3664
  %v3667 = vmul.f32 %v3650, %v3665
  %3669 = vrot.lane.b32.xlu0 %v3667, 32
  %v3670 = vpop.permute.xlu0 %3669
  %s3672 = scalar_lea.vmem %s7, 56
  %3673 = vst.msk [vmem:[%s3672] sm:$0xff] %vm29, %v3670
  // Predicated region
  $region30: #{autoencoder_forward.3} parent=0 // pred_check
    _
  $region31: #{autoencoder_forward.3} parent=0 // pred_check_branch
    %3675 = sbr.rel (0) target = $region33
  $region32: #{autoencoder_forward.3} parent=0 // pred_region
    _
  $region33: #{autoencoder_forward.3} parent=0 // pred_fallthru
    _
  // Predicated region
  $region34: #{autoencoder_forward.3} parent=0 // pred_check
    _
  $region35: #{autoencoder_forward.3} parent=0 // pred_check_branch
    %3677 = sbr.rel (0) target = $region37
  $region36: #{autoencoder_forward.3} parent=0 // pred_region
    _
  $region37: #{autoencoder_forward.3} parent=0 // pred_fallthru
    _

</llo_original>
